<compile_context>
chip_gen: v5e
topology: v5e:2x2
jax: 0.10.0
libtpu: 0.0.40
codegen_flags: <defaults>
</compile_context>

<pallas_src>
import functools

import numpy as np
import jax
import jax.numpy as jnp
from jax.experimental import pallas as pl
from jax.experimental.pallas import tpu as pltpu


def _rup(x, m):
    return (x + m - 1) // m * m


_STEM_K = 256                                   # 7*7*3 = 147 padded up for the MXU
_EPS = 1e-5
_CP = pltpu.CompilerParams(vmem_limit_bytes=32 * 1024 * 1024)


# --------------------------------------------------------------------------
# padded-flat activation geometry
#   a feature map of N images, spatial H x W, is stored as
#   [m zero rows | N*(H+2)*(W+2) "core" rows (zero halo) | m zero rows] x C
#   with m = roundup(W+3, 16) so the core starts on a bf16 tile boundary.
# --------------------------------------------------------------------------
def _ext_geom(n, h, w):
    hp, wp = h + 2, w + 2
    r = n * hp * wp
    m = _rup(wp + 1, 16)
    return hp, wp, r, m, r + 2 * m


@functools.lru_cache(maxsize=None)
def _core_mask(n, h, w):
    """1.0 at real-pixel rows of the core, 0.0 at halo rows.  Shape [R, 1]."""
    hp, wp = h + 2, w + 2
    msk = np.zeros((n, hp, wp, 1), np.float32)
    msk[:, 1:h + 1, 1:w + 1, :] = 1.0
    return jnp.asarray(msk.reshape(n * hp * wp, 1))


@functools.lru_cache(maxsize=None)
def _sub_mask(n, h, w):
    """1.0 at the stride-2 conv output source positions (padded coords odd)."""
    hp, wp = h + 2, w + 2
    msk = np.zeros((n, hp, wp, 1), np.float32)
    msk[:, 1:h:2, 1:w:2, :] = 1.0
    return jnp.asarray(msk.reshape(n * hp * wp, 1))


# --------------------------------------------------------------------------
# in-kernel helpers (traced inside the Pallas bodies)
# --------------------------------------------------------------------------
def _conv3x3_taps(src_ref, w_ref, base, wp, r):
    """3x3 conv over the padded-flat layout: 9 contiguous row-slice MXU dots."""
    acc = None
    for di in range(3):
        for dj in range(3):
            start = base + di * wp + dj
            a = src_ref[start:start + r, :]
            if a.dtype != jnp.bfloat16:
                a = a.astype(jnp.bfloat16)
            p = jnp.dot(a, w_ref[di * 3 + dj],
                        preferred_element_type=jnp.float32)
            acc = p if acc is None else acc + p
    return acc                                   # [r, Cout] f32 (halo rows garbage)


def _bn_train(y, valid, g, b, m_true, eps):
    """Training-mode BatchNorm over rows where valid==1 (biased variance)."""
    ym = y * valid
    s = jnp.sum(ym, axis=0, keepdims=True)
    ss = jnp.sum(ym * y, axis=0, keepdims=True)
    mean = s * (1.0 / m_true)
    var = jnp.maximum(ss * (1.0 / m_true) - mean * mean, 0.0)
    scale = g * jax.lax.rsqrt(var + eps)
    shift = b - mean * scale
    return y * scale + shift


# --------------------------------------------------------------------------
# stem: (7x7/s2 conv as matmul) + BN + ReLU + 3x3/s2 maxpool, fully fused
# --------------------------------------------------------------------------
def _stem_kernel(p_ref, w_ref, g_ref, b_ref, o_ref, hp_ref, o32_ref,
                 *, n, oh, ow, eps):
    m0 = n * oh * ow
    y = jnp.dot(p_ref[...], w_ref[...], preferred_element_type=jnp.float32)
    h = jnp.maximum(_bn_train(y, 1.0, g_ref[...], b_ref[...], float(m0), eps),
                    0.0)                                        # [m0, 64] f32

    # stage at padded full resolution (zero padding == -inf padding post-ReLU)
    php, pwp, pr, pm, _ = _ext_geom(n, oh, ow)
    hp_ref[...] = jnp.zeros_like(hp_ref)
    for ni in range(n):
        for yy in range(oh):
            dst = pm + ni * php * pwp + (yy + 1) * pwp + 1
            src = (ni * oh + yy) * ow
            hp_ref[dst:dst + ow, :] = h[src:src + ow, :]

    # full-resolution 3x3 max, then stride-2 subsample into the layer1 layout
    base = pm - pwp - 1
    vmax = None
    for di in range(3):
        for dj in range(3):
            start = base + di * pwp + dj
            v = hp_ref[start:start + pr, :]
            vmax = v if vmax is None else jnp.maximum(vmax, v)

    qh, qw = oh // 2, ow // 2
    qhp, qwp, _, qm, _ = _ext_geom(n, qh, qw)
    o32_ref[...] = jnp.zeros_like(o32_ref)
    for ni in range(n):
        for oy in range(qh):
            for ox in range(qw):
                src = ni * php * pwp + (2 * oy + 1) * pwp + (2 * ox + 1)
                dst = qm + ni * qhp * qwp + (oy + 1) * qwp + (ox + 1)
                o32_ref[dst:dst + 1, :] = vmax[src:src + 1, :]
    o_ref[...] = o32_ref[...].astype(o_ref.dtype)


# --------------------------------------------------------------------------
# BasicBlock, stride 1, identity residual (one pallas_call)
# --------------------------------------------------------------------------
def _block_s1_kernel(a_ref, mask_ref, w1_ref, g1_ref, b1_ref,
                     w2_ref, g2_ref, b2_ref, o_ref, h1x_ref,
                     *, n, h, w, eps):
    hp, wp, r, m, _ = _ext_geom(n, h, w)
    base = m - wp - 1
    m_true = float(n * h * w)
    mask = mask_ref[...]

    y1 = _conv3x3_taps(a_ref, w1_ref, base, wp, r)
    h1 = jnp.maximum(_bn_train(y1, mask, g1_ref[...], b1_ref[...], m_true, eps),
                     0.0) * mask

    h1x_ref[...] = jnp.zeros_like(h1x_ref)       # conv2 input, extended layout
    h1x_ref[m:m + r, :] = h1

    y2 = _conv3x3_taps(h1x_ref, w2_ref, base, wp, r)
    y2 = _bn_train(y2, mask, g2_ref[...], b2_ref[...], m_true, eps)

    res = a_ref[m:m + r, :].astype(jnp.float32)  # identity residual
    out = jnp.maximum(y2 + res, 0.0) * mask

    o_ref[...] = jnp.zeros_like(o_ref)
    o_ref[m:m + r, :] = out.astype(o_ref.dtype)


# --------------------------------------------------------------------------
# BasicBlock, stride 2, 1x1/s2 downsample residual (one pallas_call)
# --------------------------------------------------------------------------
def _block_s2_kernel(a_ref, msub_ref, mout_ref,
                     w1_ref, g1_ref, b1_ref, w2_ref, g2_ref, b2_ref,
                     wd_ref, gd_ref, bd_ref,
                     o_ref, h1x_ref, xd_ref, *, n, h, w, eps):
    hp, wp, r_in, m_in, _ = _ext_geom(n, h, w)
    oh, ow = h // 2, w // 2
    ohp, owp, r_out, m_out, _ = _ext_geom(n, oh, ow)
    base_in = m_in - wp - 1
    base_out = m_out - owp - 1
    m_true = float(n * oh * ow)
    msub = msub_ref[...]
    mout = mout_ref[...]

    # conv1 evaluated densely at stride 1 (compute is negligible here);
    # batch-norm statistics taken over the stride-2 subsample only.
    y1 = _conv3x3_taps(a_ref, w1_ref, base_in, wp, r_in)
    h1 = jnp.maximum(_bn_train(y1, msub, g1_ref[...], b1_ref[...], m_true, eps),
                     0.0)

    # scatter the stride-2 subsample into conv2's extended input and gather the
    # matching block-input rows for the 1x1/s2 downsample matmul.
    h1x_ref[...] = jnp.zeros_like(h1x_ref)
    xd_ref[...] = jnp.zeros_like(xd_ref)
    for ni in range(n):
        for oy in range(oh):
            for ox in range(ow):
                src = ni * hp * wp + (2 * oy + 1) * wp + (2 * ox + 1)
                dst = ni * ohp * owp + (oy + 1) * owp + (ox + 1)
                h1x_ref[m_out + dst:m_out + dst + 1, :] = h1[src:src + 1, :]
                xd_ref[dst:dst + 1, :] = (
                    a_ref[m_in + src:m_in + src + 1, :].astype(jnp.float32))

    y2 = _conv3x3_taps(h1x_ref, w2_ref, base_out, owp, r_out)
    y2 = _bn_train(y2, mout, g2_ref[...], b2_ref[...], m_true, eps)

    yd = jnp.dot(xd_ref[...].astype(jnp.bfloat16), wd_ref[...],
                 preferred_element_type=jnp.float32)
    res = _bn_train(yd, mout, gd_ref[...], bd_ref[...], m_true, eps)

    out = jnp.maximum(y2 + res, 0.0) * mout
    o_ref[...] = jnp.zeros_like(o_ref)
    o_ref[m_out:m_out + r_out, :] = out.astype(o_ref.dtype)


# --------------------------------------------------------------------------
# head: global average pool + Linear + ReLU + Linear (one pallas_call)
# --------------------------------------------------------------------------
def _head_kernel(x_ref, w1_ref, b1_ref, w2_ref, b2_ref, o_ref, pool_ref,
                 *, n, h, w):
    hp, wp, _, m, _ = _ext_geom(n, h, w)
    inv = 1.0 / float(h * w)
    pool_ref[...] = jnp.zeros_like(pool_ref)
    for ni in range(n):                           # halo rows are zero -> exact mean
        start = m + ni * hp * wp
        xs = x_ref[start:start + hp * wp, :].astype(jnp.float32)
        pool_ref[ni:ni + 1, :] = jnp.sum(xs, axis=0, keepdims=True) * inv

    hid = jnp.dot(pool_ref[...].astype(jnp.bfloat16), w1_ref[...],
                  preferred_element_type=jnp.float32) + b1_ref[...]
    hid = jnp.maximum(hid, 0.0)
    z = jnp.dot(hid.astype(jnp.bfloat16), w2_ref[...],
                preferred_element_type=jnp.float32) + b2_ref[...]
    o_ref[...] = z


# --------------------------------------------------------------------------
# parameter init / layout prep (done once)
# --------------------------------------------------------------------------
class _KeyGen:
    def __init__(self, key):
        self.key = key

    def __call__(self):
        self.key, k = jax.random.split(self.key)
        return k


def _conv_w(key, oc, ic, kh, kw):
    fan_out = oc * kh * kw
    std = (2.0 / fan_out) ** 0.5                  # kaiming normal, fan_out, relu
    return jax.random.normal(key, (oc, ic, kh, kw), jnp.float32) * std


def _prep3x3(w_oihw):
    o, i, kh, kw = w_oihw.shape                   # OIHW -> [9, Cin, Cout] bf16
    return (jnp.transpose(w_oihw, (2, 3, 1, 0))
            .reshape(kh * kw, i, o).astype(jnp.bfloat16))


def _bn_params(c):
    return jnp.ones((1, c), jnp.float32), jnp.zeros((1, c), jnp.float32)


def _linear_params(kg, in_dim, out_dim):
    bound = 1.0 / (in_dim ** 0.5)
    w = jax.random.uniform(kg(), (out_dim, in_dim), jnp.float32, -bound, bound)
    b = jax.random.uniform(kg(), (out_dim,), jnp.float32, -bound, bound)
    n_p = _rup(out_dim, 128)
    w_t = jnp.pad(w.T, ((0, 0), (0, n_p - out_dim))).astype(jnp.bfloat16)
    b_p = jnp.pad(b.reshape(1, out_dim), ((0, 0), (0, n_p - out_dim)))
    return w_t, b_p


def init_resnet34_params(key, out_dim):
    kg = _KeyGen(key)
    p = {'out_dim': out_dim}
    w = _conv_w(kg(), 64, 3, 7, 7)
    w2 = jnp.transpose(w, (2, 3, 1, 0)).reshape(49 * 3, 64)
    p['conv1_w'] = jnp.pad(w2, ((0, _STEM_K - 49 * 3), (0, 0))).astype(jnp.bfloat16)
    p['bn1_g'], p['bn1_b'] = _bn_params(64)
    inplanes = 64
    cfg = [('layer1', 64, 3, 1), ('layer2', 128, 4, 2),
           ('layer3', 256, 6, 2), ('layer4', 512, 3, 2)]
    for name, planes, nblocks, stride in cfg:
        blocks = []
        for bi in range(nblocks):
            s = stride if bi == 0 else 1
            blk = {'stride': s,
                   'conv1_w': _prep3x3(_conv_w(kg(), planes, inplanes, 3, 3)),
                   'conv2_w': _prep3x3(_conv_w(kg(), planes, planes, 3, 3))}
            blk['bn1_g'], blk['bn1_b'] = _bn_params(planes)
            blk['bn2_g'], blk['bn2_b'] = _bn_params(planes)
            if s != 1 or inplanes != planes:
                wd = _conv_w(kg(), planes, inplanes, 1, 1)
                blk['ds_w'] = wd.reshape(planes, inplanes).T.astype(jnp.bfloat16)
                blk['ds_g'], blk['ds_b'] = _bn_params(planes)
            blocks.append(blk)
            inplanes = planes
        p[name] = blocks
    p['fc1_w'], p['fc1_b'] = _linear_params(kg, 512, 512)
    p['fc2_w'], p['fc2_b'] = _linear_params(kg, 512, out_dim)
    return p


# --------------------------------------------------------------------------
# model forward
# --------------------------------------------------------------------------
def _run_block(x, p, n, h, w, c_in, c_out):
    if p['stride'] == 1:
        _, _, _, _, e = _ext_geom(n, h, w)
        out = pl.pallas_call(
            functools.partial(_block_s1_kernel, n=n, h=h, w=w, eps=_EPS),
            out_shape=jax.ShapeDtypeStruct((e, c_out), jnp.bfloat16),
            scratch_shapes=[pltpu.VMEM((e, c_out), jnp.float32)],
            compiler_params=_CP,
        )(x, _core_mask(n, h, w),
          p['conv1_w'], p['bn1_g'], p['bn1_b'],
          p['conv2_w'], p['bn2_g'], p['bn2_b'])
        return out, h, w
    oh, ow = h // 2, w // 2
    _, _, r_out, _, e_out = _ext_geom(n, oh, ow)
    out = pl.pallas_call(
        functools.partial(_block_s2_kernel, n=n, h=h, w=w, eps=_EPS),
        out_shape=jax.ShapeDtypeStruct((e_out, c_out), jnp.bfloat16),
        scratch_shapes=[pltpu.VMEM((e_out, c_out), jnp.float32),
                        pltpu.VMEM((r_out, c_in), jnp.float32)],
        compiler_params=_CP,
    )(x, _sub_mask(n, h, w), _core_mask(n, oh, ow),
      p['conv1_w'], p['bn1_g'], p['bn1_b'],
      p['conv2_w'], p['bn2_g'], p['bn2_b'],
      p['ds_w'], p['ds_g'], p['ds_b'])
    return out, oh, ow


def resnet34_forward(x_nchw, params):
    n, _, h_in, w_in = x_nchw.shape
    x = jnp.transpose(x_nchw, (0, 2, 3, 1)).astype(jnp.bfloat16)   # NHWC bf16

    # ---- stem: 7x7/s2 conv (host-side im2col, Cin=3) + BN + ReLU + maxpool,
    #      fused into one Pallas kernel that emits the layer1 input layout.
    # TODO(synk): the Cin=3 stem patch extraction stays host-side XLA glue.
    oh, ow = h_in // 2, w_in // 2
    xp = jnp.pad(x, ((0, 0), (3, 3), (3, 3), (0, 0)))
    cols = [xp[:, i:i + 2 * oh:2, j:j + 2 * ow:2, :]
            for i in range(7) for j in range(7)]
    patches = jnp.stack(cols, axis=3).reshape(n * oh * ow, 49 * 3)
    patches = jnp.pad(patches, ((0, 0), (0, _STEM_K - 49 * 3)))

    qh, qw = oh // 2, ow // 2
    _, _, _, _, e1 = _ext_geom(n, qh, qw)
    _, _, _, _, pe = _ext_geom(n, oh, ow)
    x = pl.pallas_call(
        functools.partial(_stem_kernel, n=n, oh=oh, ow=ow, eps=_EPS),
        out_shape=jax.ShapeDtypeStruct((e1, 64), jnp.bfloat16),
        scratch_shapes=[pltpu.VMEM((pe, 64), jnp.float32),
                        pltpu.VMEM((e1, 64), jnp.float32)],
        compiler_params=_CP,
    )(patches, params['conv1_w'], params['bn1_g'], params['bn1_b'])

    # ---- residual stages, one fused pallas_call per BasicBlock
    ch, cw, cc = qh, qw, 64
    for lname, planes in (('layer1', 64), ('layer2', 128),
                          ('layer3', 256), ('layer4', 512)):
        for blk in params[lname]:
            x, ch, cw = _run_block(x, blk, n, ch, cw, cc, planes)
            cc = planes

    # ---- avgpool + MLP head fused into one kernel
    mp = _rup(n, 8)
    out_p = params['fc2_b'].shape[1]
    z = pl.pallas_call(
        functools.partial(_head_kernel, n=n, h=ch, w=cw),
        out_shape=jax.ShapeDtypeStruct((mp, out_p), jnp.float32),
        scratch_shapes=[pltpu.VMEM((mp, 512), jnp.float32)],
        compiler_params=_CP,
    )(x, params['fc1_w'], params['fc1_b'], params['fc2_w'], params['fc2_b'])
    return z[:n, :params['out_dim']]


if __name__ == "__main__":
    OUT_DIM = 128
    key = jax.random.PRNGKey(0)
    kparam, kdata = jax.random.split(key)
    params = init_resnet34_params(kparam, OUT_DIM)
    # batch=2, 3 channels, 32x32 (minimum convenient size for 5 stride-2 stages)
    x = jax.random.normal(kdata, (2, 3, 32, 32), jnp.float32)
    z = resnet34_forward(x, params)
    jax.block_until_ready(z)
    assert z.shape == (2, OUT_DIM), z.shape
    assert bool(jnp.all(jnp.isfinite(z)))
    print("KERNEL_OK")
</pallas_src>

<mosaic_0001>
module attributes {stable_mosaic.version = 11 : i64} {
  func.func @_stem_kernel(%arg0: memref<512x256xbf16, #tpu.memory_space<vmem>>, %arg1: memref<256x64xbf16, #tpu.memory_space<vmem>>, %arg2: memref<1x64xf32, #tpu.memory_space<vmem>>, %arg3: memref<1x64xf32, #tpu.memory_space<vmem>>, %arg4: memref<232x64xbf16, #tpu.memory_space<vmem>>, %arg5: memref<712x64xf32, #tpu.memory_space<vmem>>, %arg6: memref<232x64xf32, #tpu.memory_space<vmem>>) attributes {dimension_semantics = [], scalar_prefetch = 0 : i64, scratch_operands = 2 : i64, tpu.core_type = #tpu.core_type<tc>} {
    %c0 = arith.constant 0 : index
    %c0_0 = arith.constant 0 : index
    %0 = vector.load %arg0[%c0, %c0_0] : memref<512x256xbf16, #tpu.memory_space<vmem>>, vector<512x256xbf16>
    %c0_1 = arith.constant 0 : index
    %c0_2 = arith.constant 0 : index
    %1 = vector.load %arg1[%c0_1, %c0_2] : memref<256x64xbf16, #tpu.memory_space<vmem>>, vector<256x64xbf16>
    %cst = arith.constant dense<0.000000e+00> : vector<512x64xf32>
    %2 = tpu.matmul %0, %1, %cst {dimension_numbers = #tpu.dot_dimension_numbers<[1], [0], [0], [1], [0, 0, 1, 1], [], []>} : vector<512x256xbf16>, vector<256x64xbf16>, vector<512x64xf32> -> vector<512x64xf32>
    %c0_3 = arith.constant 0 : index
    %c0_4 = arith.constant 0 : index
    %3 = vector.load %arg2[%c0_3, %c0_4] : memref<1x64xf32, #tpu.memory_space<vmem>>, vector<1x64xf32>
    %c0_5 = arith.constant 0 : index
    %c0_6 = arith.constant 0 : index
    %4 = vector.load %arg3[%c0_5, %c0_6] : memref<1x64xf32, #tpu.memory_space<vmem>>, vector<1x64xf32>
    %cst_7 = arith.constant 1.000000e+00 : f32
    %5 = vector.broadcast %cst_7 : f32 to vector<512x64xf32>
    %6 = arith.mulf %2, %5 : vector<512x64xf32>
    %cst_8 = arith.constant dense<0.000000e+00> : vector<64xf32>
    %7 = vector.multi_reduction <add>, %6, %cst_8 [0] : vector<512x64xf32> to vector<64xf32>
    %8 = vector.shape_cast %7 : vector<64xf32> to vector<1x64xf32>
    %9 = arith.mulf %6, %2 : vector<512x64xf32>
    %cst_9 = arith.constant dense<0.000000e+00> : vector<64xf32>
    %10 = vector.multi_reduction <add>, %9, %cst_9 [0] : vector<512x64xf32> to vector<64xf32>
    %11 = vector.shape_cast %10 : vector<64xf32> to vector<1x64xf32>
    %cst_10 = arith.constant 0.001953125 : f32
    %12 = vector.broadcast %cst_10 : f32 to vector<1x64xf32>
    %13 = arith.mulf %8, %12 : vector<1x64xf32>
    %cst_11 = arith.constant 0.001953125 : f32
    %14 = vector.broadcast %cst_11 : f32 to vector<1x64xf32>
    %15 = arith.mulf %11, %14 : vector<1x64xf32>
    %16 = arith.mulf %13, %13 : vector<1x64xf32>
    %17 = arith.subf %15, %16 : vector<1x64xf32>
    %cst_12 = arith.constant 0.000000e+00 : f32
    %18 = vector.broadcast %cst_12 : f32 to vector<1x64xf32>
    %19 = arith.maximumf %17, %18 : vector<1x64xf32>
    %cst_13 = arith.constant 9.99999974E-6 : f32
    %20 = vector.broadcast %cst_13 : f32 to vector<1x64xf32>
    %21 = arith.addf %19, %20 : vector<1x64xf32>
    %22 = math.rsqrt %21 : vector<1x64xf32>
    %23 = arith.mulf %3, %22 : vector<1x64xf32>
    %24 = arith.mulf %13, %23 : vector<1x64xf32>
    %25 = arith.subf %4, %24 : vector<1x64xf32>
    %26 = vector.broadcast %23 : vector<1x64xf32> to vector<512x64xf32>
    %27 = arith.mulf %2, %26 : vector<512x64xf32>
    %28 = vector.broadcast %25 : vector<1x64xf32> to vector<512x64xf32>
    %29 = arith.addf %27, %28 : vector<512x64xf32>
    %cst_14 = arith.constant 0.000000e+00 : f32
    %30 = vector.broadcast %cst_14 : f32 to vector<512x64xf32>
    %31 = arith.maximumf %29, %30 : vector<512x64xf32>
    %cst_15 = arith.constant 0.000000e+00 : f32
    %32 = vector.broadcast %cst_15 : f32 to vector<712x64xf32>
    %c0_16 = arith.constant 0 : index
    %c0_17 = arith.constant 0 : index
    %33 = vector.load %arg5[%c0_16, %c0_17] : memref<712x64xf32, #tpu.memory_space<vmem>>, vector<712x64xf32>
    tpu.vector_store %arg5[%c0_16, %c0_17], %32 {strides = array<i32>} : memref<712x64xf32, #tpu.memory_space<vmem>>, vector<712x64xf32>,
    %34 = vector.extract_strided_slice %31 {offsets = [0, 0], sizes = [16, 64], strides = [1, 1]} : vector<512x64xf32> to vector<16x64xf32>
    %c51 = arith.constant 51 : index
    %c0_18 = arith.constant 0 : index
    %35 = vector.load %arg5[%c51, %c0_18] : memref<712x64xf32, #tpu.memory_space<vmem>>, vector<16x64xf32>
    tpu.vector_store %arg5[%c51, %c0_18], %34 {strides = array<i32>} : memref<712x64xf32, #tpu.memory_space<vmem>>, vector<16x64xf32>,
    %36 = vector.extract_strided_slice %31 {offsets = [16, 0], sizes = [16, 64], strides = [1, 1]} : vector<512x64xf32> to vector<16x64xf32>
    %c69 = arith.constant 69 : index
    %c0_19 = arith.constant 0 : index
    %37 = vector.load %arg5[%c69, %c0_19] : memref<712x64xf32, #tpu.memory_space<vmem>>, vector<16x64xf32>
    tpu.vector_store %arg5[%c69, %c0_19], %36 {strides = array<i32>} : memref<712x64xf32, #tpu.memory_space<vmem>>, vector<16x64xf32>,
    %38 = vector.extract_strided_slice %31 {offsets = [32, 0], sizes = [16, 64], strides = [1, 1]} : vector<512x64xf32> to vector<16x64xf32>
    %c87 = arith.constant 87 : index
    %c0_20 = arith.constant 0 : index
    %39 = vector.load %arg5[%c87, %c0_20] : memref<712x64xf32, #tpu.memory_space<vmem>>, vector<16x64xf32>
    tpu.vector_store %arg5[%c87, %c0_20], %38 {strides = array<i32>} : memref<712x64xf32, #tpu.memory_space<vmem>>, vector<16x64xf32>,
    %40 = vector.extract_strided_slice %31 {offsets = [48, 0], sizes = [16, 64], strides = [1, 1]} : vector<512x64xf32> to vector<16x64xf32>
    %c105 = arith.constant 105 : index
    %c0_21 = arith.constant 0 : index
    %41 = vector.load %arg5[%c105, %c0_21] : memref<712x64xf32, #tpu.memory_space<vmem>>, vector<16x64xf32>
    tpu.vector_store %arg5[%c105, %c0_21], %40 {strides = array<i32>} : memref<712x64xf32, #tpu.memory_space<vmem>>, vector<16x64xf32>,
    %42 = vector.extract_strided_slice %31 {offsets = [64, 0], sizes = [16, 64], strides = [1, 1]} : vector<512x64xf32> to vector<16x64xf32>
    %c123 = arith.constant 123 : index
    %c0_22 = arith.constant 0 : index
    %43 = vector.load %arg5[%c123, %c0_22] : memref<712x64xf32, #tpu.memory_space<vmem>>, vector<16x64xf32>
    tpu.vector_store %arg5[%c123, %c0_22], %42 {strides = array<i32>} : memref<712x64xf32, #tpu.memory_space<vmem>>, vector<16x64xf32>,
    %44 = vector.extract_strided_slice %31 {offsets = [80, 0], sizes = [16, 64], strides = [1, 1]} : vector<512x64xf32> to vector<16x64xf32>
    %c141 = arith.constant 141 : index
    %c0_23 = arith.constant 0 : index
    %45 = vector.load %arg5[%c141, %c0_23] : memref<712x64xf32, #tpu.memory_space<vmem>>, vector<16x64xf32>
    tpu.vector_store %arg5[%c141, %c0_23], %44 {strides = array<i32>} : memref<712x64xf32, #tpu.memory_space<vmem>>, vector<16x64xf32>,
    %46 = vector.extract_strided_slice %31 {offsets = [96, 0], sizes = [16, 64], strides = [1, 1]} : vector<512x64xf32> to vector<16x64xf32>
    %c159 = arith.constant 159 : index
    %c0_24 = arith.constant 0 : index
    %47 = vector.load %arg5[%c159, %c0_24] : memref<712x64xf32, #tpu.memory_space<vmem>>, vector<16x64xf32>
    tpu.vector_store %arg5[%c159, %c0_24], %46 {strides = array<i32>} : memref<712x64xf32, #tpu.memory_space<vmem>>, vector<16x64xf32>,
    %48 = vector.extract_strided_slice %31 {offsets = [112, 0], sizes = [16, 64], strides = [1, 1]} : vector<512x64xf32> to vector<16x64xf32>
    %c177 = arith.constant 177 : index
    %c0_25 = arith.constant 0 : index
    %49 = vector.load %arg5[%c177, %c0_25] : memref<712x64xf32, #tpu.memory_space<vmem>>, vector<16x64xf32>
    tpu.vector_store %arg5[%c177, %c0_25], %48 {strides = array<i32>} : memref<712x64xf32, #tpu.memory_space<vmem>>, vector<16x64xf32>,
    %50 = vector.extract_strided_slice %31 {offsets = [128, 0], sizes = [16, 64], strides = [1, 1]} : vector<512x64xf32> to vector<16x64xf32>
    %c195 = arith.constant 195 : index
    %c0_26 = arith.constant 0 : index
    %51 = vector.load %arg5[%c195, %c0_26] : memref<712x64xf32, #tpu.memory_space<vmem>>, vector<16x64xf32>
    tpu.vector_store %arg5[%c195, %c0_26], %50 {strides = array<i32>} : memref<712x64xf32, #tpu.memory_space<vmem>>, vector<16x64xf32>,
    %52 = vector.extract_strided_slice %31 {offsets = [144, 0], sizes = [16, 64], strides = [1, 1]} : vector<512x64xf32> to vector<16x64xf32>
    %c213 = arith.constant 213 : index
    %c0_27 = arith.constant 0 : index
    %53 = vector.load %arg5[%c213, %c0_27] : memref<712x64xf32, #tpu.memory_space<vmem>>, vector<16x64xf32>
    tpu.vector_store %arg5[%c213, %c0_27], %52 {strides = array<i32>} : memref<712x64xf32, #tpu.memory_space<vmem>>, vector<16x64xf32>,
    %54 = vector.extract_strided_slice %31 {offsets = [160, 0], sizes = [16, 64], strides = [1, 1]} : vector<512x64xf32> to vector<16x64xf32>
    %c231 = arith.constant 231 : index
    %c0_28 = arith.constant 0 : index
    %55 = vector.load %arg5[%c231, %c0_28] : memref<712x64xf32, #tpu.memory_space<vmem>>, vector<16x64xf32>
    tpu.vector_store %arg5[%c231, %c0_28], %54 {strides = array<i32>} : memref<712x64xf32, #tpu.memory_space<vmem>>, vector<16x64xf32>,
    %56 = vector.extract_strided_slice %31 {offsets = [176, 0], sizes = [16, 64], strides = [1, 1]} : vector<512x64xf32> to vector<16x64xf32>
    %c249 = arith.constant 249 : index
    %c0_29 = arith.constant 0 : index
    %57 = vector.load %arg5[%c249, %c0_29] : memref<712x64xf32, #tpu.memory_space<vmem>>, vector<16x64xf32>
    tpu.vector_store %arg5[%c249, %c0_29], %56 {strides = array<i32>} : memref<712x64xf32, #tpu.memory_space<vmem>>, vector<16x64xf32>,
    %58 = vector.extract_strided_slice %31 {offsets = [192, 0], sizes = [16, 64], strides = [1, 1]} : vector<512x64xf32> to vector<16x64xf32>
    %c267 = arith.constant 267 : index
    %c0_30 = arith.constant 0 : index
    %59 = vector.load %arg5[%c267, %c0_30] : memref<712x64xf32, #tpu.memory_space<vmem>>, vector<16x64xf32>
    tpu.vector_store %arg5[%c267, %c0_30], %58 {strides = array<i32>} : memref<712x64xf32, #tpu.memory_space<vmem>>, vector<16x64xf32>,
    %60 = vector.extract_strided_slice %31 {offsets = [208, 0], sizes = [16, 64], strides = [1, 1]} : vector<512x64xf32> to vector<16x64xf32>
    %c285 = arith.constant 285 : index
    %c0_31 = arith.constant 0 : index
    %61 = vector.load %arg5[%c285, %c0_31] : memref<712x64xf32, #tpu.memory_space<vmem>>, vector<16x64xf32>
    tpu.vector_store %arg5[%c285, %c0_31], %60 {strides = array<i32>} : memref<712x64xf32, #tpu.memory_space<vmem>>, vector<16x64xf32>,
    %62 = vector.extract_strided_slice %31 {offsets = [224, 0], sizes = [16, 64], strides = [1, 1]} : vector<512x64xf32> to vector<16x64xf32>
    %c303 = arith.constant 303 : index
    %c0_32 = arith.constant 0 : index
    %63 = vector.load %arg5[%c303, %c0_32] : memref<712x64xf32, #tpu.memory_space<vmem>>, vector<16x64xf32>
    tpu.vector_store %arg5[%c303, %c0_32], %62 {strides = array<i32>} : memref<712x64xf32, #tpu.memory_space<vmem>>, vector<16x64xf32>,
    %64 = vector.extract_strided_slice %31 {offsets = [240, 0], sizes = [16, 64], strides = [1, 1]} : vector<512x64xf32> to vector<16x64xf32>
    %c321 = arith.constant 321 : index
    %c0_33 = arith.constant 0 : index
    %65 = vector.load %arg5[%c321, %c0_33] : memref<712x64xf32, #tpu.memory_space<vmem>>, vector<16x64xf32>
    tpu.vector_store %arg5[%c321, %c0_33], %64 {strides = array<i32>} : memref<712x64xf32, #tpu.memory_space<vmem>>, vector<16x64xf32>,
    %66 = vector.extract_strided_slice %31 {offsets = [256, 0], sizes = [16, 64], strides = [1, 1]} : vector<512x64xf32> to vector<16x64xf32>
    %c375 = arith.constant 375 : index
    %c0_34 = arith.constant 0 : index
    %67 = vector.load %arg5[%c375, %c0_34] : memref<712x64xf32, #tpu.memory_space<vmem>>, vector<16x64xf32>
    tpu.vector_store %arg5[%c375, %c0_34], %66 {strides = array<i32>} : memref<712x64xf32, #tpu.memory_space<vmem>>, vector<16x64xf32>,
    %68 = vector.extract_strided_slice %31 {offsets = [272, 0], sizes = [16, 64], strides = [1, 1]} : vector<512x64xf32> to vector<16x64xf32>
    %c393 = arith.constant 393 : index
    %c0_35 = arith.constant 0 : index
    %69 = vector.load %arg5[%c393, %c0_35] : memref<712x64xf32, #tpu.memory_space<vmem>>, vector<16x64xf32>
    tpu.vector_store %arg5[%c393, %c0_35], %68 {strides = array<i32>} : memref<712x64xf32, #tpu.memory_space<vmem>>, vector<16x64xf32>,
    %70 = vector.extract_strided_slice %31 {offsets = [288, 0], sizes = [16, 64], strides = [1, 1]} : vector<512x64xf32> to vector<16x64xf32>
    %c411 = arith.constant 411 : index
    %c0_36 = arith.constant 0 : index
    %71 = vector.load %arg5[%c411, %c0_36] : memref<712x64xf32, #tpu.memory_space<vmem>>, vector<16x64xf32>
    tpu.vector_store %arg5[%c411, %c0_36], %70 {strides = array<i32>} : memref<712x64xf32, #tpu.memory_space<vmem>>, vector<16x64xf32>,
    %72 = vector.extract_strided_slice %31 {offsets = [304, 0], sizes = [16, 64], strides = [1, 1]} : vector<512x64xf32> to vector<16x64xf32>
    %c429 = arith.constant 429 : index
    %c0_37 = arith.constant 0 : index
    %73 = vector.load %arg5[%c429, %c0_37] : memref<712x64xf32, #tpu.memory_space<vmem>>, vector<16x64xf32>
    tpu.vector_store %arg5[%c429, %c0_37], %72 {strides = array<i32>} : memref<712x64xf32, #tpu.memory_space<vmem>>, vector<16x64xf32>,
    %74 = vector.extract_strided_slice %31 {offsets = [320, 0], sizes = [16, 64], strides = [1, 1]} : vector<512x64xf32> to vector<16x64xf32>
    %c447 = arith.constant 447 : index
    %c0_38 = arith.constant 0 : index
    %75 = vector.load %arg5[%c447, %c0_38] : memref<712x64xf32, #tpu.memory_space<vmem>>, vector<16x64xf32>
    tpu.vector_store %arg5[%c447, %c0_38], %74 {strides = array<i32>} : memref<712x64xf32, #tpu.memory_space<vmem>>, vector<16x64xf32>,
    %76 = vector.extract_strided_slice %31 {offsets = [336, 0], sizes = [16, 64], strides = [1, 1]} : vector<512x64xf32> to vector<16x64xf32>
    %c465 = arith.constant 465 : index
    %c0_39 = arith.constant 0 : index
    %77 = vector.load %arg5[%c465, %c0_39] : memref<712x64xf32, #tpu.memory_space<vmem>>, vector<16x64xf32>
    tpu.vector_store %arg5[%c465, %c0_39], %76 {strides = array<i32>} : memref<712x64xf32, #tpu.memory_space<vmem>>, vector<16x64xf32>,
    %78 = vector.extract_strided_slice %31 {offsets = [352, 0], sizes = [16, 64], strides = [1, 1]} : vector<512x64xf32> to vector<16x64xf32>
    %c483 = arith.constant 483 : index
    %c0_40 = arith.constant 0 : index
    %79 = vector.load %arg5[%c483, %c0_40] : memref<712x64xf32, #tpu.memory_space<vmem>>, vector<16x64xf32>
    tpu.vector_store %arg5[%c483, %c0_40], %78 {strides = array<i32>} : memref<712x64xf32, #tpu.memory_space<vmem>>, vector<16x64xf32>,
    %80 = vector.extract_strided_slice %31 {offsets = [368, 0], sizes = [16, 64], strides = [1, 1]} : vector<512x64xf32> to vector<16x64xf32>
    %c501 = arith.constant 501 : index
    %c0_41 = arith.constant 0 : index
    %81 = vector.load %arg5[%c501, %c0_41] : memref<712x64xf32, #tpu.memory_space<vmem>>, vector<16x64xf32>
    tpu.vector_store %arg5[%c501, %c0_41], %80 {strides = array<i32>} : memref<712x64xf32, #tpu.memory_space<vmem>>, vector<16x64xf32>,
    %82 = vector.extract_strided_slice %31 {offsets = [384, 0], sizes = [16, 64], strides = [1, 1]} : vector<512x64xf32> to vector<16x64xf32>
    %c519 = arith.constant 519 : index
    %c0_42 = arith.constant 0 : index
    %83 = vector.load %arg5[%c519, %c0_42] : memref<712x64xf32, #tpu.memory_space<vmem>>, vector<16x64xf32>
    tpu.vector_store %arg5[%c519, %c0_42], %82 {strides = array<i32>} : memref<712x64xf32, #tpu.memory_space<vmem>>, vector<16x64xf32>,
    %84 = vector.extract_strided_slice %31 {offsets = [400, 0], sizes = [16, 64], strides = [1, 1]} : vector<512x64xf32> to vector<16x64xf32>
    %c537 = arith.constant 537 : index
    %c0_43 = arith.constant 0 : index
    %85 = vector.load %arg5[%c537, %c0_43] : memref<712x64xf32, #tpu.memory_space<vmem>>, vector<16x64xf32>
    tpu.vector_store %arg5[%c537, %c0_43], %84 {strides = array<i32>} : memref<712x64xf32, #tpu.memory_space<vmem>>, vector<16x64xf32>,
    %86 = vector.extract_strided_slice %31 {offsets = [416, 0], sizes = [16, 64], strides = [1, 1]} : vector<512x64xf32> to vector<16x64xf32>
    %c555 = arith.constant 555 : index
    %c0_44 = arith.constant 0 : index
    %87 = vector.load %arg5[%c555, %c0_44] : memref<712x64xf32, #tpu.memory_space<vmem>>, vector<16x64xf32>
    tpu.vector_store %arg5[%c555, %c0_44], %86 {strides = array<i32>} : memref<712x64xf32, #tpu.memory_space<vmem>>, vector<16x64xf32>,
    %88 = vector.extract_strided_slice %31 {offsets = [432, 0], sizes = [16, 64], strides = [1, 1]} : vector<512x64xf32> to vector<16x64xf32>
    %c573 = arith.constant 573 : index
    %c0_45 = arith.constant 0 : index
    %89 = vector.load %arg5[%c573, %c0_45] : memref<712x64xf32, #tpu.memory_space<vmem>>, vector<16x64xf32>
    tpu.vector_store %arg5[%c573, %c0_45], %88 {strides = array<i32>} : memref<712x64xf32, #tpu.memory_space<vmem>>, vector<16x64xf32>,
    %90 = vector.extract_strided_slice %31 {offsets = [448, 0], sizes = [16, 64], strides = [1, 1]} : vector<512x64xf32> to vector<16x64xf32>
    %c591 = arith.constant 591 : index
    %c0_46 = arith.constant 0 : index
    %91 = vector.load %arg5[%c591, %c0_46] : memref<712x64xf32, #tpu.memory_space<vmem>>, vector<16x64xf32>
    tpu.vector_store %arg5[%c591, %c0_46], %90 {strides = array<i32>} : memref<712x64xf32, #tpu.memory_space<vmem>>, vector<16x64xf32>,
    %92 = vector.extract_strided_slice %31 {offsets = [464, 0], sizes = [16, 64], strides = [1, 1]} : vector<512x64xf32> to vector<16x64xf32>
    %c609 = arith.constant 609 : index
    %c0_47 = arith.constant 0 : index
    %93 = vector.load %arg5[%c609, %c0_47] : memref<712x64xf32, #tpu.memory_space<vmem>>, vector<16x64xf32>
    tpu.vector_store %arg5[%c609, %c0_47], %92 {strides = array<i32>} : memref<712x64xf32, #tpu.memory_space<vmem>>, vector<16x64xf32>,
    %94 = vector.extract_strided_slice %31 {offsets = [480, 0], sizes = [16, 64], strides = [1, 1]} : vector<512x64xf32> to vector<16x64xf32>
    %c627 = arith.constant 627 : index
    %c0_48 = arith.constant 0 : index
    %95 = vector.load %arg5[%c627, %c0_48] : memref<712x64xf32, #tpu.memory_space<vmem>>, vector<16x64xf32>
    tpu.vector_store %arg5[%c627, %c0_48], %94 {strides = array<i32>} : memref<712x64xf32, #tpu.memory_space<vmem>>, vector<16x64xf32>,
    %96 = vector.extract_strided_slice %31 {offsets = [496, 0], sizes = [16, 64], strides = [1, 1]} : vector<512x64xf32> to vector<16x64xf32>
    %c645 = arith.constant 645 : index
    %c0_49 = arith.constant 0 : index
    %97 = vector.load %arg5[%c645, %c0_49] : memref<712x64xf32, #tpu.memory_space<vmem>>, vector<16x64xf32>
    tpu.vector_store %arg5[%c645, %c0_49], %96 {strides = array<i32>} : memref<712x64xf32, #tpu.memory_space<vmem>>, vector<16x64xf32>,
    %c13 = arith.constant 13 : index
    %c0_50 = arith.constant 0 : index
    %98 = vector.load %arg5[%c13, %c0_50] : memref<712x64xf32, #tpu.memory_space<vmem>>, vector<648x64xf32>
    %c14 = arith.constant 14 : index
    %c0_51 = arith.constant 0 : index
    %99 = vector.load %arg5[%c14, %c0_51] : memref<712x64xf32, #tpu.memory_space<vmem>>, vector<648x64xf32>
    %100 = arith.maximumf %98, %99 : vector<648x64xf32>
    %c15 = arith.constant 15 : index
    %c0_52 = arith.constant 0 : index
    %101 = vector.load %arg5[%c15, %c0_52] : memref<712x64xf32, #tpu.memory_space<vmem>>, vector<648x64xf32>
    %102 = arith.maximumf %100, %101 : vector<648x64xf32>
    %c31 = arith.constant 31 : index
    %c0_53 = arith.constant 0 : index
    %103 = vector.load %arg5[%c31, %c0_53] : memref<712x64xf32, #tpu.memory_space<vmem>>, vector<648x64xf32>
    %104 = arith.maximumf %102, %103 : vector<648x64xf32>
    %c32 = arith.constant 32 : index
    %c0_54 = arith.constant 0 : index
    %105 = vector.load %arg5[%c32, %c0_54] : memref<712x64xf32, #tpu.memory_space<vmem>>, vector<648x64xf32>
    %106 = arith.maximumf %104, %105 : vector<648x64xf32>
    %c33 = arith.constant 33 : index
    %c0_55 = arith.constant 0 : index
    %107 = vector.load %arg5[%c33, %c0_55] : memref<712x64xf32, #tpu.memory_space<vmem>>, vector<648x64xf32>
    %108 = arith.maximumf %106, %107 : vector<648x64xf32>
    %c49 = arith.constant 49 : index
    %c0_56 = arith.constant 0 : index
    %109 = vector.load %arg5[%c49, %c0_56] : memref<712x64xf32, #tpu.memory_space<vmem>>, vector<648x64xf32>
    %110 = arith.maximumf %108, %109 : vector<648x64xf32>
    %c50 = arith.constant 50 : index
    %c0_57 = arith.constant 0 : index
    %111 = vector.load %arg5[%c50, %c0_57] : memref<712x64xf32, #tpu.memory_space<vmem>>, vector<648x64xf32>
    %112 = arith.maximumf %110, %111 : vector<648x64xf32>
    %c51_58 = arith.constant 51 : index
    %c0_59 = arith.constant 0 : index
    %113 = vector.load %arg5[%c51_58, %c0_59] : memref<712x64xf32, #tpu.memory_space<vmem>>, vector<648x64xf32>
    %114 = arith.maximumf %112, %113 : vector<648x64xf32>
    %cst_60 = arith.constant 0.000000e+00 : f32
    %115 = vector.broadcast %cst_60 : f32 to vector<232x64xf32>
    %c0_61 = arith.constant 0 : index
    %c0_62 = arith.constant 0 : index
    %116 = vector.load %arg6[%c0_61, %c0_62] : memref<232x64xf32, #tpu.memory_space<vmem>>, vector<232x64xf32>
    tpu.vector_store %arg6[%c0_61, %c0_62], %115 {strides = array<i32>} : memref<232x64xf32, #tpu.memory_space<vmem>>, vector<232x64xf32>,
    %117 = vector.extract_strided_slice %114 {offsets = [19, 0], sizes = [1, 64], strides = [1, 1]} : vector<648x64xf32> to vector<1x64xf32>
    %c27 = arith.constant 27 : index
    %c0_63 = arith.constant 0 : index
    %118 = vector.load %arg6[%c27, %c0_63] : memref<232x64xf32, #tpu.memory_space<vmem>>, vector<1x64xf32>
    tpu.vector_store %arg6[%c27, %c0_63], %117 {strides = array<i32>} : memref<232x64xf32, #tpu.memory_space<vmem>>, vector<1x64xf32>,
    %119 = vector.extract_strided_slice %114 {offsets = [21, 0], sizes = [1, 64], strides = [1, 1]} : vector<648x64xf32> to vector<1x64xf32>
    %c28 = arith.constant 28 : index
    %c0_64 = arith.constant 0 : index
    %120 = vector.load %arg6[%c28, %c0_64] : memref<232x64xf32, #tpu.memory_space<vmem>>, vector<1x64xf32>
    tpu.vector_store %arg6[%c28, %c0_64], %119 {strides = array<i32>} : memref<232x64xf32, #tpu.memory_space<vmem>>, vector<1x64xf32>,
    %121 = vector.extract_strided_slice %114 {offsets = [23, 0], sizes = [1, 64], strides = [1, 1]} : vector<648x64xf32> to vector<1x64xf32>
    %c29 = arith.constant 29 : index
    %c0_65 = arith.constant 0 : index
    %122 = vector.load %arg6[%c29, %c0_65] : memref<232x64xf32, #tpu.memory_space<vmem>>, vector<1x64xf32>
    tpu.vector_store %arg6[%c29, %c0_65], %121 {strides = array<i32>} : memref<232x64xf32, #tpu.memory_space<vmem>>, vector<1x64xf32>,
    %123 = vector.extract_strided_slice %114 {offsets = [25, 0], sizes = [1, 64], strides = [1, 1]} : vector<648x64xf32> to vector<1x64xf32>
    %c30 = arith.constant 30 : index
    %c0_66 = arith.constant 0 : index
    %124 = vector.load %arg6[%c30, %c0_66] : memref<232x64xf32, #tpu.memory_space<vmem>>, vector<1x64xf32>
    tpu.vector_store %arg6[%c30, %c0_66], %123 {strides = array<i32>} : memref<232x64xf32, #tpu.memory_space<vmem>>, vector<1x64xf32>,
    %125 = vector.extract_strided_slice %114 {offsets = [27, 0], sizes = [1, 64], strides = [1, 1]} : vector<648x64xf32> to vector<1x64xf32>
    %c31_67 = arith.constant 31 : index
    %c0_68 = arith.constant 0 : index
    %126 = vector.load %arg6[%c31_67, %c0_68] : memref<232x64xf32, #tpu.memory_space<vmem>>, vector<1x64xf32>
    tpu.vector_store %arg6[%c31_67, %c0_68], %125 {strides = array<i32>} : memref<232x64xf32, #tpu.memory_space<vmem>>, vector<1x64xf32>,
    %127 = vector.extract_strided_slice %114 {offsets = [29, 0], sizes = [1, 64], strides = [1, 1]} : vector<648x64xf32> to vector<1x64xf32>
    %c32_69 = arith.constant 32 : index
    %c0_70 = arith.constant 0 : index
    %128 = vector.load %arg6[%c32_69, %c0_70] : memref<232x64xf32, #tpu.memory_space<vmem>>, vector<1x64xf32>
    tpu.vector_store %arg6[%c32_69, %c0_70], %127 {strides = array<i32>} : memref<232x64xf32, #tpu.memory_space<vmem>>, vector<1x64xf32>,
    %129 = vector.extract_strided_slice %114 {offsets = [31, 0], sizes = [1, 64], strides = [1, 1]} : vector<648x64xf32> to vector<1x64xf32>
    %c33_71 = arith.constant 33 : index
    %c0_72 = arith.constant 0 : index
    %130 = vector.load %arg6[%c33_71, %c0_72] : memref<232x64xf32, #tpu.memory_space<vmem>>, vector<1x64xf32>
    tpu.vector_store %arg6[%c33_71, %c0_72], %129 {strides = array<i32>} : memref<232x64xf32, #tpu.memory_space<vmem>>, vector<1x64xf32>,
    %131 = vector.extract_strided_slice %114 {offsets = [33, 0], sizes = [1, 64], strides = [1, 1]} : vector<648x64xf32> to vector<1x64xf32>
    %c34 = arith.constant 34 : index
    %c0_73 = arith.constant 0 : index
    %132 = vector.load %arg6[%c34, %c0_73] : memref<232x64xf32, #tpu.memory_space<vmem>>, vector<1x64xf32>
    tpu.vector_store %arg6[%c34, %c0_73], %131 {strides = array<i32>} : memref<232x64xf32, #tpu.memory_space<vmem>>, vector<1x64xf32>,
    %133 = vector.extract_strided_slice %114 {offsets = [55, 0], sizes = [1, 64], strides = [1, 1]} : vector<648x64xf32> to vector<1x64xf32>
    %c37 = arith.constant 37 : index
    %c0_74 = arith.constant 0 : index
    %134 = vector.load %arg6[%c37, %c0_74] : memref<232x64xf32, #tpu.memory_space<vmem>>, vector<1x64xf32>
    tpu.vector_store %arg6[%c37, %c0_74], %133 {strides = array<i32>} : memref<232x64xf32, #tpu.memory_space<vmem>>, vector<1x64xf32>,
    %135 = vector.extract_strided_slice %114 {offsets = [57, 0], sizes = [1, 64], strides = [1, 1]} : vector<648x64xf32> to vector<1x64xf32>
    %c38 = arith.constant 38 : index
    %c0_75 = arith.constant 0 : index
    %136 = vector.load %arg6[%c38, %c0_75] : memref<232x64xf32, #tpu.memory_space<vmem>>, vector<1x64xf32>
    tpu.vector_store %arg6[%c38, %c0_75], %135 {strides = array<i32>} : memref<232x64xf32, #tpu.memory_space<vmem>>, vector<1x64xf32>,
    %137 = vector.extract_strided_slice %114 {offsets = [59, 0], sizes = [1, 64], strides = [1, 1]} : vector<648x64xf32> to vector<1x64xf32>
    %c39 = arith.constant 39 : index
    %c0_76 = arith.constant 0 : index
    %138 = vector.load %arg6[%c39, %c0_76] : memref<232x64xf32, #tpu.memory_space<vmem>>, vector<1x64xf32>
    tpu.vector_store %arg6[%c39, %c0_76], %137 {strides = array<i32>} : memref<232x64xf32, #tpu.memory_space<vmem>>, vector<1x64xf32>,
    %139 = vector.extract_strided_slice %114 {offsets = [61, 0], sizes = [1, 64], strides = [1, 1]} : vector<648x64xf32> to vector<1x64xf32>
    %c40 = arith.constant 40 : index
    %c0_77 = arith.constant 0 : index
    %140 = vector.load %arg6[%c40, %c0_77] : memref<232x64xf32, #tpu.memory_space<vmem>>, vector<1x64xf32>
    tpu.vector_store %arg6[%c40, %c0_77], %139 {strides = array<i32>} : memref<232x64xf32, #tpu.memory_space<vmem>>, vector<1x64xf32>,
    %141 = vector.extract_strided_slice %114 {offsets = [63, 0], sizes = [1, 64], strides = [1, 1]} : vector<648x64xf32> to vector<1x64xf32>
    %c41 = arith.constant 41 : index
    %c0_78 = arith.constant 0 : index
    %142 = vector.load %arg6[%c41, %c0_78] : memref<232x64xf32, #tpu.memory_space<vmem>>, vector<1x64xf32>
    tpu.vector_store %arg6[%c41, %c0_78], %141 {strides = array<i32>} : memref<232x64xf32, #tpu.memory_space<vmem>>, vector<1x64xf32>,
    %143 = vector.extract_strided_slice %114 {offsets = [65, 0], sizes = [1, 64], strides = [1, 1]} : vector<648x64xf32> to vector<1x64xf32>
    %c42 = arith.constant 42 : index
    %c0_79 = arith.constant 0 : index
    %144 = vector.load %arg6[%c42, %c0_79] : memref<232x64xf32, #tpu.memory_space<vmem>>, vector<1x64xf32>
    tpu.vector_store %arg6[%c42, %c0_79], %143 {strides = array<i32>} : memref<232x64xf32, #tpu.memory_space<vmem>>, vector<1x64xf32>,
    %145 = vector.extract_strided_slice %114 {offsets = [67, 0], sizes = [1, 64], strides = [1, 1]} : vector<648x64xf32> to vector<1x64xf32>
    %c43 = arith.constant 43 : index
    %c0_80 = arith.constant 0 : index
    %146 = vector.load %arg6[%c43, %c0_80] : memref<232x64xf32, #tpu.memory_space<vmem>>, vector<1x64xf32>
    tpu.vector_store %arg6[%c43, %c0_80], %145 {strides = array<i32>} : memref<232x64xf32, #tpu.memory_space<vmem>>, vector<1x64xf32>,
    %147 = vector.extract_strided_slice %114 {offsets = [69, 0], sizes = [1, 64], strides = [1, 1]} : vector<648x64xf32> to vector<1x64xf32>
    %c44 = arith.constant 44 : index
    %c0_81 = arith.constant 0 : index
    %148 = vector.load %arg6[%c44, %c0_81] : memref<232x64xf32, #tpu.memory_space<vmem>>, vector<1x64xf32>
    tpu.vector_store %arg6[%c44, %c0_81], %147 {strides = array<i32>} : memref<232x64xf32, #tpu.memory_space<vmem>>, vector<1x64xf32>,
    %149 = vector.extract_strided_slice %114 {offsets = [91, 0], sizes = [1, 64], strides = [1, 1]} : vector<648x64xf32> to vector<1x64xf32>
    %c47 = arith.constant 47 : index
    %c0_82 = arith.constant 0 : index
    %150 = vector.load %arg6[%c47, %c0_82] : memref<232x64xf32, #tpu.memory_space<vmem>>, vector<1x64xf32>
    tpu.vector_store %arg6[%c47, %c0_82], %149 {strides = array<i32>} : memref<232x64xf32, #tpu.memory_space<vmem>>, vector<1x64xf32>,
    %151 = vector.extract_strided_slice %114 {offsets = [93, 0], sizes = [1, 64], strides = [1, 1]} : vector<648x64xf32> to vector<1x64xf32>
    %c48 = arith.constant 48 : index
    %c0_83 = arith.constant 0 : index
    %152 = vector.load %arg6[%c48, %c0_83] : memref<232x64xf32, #tpu.memory_space<vmem>>, vector<1x64xf32>
    tpu.vector_store %arg6[%c48, %c0_83], %151 {strides = array<i32>} : memref<232x64xf32, #tpu.memory_space<vmem>>, vector<1x64xf32>,
    %153 = vector.extract_strided_slice %114 {offsets = [95, 0], sizes = [1, 64], strides = [1, 1]} : vector<648x64xf32> to vector<1x64xf32>
    %c49_84 = arith.constant 49 : index
    %c0_85 = arith.constant 0 : index
    %154 = vector.load %arg6[%c49_84, %c0_85] : memref<232x64xf32, #tpu.memory_space<vmem>>, vector<1x64xf32>
    tpu.vector_store %arg6[%c49_84, %c0_85], %153 {strides = array<i32>} : memref<232x64xf32, #tpu.memory_space<vmem>>, vector<1x64xf32>,
    %155 = vector.extract_strided_slice %114 {offsets = [97, 0], sizes = [1, 64], strides = [1, 1]} : vector<648x64xf32> to vector<1x64xf32>
    %c50_86 = arith.constant 50 : index
    %c0_87 = arith.constant 0 : index
    %156 = vector.load %arg6[%c50_86, %c0_87] : memref<232x64xf32, #tpu.memory_space<vmem>>, vector<1x64xf32>
    tpu.vector_store %arg6[%c50_86, %c0_87], %155 {strides = array<i32>} : memref<232x64xf32, #tpu.memory_space<vmem>>, vector<1x64xf32>,
    %157 = vector.extract_strided_slice %114 {offsets = [99, 0], sizes = [1, 64], strides = [1, 1]} : vector<648x64xf32> to vector<1x64xf32>
    %c51_88 = arith.constant 51 : index
    %c0_89 = arith.constant 0 : index
    %158 = vector.load %arg6[%c51_88, %c0_89] : memref<232x64xf32, #tpu.memory_space<vmem>>, vector<1x64xf32>
    tpu.vector_store %arg6[%c51_88, %c0_89], %157 {strides = array<i32>} : memref<232x64xf32, #tpu.memory_space<vmem>>, vector<1x64xf32>,
    %159 = vector.extract_strided_slice %114 {offsets = [101, 0], sizes = [1, 64], strides = [1, 1]} : vector<648x64xf32> to vector<1x64xf32>
    %c52 = arith.constant 52 : index
    %c0_90 = arith.constant 0 : index
    %160 = vector.load %arg6[%c52, %c0_90] : memref<232x64xf32, #tpu.memory_space<vmem>>, vector<1x64xf32>
    tpu.vector_store %arg6[%c52, %c0_90], %159 {strides = array<i32>} : memref<232x64xf32, #tpu.memory_space<vmem>>, vector<1x64xf32>,
    %161 = vector.extract_strided_slice %114 {offsets = [103, 0], sizes = [1, 64], strides = [1, 1]} : vector<648x64xf32> to vector<1x64xf32>
    %c53 = arith.constant 53 : index
    %c0_91 = arith.constant 0 : index
    %162 = vector.load %arg6[%c53, %c0_91] : memref<232x64xf32, #tpu.memory_space<vmem>>, vector<1x64xf32>
    tpu.vector_store %arg6[%c53, %c0_91], %161 {strides = array<i32>} : memref<232x64xf32, #tpu.memory_space<vmem>>, vector<1x64xf32>,
    %163 = vector.extract_strided_slice %114 {offsets = [105, 0], sizes = [1, 64], strides = [1, 1]} : vector<648x64xf32> to vector<1x64xf32>
    %c54 = arith.constant 54 : index
    %c0_92 = arith.constant 0 : index
    %164 = vector.load %arg6[%c54, %c0_92] : memref<232x64xf32, #tpu.memory_space<vmem>>, vector<1x64xf32>
    tpu.vector_store %arg6[%c54, %c0_92], %163 {strides = array<i32>} : memref<232x64xf32, #tpu.memory_space<vmem>>, vector<1x64xf32>,
    %165 = vector.extract_strided_slice %114 {offsets = [127, 0], sizes = [1, 64], strides = [1, 1]} : vector<648x64xf32> to vector<1x64xf32>
    %c57 = arith.constant 57 : index
    %c0_93 = arith.constant 0 : index
    %166 = vector.load %arg6[%c57, %c0_93] : memref<232x64xf32, #tpu.memory_space<vmem>>, vector<1x64xf32>
    tpu.vector_store %arg6[%c57, %c0_93], %165 {strides = array<i32>} : memref<232x64xf32, #tpu.memory_space<vmem>>, vector<1x64xf32>,
    %167 = vector.extract_strided_slice %114 {offsets = [129, 0], sizes = [1, 64], strides = [1, 1]} : vector<648x64xf32> to vector<1x64xf32>
    %c58 = arith.constant 58 : index
    %c0_94 = arith.constant 0 : index
    %168 = vector.load %arg6[%c58, %c0_94] : memref<232x64xf32, #tpu.memory_space<vmem>>, vector<1x64xf32>
    tpu.vector_store %arg6[%c58, %c0_94], %167 {strides = array<i32>} : memref<232x64xf32, #tpu.memory_space<vmem>>, vector<1x64xf32>,
    %169 = vector.extract_strided_slice %114 {offsets = [131, 0], sizes = [1, 64], strides = [1, 1]} : vector<648x64xf32> to vector<1x64xf32>
    %c59 = arith.constant 59 : index
    %c0_95 = arith.constant 0 : index
    %170 = vector.load %arg6[%c59, %c0_95] : memref<232x64xf32, #tpu.memory_space<vmem>>, vector<1x64xf32>
    tpu.vector_store %arg6[%c59, %c0_95], %169 {strides = array<i32>} : memref<232x64xf32, #tpu.memory_space<vmem>>, vector<1x64xf32>,
    %171 = vector.extract_strided_slice %114 {offsets = [133, 0], sizes = [1, 64], strides = [1, 1]} : vector<648x64xf32> to vector<1x64xf32>
    %c60 = arith.constant 60 : index
    %c0_96 = arith.constant 0 : index
    %172 = vector.load %arg6[%c60, %c0_96] : memref<232x64xf32, #tpu.memory_space<vmem>>, vector<1x64xf32>
    tpu.vector_store %arg6[%c60, %c0_96], %171 {strides = array<i32>} : memref<232x64xf32, #tpu.memory_space<vmem>>, vector<1x64xf32>,
    %173 = vector.extract_strided_slice %114 {offsets = [135, 0], sizes = [1, 64], strides = [1, 1]} : vector<648x64xf32> to vector<1x64xf32>
    %c61 = arith.constant 61 : index
    %c0_97 = arith.constant 0 : index
    %174 = vector.load %arg6[%c61, %c0_97] : memref<232x64xf32, #tpu.memory_space<vmem>>, vector<1x64xf32>
    tpu.vector_store %arg6[%c61, %c0_97], %173 {strides = array<i32>} : memref<232x64xf32, #tpu.memory_space<vmem>>, vector<1x64xf32>,
    %175 = vector.extract_strided_slice %114 {offsets = [137, 0], sizes = [1, 64], strides = [1, 1]} : vector<648x64xf32> to vector<1x64xf32>
    %c62 = arith.constant 62 : index
    %c0_98 = arith.constant 0 : index
    %176 = vector.load %arg6[%c62, %c0_98] : memref<232x64xf32, #tpu.memory_space<vmem>>, vector<1x64xf32>
    tpu.vector_store %arg6[%c62, %c0_98], %175 {strides = array<i32>} : memref<232x64xf32, #tpu.memory_space<vmem>>, vector<1x64xf32>,
    %177 = vector.extract_strided_slice %114 {offsets = [139, 0], sizes = [1, 64], strides = [1, 1]} : vector<648x64xf32> to vector<1x64xf32>
    %c63 = arith.constant 63 : index
    %c0_99 = arith.constant 0 : index
    %178 = vector.load %arg6[%c63, %c0_99] : memref<232x64xf32, #tpu.memory_space<vmem>>, vector<1x64xf32>
    tpu.vector_store %arg6[%c63, %c0_99], %177 {strides = array<i32>} : memref<232x64xf32, #tpu.memory_space<vmem>>, vector<1x64xf32>,
    %179 = vector.extract_strided_slice %114 {offsets = [141, 0], sizes = [1, 64], strides = [1, 1]} : vector<648x64xf32> to vector<1x64xf32>
    %c64 = arith.constant 64 : index
    %c0_100 = arith.constant 0 : index
    %180 = vector.load %arg6[%c64, %c0_100] : memref<232x64xf32, #tpu.memory_space<vmem>>, vector<1x64xf32>
    tpu.vector_store %arg6[%c64, %c0_100], %179 {strides = array<i32>} : memref<232x64xf32, #tpu.memory_space<vmem>>, vector<1x64xf32>,
    %181 = vector.extract_strided_slice %114 {offsets = [163, 0], sizes = [1, 64], strides = [1, 1]} : vector<648x64xf32> to vector<1x64xf32>
    %c67 = arith.constant 67 : index
    %c0_101 = arith.constant 0 : index
    %182 = vector.load %arg6[%c67, %c0_101] : memref<232x64xf32, #tpu.memory_space<vmem>>, vector<1x64xf32>
    tpu.vector_store %arg6[%c67, %c0_101], %181 {strides = array<i32>} : memref<232x64xf32, #tpu.memory_space<vmem>>, vector<1x64xf32>,
    %183 = vector.extract_strided_slice %114 {offsets = [165, 0], sizes = [1, 64], strides = [1, 1]} : vector<648x64xf32> to vector<1x64xf32>
    %c68 = arith.constant 68 : index
    %c0_102 = arith.constant 0 : index
    %184 = vector.load %arg6[%c68, %c0_102] : memref<232x64xf32, #tpu.memory_space<vmem>>, vector<1x64xf32>
    tpu.vector_store %arg6[%c68, %c0_102], %183 {strides = array<i32>} : memref<232x64xf32, #tpu.memory_space<vmem>>, vector<1x64xf32>,
    %185 = vector.extract_strided_slice %114 {offsets = [167, 0], sizes = [1, 64], strides = [1, 1]} : vector<648x64xf32> to vector<1x64xf32>
    %c69_103 = arith.constant 69 : index
    %c0_104 = arith.constant 0 : index
    %186 = vector.load %arg6[%c69_103, %c0_104] : memref<232x64xf32, #tpu.memory_space<vmem>>, vector<1x64xf32>
    tpu.vector_store %arg6[%c69_103, %c0_104], %185 {strides = array<i32>} : memref<232x64xf32, #tpu.memory_space<vmem>>, vector<1x64xf32>,
    %187 = vector.extract_strided_slice %114 {offsets = [169, 0], sizes = [1, 64], strides = [1, 1]} : vector<648x64xf32> to vector<1x64xf32>
    %c70 = arith.constant 70 : index
    %c0_105 = arith.constant 0 : index
    %188 = vector.load %arg6[%c70, %c0_105] : memref<232x64xf32, #tpu.memory_space<vmem>>, vector<1x64xf32>
    tpu.vector_store %arg6[%c70, %c0_105], %187 {strides = array<i32>} : memref<232x64xf32, #tpu.memory_space<vmem>>, vector<1x64xf32>,
    %189 = vector.extract_strided_slice %114 {offsets = [171, 0], sizes = [1, 64], strides = [1, 1]} : vector<648x64xf32> to vector<1x64xf32>
    %c71 = arith.constant 71 : index
    %c0_106 = arith.constant 0 : index
    %190 = vector.load %arg6[%c71, %c0_106] : memref<232x64xf32, #tpu.memory_space<vmem>>, vector<1x64xf32>
    tpu.vector_store %arg6[%c71, %c0_106], %189 {strides = array<i32>} : memref<232x64xf32, #tpu.memory_space<vmem>>, vector<1x64xf32>,
    %191 = vector.extract_strided_slice %114 {offsets = [173, 0], sizes = [1, 64], strides = [1, 1]} : vector<648x64xf32> to vector<1x64xf32>
    %c72 = arith.constant 72 : index
    %c0_107 = arith.constant 0 : index
    %192 = vector.load %arg6[%c72, %c0_107] : memref<232x64xf32, #tpu.memory_space<vmem>>, vector<1x64xf32>
    tpu.vector_store %arg6[%c72, %c0_107], %191 {strides = array<i32>} : memref<232x64xf32, #tpu.memory_space<vmem>>, vector<1x64xf32>,
    %193 = vector.extract_strided_slice %114 {offsets = [175, 0], sizes = [1, 64], strides = [1, 1]} : vector<648x64xf32> to vector<1x64xf32>
    %c73 = arith.constant 73 : index
    %c0_108 = arith.constant 0 : index
    %194 = vector.load %arg6[%c73, %c0_108] : memref<232x64xf32, #tpu.memory_space<vmem>>, vector<1x64xf32>
    tpu.vector_store %arg6[%c73, %c0_108], %193 {strides = array<i32>} : memref<232x64xf32, #tpu.memory_space<vmem>>, vector<1x64xf32>,
    %195 = vector.extract_strided_slice %114 {offsets = [177, 0], sizes = [1, 64], strides = [1, 1]} : vector<648x64xf32> to vector<1x64xf32>
    %c74 = arith.constant 74 : index
    %c0_109 = arith.constant 0 : index
    %196 = vector.load %arg6[%c74, %c0_109] : memref<232x64xf32, #tpu.memory_space<vmem>>, vector<1x64xf32>
    tpu.vector_store %arg6[%c74, %c0_109], %195 {strides = array<i32>} : memref<232x64xf32, #tpu.memory_space<vmem>>, vector<1x64xf32>,
    %197 = vector.extract_strided_slice %114 {offsets = [199, 0], sizes = [1, 64], strides = [1, 1]} : vector<648x64xf32> to vector<1x64xf32>
    %c77 = arith.constant 77 : index
    %c0_110 = arith.constant 0 : index
    %198 = vector.load %arg6[%c77, %c0_110] : memref<232x64xf32, #tpu.memory_space<vmem>>, vector<1x64xf32>
    tpu.vector_store %arg6[%c77, %c0_110], %197 {strides = array<i32>} : memref<232x64xf32, #tpu.memory_space<vmem>>, vector<1x64xf32>,
    %199 = vector.extract_strided_slice %114 {offsets = [201, 0], sizes = [1, 64], strides = [1, 1]} : vector<648x64xf32> to vector<1x64xf32>
    %c78 = arith.constant 78 : index
    %c0_111 = arith.constant 0 : index
    %200 = vector.load %arg6[%c78, %c0_111] : memref<232x64xf32, #tpu.memory_space<vmem>>, vector<1x64xf32>
    tpu.vector_store %arg6[%c78, %c0_111], %199 {strides = array<i32>} : memref<232x64xf32, #tpu.memory_space<vmem>>, vector<1x64xf32>,
    %201 = vector.extract_strided_slice %114 {offsets = [203, 0], sizes = [1, 64], strides = [1, 1]} : vector<648x64xf32> to vector<1x64xf32>
    %c79 = arith.constant 79 : index
    %c0_112 = arith.constant 0 : index
    %202 = vector.load %arg6[%c79, %c0_112] : memref<232x64xf32, #tpu.memory_space<vmem>>, vector<1x64xf32>
    tpu.vector_store %arg6[%c79, %c0_112], %201 {strides = array<i32>} : memref<232x64xf32, #tpu.memory_space<vmem>>, vector<1x64xf32>,
    %203 = vector.extract_strided_slice %114 {offsets = [205, 0], sizes = [1, 64], strides = [1, 1]} : vector<648x64xf32> to vector<1x64xf32>
    %c80 = arith.constant 80 : index
    %c0_113 = arith.constant 0 : index
    %204 = vector.load %arg6[%c80, %c0_113] : memref<232x64xf32, #tpu.memory_space<vmem>>, vector<1x64xf32>
    tpu.vector_store %arg6[%c80, %c0_113], %203 {strides = array<i32>} : memref<232x64xf32, #tpu.memory_space<vmem>>, vector<1x64xf32>,
    %205 = vector.extract_strided_slice %114 {offsets = [207, 0], sizes = [1, 64], strides = [1, 1]} : vector<648x64xf32> to vector<1x64xf32>
    %c81 = arith.constant 81 : index
    %c0_114 = arith.constant 0 : index
    %206 = vector.load %arg6[%c81, %c0_114] : memref<232x64xf32, #tpu.memory_space<vmem>>, vector<1x64xf32>
    tpu.vector_store %arg6[%c81, %c0_114], %205 {strides = array<i32>} : memref<232x64xf32, #tpu.memory_space<vmem>>, vector<1x64xf32>,
    %207 = vector.extract_strided_slice %114 {offsets = [209, 0], sizes = [1, 64], strides = [1, 1]} : vector<648x64xf32> to vector<1x64xf32>
    %c82 = arith.constant 82 : index
    %c0_115 = arith.constant 0 : index
    %208 = vector.load %arg6[%c82, %c0_115] : memref<232x64xf32, #tpu.memory_space<vmem>>, vector<1x64xf32>
    tpu.vector_store %arg6[%c82, %c0_115], %207 {strides = array<i32>} : memref<232x64xf32, #tpu.memory_space<vmem>>, vector<1x64xf32>,
    %209 = vector.extract_strided_slice %114 {offsets = [211, 0], sizes = [1, 64], strides = [1, 1]} : vector<648x64xf32> to vector<1x64xf32>
    %c83 = arith.constant 83 : index
    %c0_116 = arith.constant 0 : index
    %210 = vector.load %arg6[%c83, %c0_116] : memref<232x64xf32, #tpu.memory_space<vmem>>, vector<1x64xf32>
    tpu.vector_store %arg6[%c83, %c0_116], %209 {strides = array<i32>} : memref<232x64xf32, #tpu.memory_space<vmem>>, vector<1x64xf32>,
    %211 = vector.extract_strided_slice %114 {offsets = [213, 0], sizes = [1, 64], strides = [1, 1]} : vector<648x64xf32> to vector<1x64xf32>
    %c84 = arith.constant 84 : index
    %c0_117 = arith.constant 0 : index
    %212 = vector.load %arg6[%c84, %c0_117] : memref<232x64xf32, #tpu.memory_space<vmem>>, vector<1x64xf32>
    tpu.vector_store %arg6[%c84, %c0_117], %211 {strides = array<i32>} : memref<232x64xf32, #tpu.memory_space<vmem>>, vector<1x64xf32>,
    %213 = vector.extract_strided_slice %114 {offsets = [235, 0], sizes = [1, 64], strides = [1, 1]} : vector<648x64xf32> to vector<1x64xf32>
    %c87_118 = arith.constant 87 : index
    %c0_119 = arith.constant 0 : index
    %214 = vector.load %arg6[%c87_118, %c0_119] : memref<232x64xf32, #tpu.memory_space<vmem>>, vector<1x64xf32>
    tpu.vector_store %arg6[%c87_118, %c0_119], %213 {strides = array<i32>} : memref<232x64xf32, #tpu.memory_space<vmem>>, vector<1x64xf32>,
    %215 = vector.extract_strided_slice %114 {offsets = [237, 0], sizes = [1, 64], strides = [1, 1]} : vector<648x64xf32> to vector<1x64xf32>
    %c88 = arith.constant 88 : index
    %c0_120 = arith.constant 0 : index
    %216 = vector.load %arg6[%c88, %c0_120] : memref<232x64xf32, #tpu.memory_space<vmem>>, vector<1x64xf32>
    tpu.vector_store %arg6[%c88, %c0_120], %215 {strides = array<i32>} : memref<232x64xf32, #tpu.memory_space<vmem>>, vector<1x64xf32>,
    %217 = vector.extract_strided_slice %114 {offsets = [239, 0], sizes = [1, 64], strides = [1, 1]} : vector<648x64xf32> to vector<1x64xf32>
    %c89 = arith.constant 89 : index
    %c0_121 = arith.constant 0 : index
    %218 = vector.load %arg6[%c89, %c0_121] : memref<232x64xf32, #tpu.memory_space<vmem>>, vector<1x64xf32>
    tpu.vector_store %arg6[%c89, %c0_121], %217 {strides = array<i32>} : memref<232x64xf32, #tpu.memory_space<vmem>>, vector<1x64xf32>,
    %219 = vector.extract_strided_slice %114 {offsets = [241, 0], sizes = [1, 64], strides = [1, 1]} : vector<648x64xf32> to vector<1x64xf32>
    %c90 = arith.constant 90 : index
    %c0_122 = arith.constant 0 : index
    %220 = vector.load %arg6[%c90, %c0_122] : memref<232x64xf32, #tpu.memory_space<vmem>>, vector<1x64xf32>
    tpu.vector_store %arg6[%c90, %c0_122], %219 {strides = array<i32>} : memref<232x64xf32, #tpu.memory_space<vmem>>, vector<1x64xf32>,
    %221 = vector.extract_strided_slice %114 {offsets = [243, 0], sizes = [1, 64], strides = [1, 1]} : vector<648x64xf32> to vector<1x64xf32>
    %c91 = arith.constant 91 : index
    %c0_123 = arith.constant 0 : index
    %222 = vector.load %arg6[%c91, %c0_123] : memref<232x64xf32, #tpu.memory_space<vmem>>, vector<1x64xf32>
    tpu.vector_store %arg6[%c91, %c0_123], %221 {strides = array<i32>} : memref<232x64xf32, #tpu.memory_space<vmem>>, vector<1x64xf32>,
    %223 = vector.extract_strided_slice %114 {offsets = [245, 0], sizes = [1, 64], strides = [1, 1]} : vector<648x64xf32> to vector<1x64xf32>
    %c92 = arith.constant 92 : index
    %c0_124 = arith.constant 0 : index
    %224 = vector.load %arg6[%c92, %c0_124] : memref<232x64xf32, #tpu.memory_space<vmem>>, vector<1x64xf32>
    tpu.vector_store %arg6[%c92, %c0_124], %223 {strides = array<i32>} : memref<232x64xf32, #tpu.memory_space<vmem>>, vector<1x64xf32>,
    %225 = vector.extract_strided_slice %114 {offsets = [247, 0], sizes = [1, 64], strides = [1, 1]} : vector<648x64xf32> to vector<1x64xf32>
    %c93 = arith.constant 93 : index
    %c0_125 = arith.constant 0 : index
    %226 = vector.load %arg6[%c93, %c0_125] : memref<232x64xf32, #tpu.memory_space<vmem>>, vector<1x64xf32>
    tpu.vector_store %arg6[%c93, %c0_125], %225 {strides = array<i32>} : memref<232x64xf32, #tpu.memory_space<vmem>>, vector<1x64xf32>,
    %227 = vector.extract_strided_slice %114 {offsets = [249, 0], sizes = [1, 64], strides = [1, 1]} : vector<648x64xf32> to vector<1x64xf32>
    %c94 = arith.constant 94 : index
    %c0_126 = arith.constant 0 : index
    %228 = vector.load %arg6[%c94, %c0_126] : memref<232x64xf32, #tpu.memory_space<vmem>>, vector<1x64xf32>
    tpu.vector_store %arg6[%c94, %c0_126], %227 {strides = array<i32>} : memref<232x64xf32, #tpu.memory_space<vmem>>, vector<1x64xf32>,
    %229 = vector.extract_strided_slice %114 {offsets = [271, 0], sizes = [1, 64], strides = [1, 1]} : vector<648x64xf32> to vector<1x64xf32>
    %c97 = arith.constant 97 : index
    %c0_127 = arith.constant 0 : index
    %230 = vector.load %arg6[%c97, %c0_127] : memref<232x64xf32, #tpu.memory_space<vmem>>, vector<1x64xf32>
    tpu.vector_store %arg6[%c97, %c0_127], %229 {strides = array<i32>} : memref<232x64xf32, #tpu.memory_space<vmem>>, vector<1x64xf32>,
    %231 = vector.extract_strided_slice %114 {offsets = [273, 0], sizes = [1, 64], strides = [1, 1]} : vector<648x64xf32> to vector<1x64xf32>
    %c98 = arith.constant 98 : index
    %c0_128 = arith.constant 0 : index
    %232 = vector.load %arg6[%c98, %c0_128] : memref<232x64xf32, #tpu.memory_space<vmem>>, vector<1x64xf32>
    tpu.vector_store %arg6[%c98, %c0_128], %231 {strides = array<i32>} : memref<232x64xf32, #tpu.memory_space<vmem>>, vector<1x64xf32>,
    %233 = vector.extract_strided_slice %114 {offsets = [275, 0], sizes = [1, 64], strides = [1, 1]} : vector<648x64xf32> to vector<1x64xf32>
    %c99 = arith.constant 99 : index
    %c0_129 = arith.constant 0 : index
    %234 = vector.load %arg6[%c99, %c0_129] : memref<232x64xf32, #tpu.memory_space<vmem>>, vector<1x64xf32>
    tpu.vector_store %arg6[%c99, %c0_129], %233 {strides = array<i32>} : memref<232x64xf32, #tpu.memory_space<vmem>>, vector<1x64xf32>,
    %235 = vector.extract_strided_slice %114 {offsets = [277, 0], sizes = [1, 64], strides = [1, 1]} : vector<648x64xf32> to vector<1x64xf32>
    %c100 = arith.constant 100 : index
    %c0_130 = arith.constant 0 : index
    %236 = vector.load %arg6[%c100, %c0_130] : memref<232x64xf32, #tpu.memory_space<vmem>>, vector<1x64xf32>
    tpu.vector_store %arg6[%c100, %c0_130], %235 {strides = array<i32>} : memref<232x64xf32, #tpu.memory_space<vmem>>, vector<1x64xf32>,
    %237 = vector.extract_strided_slice %114 {offsets = [279, 0], sizes = [1, 64], strides = [1, 1]} : vector<648x64xf32> to vector<1x64xf32>
    %c101 = arith.constant 101 : index
    %c0_131 = arith.constant 0 : index
    %238 = vector.load %arg6[%c101, %c0_131] : memref<232x64xf32, #tpu.memory_space<vmem>>, vector<1x64xf32>
    tpu.vector_store %arg6[%c101, %c0_131], %237 {strides = array<i32>} : memref<232x64xf32, #tpu.memory_space<vmem>>, vector<1x64xf32>,
    %239 = vector.extract_strided_slice %114 {offsets = [281, 0], sizes = [1, 64], strides = [1, 1]} : vector<648x64xf32> to vector<1x64xf32>
    %c102 = arith.constant 102 : index
    %c0_132 = arith.constant 0 : index
    %240 = vector.load %arg6[%c102, %c0_132] : memref<232x64xf32, #tpu.memory_space<vmem>>, vector<1x64xf32>
    tpu.vector_store %arg6[%c102, %c0_132], %239 {strides = array<i32>} : memref<232x64xf32, #tpu.memory_space<vmem>>, vector<1x64xf32>,
    %241 = vector.extract_strided_slice %114 {offsets = [283, 0], sizes = [1, 64], strides = [1, 1]} : vector<648x64xf32> to vector<1x64xf32>
    %c103 = arith.constant 103 : index
    %c0_133 = arith.constant 0 : index
    %242 = vector.load %arg6[%c103, %c0_133] : memref<232x64xf32, #tpu.memory_space<vmem>>, vector<1x64xf32>
    tpu.vector_store %arg6[%c103, %c0_133], %241 {strides = array<i32>} : memref<232x64xf32, #tpu.memory_space<vmem>>, vector<1x64xf32>,
    %243 = vector.extract_strided_slice %114 {offsets = [285, 0], sizes = [1, 64], strides = [1, 1]} : vector<648x64xf32> to vector<1x64xf32>
    %c104 = arith.constant 104 : index
    %c0_134 = arith.constant 0 : index
    %244 = vector.load %arg6[%c104, %c0_134] : memref<232x64xf32, #tpu.memory_space<vmem>>, vector<1x64xf32>
    tpu.vector_store %arg6[%c104, %c0_134], %243 {strides = array<i32>} : memref<232x64xf32, #tpu.memory_space<vmem>>, vector<1x64xf32>,
    %245 = vector.extract_strided_slice %114 {offsets = [343, 0], sizes = [1, 64], strides = [1, 1]} : vector<648x64xf32> to vector<1x64xf32>
    %c127 = arith.constant 127 : index
    %c0_135 = arith.constant 0 : index
    %246 = vector.load %arg6[%c127, %c0_135] : memref<232x64xf32, #tpu.memory_space<vmem>>, vector<1x64xf32>
    tpu.vector_store %arg6[%c127, %c0_135], %245 {strides = array<i32>} : memref<232x64xf32, #tpu.memory_space<vmem>>, vector<1x64xf32>,
    %247 = vector.extract_strided_slice %114 {offsets = [345, 0], sizes = [1, 64], strides = [1, 1]} : vector<648x64xf32> to vector<1x64xf32>
    %c128 = arith.constant 128 : index
    %c0_136 = arith.constant 0 : index
    %248 = vector.load %arg6[%c128, %c0_136] : memref<232x64xf32, #tpu.memory_space<vmem>>, vector<1x64xf32>
    tpu.vector_store %arg6[%c128, %c0_136], %247 {strides = array<i32>} : memref<232x64xf32, #tpu.memory_space<vmem>>, vector<1x64xf32>,
    %249 = vector.extract_strided_slice %114 {offsets = [347, 0], sizes = [1, 64], strides = [1, 1]} : vector<648x64xf32> to vector<1x64xf32>
    %c129 = arith.constant 129 : index
    %c0_137 = arith.constant 0 : index
    %250 = vector.load %arg6[%c129, %c0_137] : memref<232x64xf32, #tpu.memory_space<vmem>>, vector<1x64xf32>
    tpu.vector_store %arg6[%c129, %c0_137], %249 {strides = array<i32>} : memref<232x64xf32, #tpu.memory_space<vmem>>, vector<1x64xf32>,
    %251 = vector.extract_strided_slice %114 {offsets = [349, 0], sizes = [1, 64], strides = [1, 1]} : vector<648x64xf32> to vector<1x64xf32>
    %c130 = arith.constant 130 : index
    %c0_138 = arith.constant 0 : index
    %252 = vector.load %arg6[%c130, %c0_138] : memref<232x64xf32, #tpu.memory_space<vmem>>, vector<1x64xf32>
    tpu.vector_store %arg6[%c130, %c0_138], %251 {strides = array<i32>} : memref<232x64xf32, #tpu.memory_space<vmem>>, vector<1x64xf32>,
    %253 = vector.extract_strided_slice %114 {offsets = [351, 0], sizes = [1, 64], strides = [1, 1]} : vector<648x64xf32> to vector<1x64xf32>
    %c131 = arith.constant 131 : index
    %c0_139 = arith.constant 0 : index
    %254 = vector.load %arg6[%c131, %c0_139] : memref<232x64xf32, #tpu.memory_space<vmem>>, vector<1x64xf32>
    tpu.vector_store %arg6[%c131, %c0_139], %253 {strides = array<i32>} : memref<232x64xf32, #tpu.memory_space<vmem>>, vector<1x64xf32>,
    %255 = vector.extract_strided_slice %114 {offsets = [353, 0], sizes = [1, 64], strides = [1, 1]} : vector<648x64xf32> to vector<1x64xf32>
    %c132 = arith.constant 132 : index
    %c0_140 = arith.constant 0 : index
    %256 = vector.load %arg6[%c132, %c0_140] : memref<232x64xf32, #tpu.memory_space<vmem>>, vector<1x64xf32>
    tpu.vector_store %arg6[%c132, %c0_140], %255 {strides = array<i32>} : memref<232x64xf32, #tpu.memory_space<vmem>>, vector<1x64xf32>,
    %257 = vector.extract_strided_slice %114 {offsets = [355, 0], sizes = [1, 64], strides = [1, 1]} : vector<648x64xf32> to vector<1x64xf32>
    %c133 = arith.constant 133 : index
    %c0_141 = arith.constant 0 : index
    %258 = vector.load %arg6[%c133, %c0_141] : memref<232x64xf32, #tpu.memory_space<vmem>>, vector<1x64xf32>
    tpu.vector_store %arg6[%c133, %c0_141], %257 {strides = array<i32>} : memref<232x64xf32, #tpu.memory_space<vmem>>, vector<1x64xf32>,
    %259 = vector.extract_strided_slice %114 {offsets = [357, 0], sizes = [1, 64], strides = [1, 1]} : vector<648x64xf32> to vector<1x64xf32>
    %c134 = arith.constant 134 : index
    %c0_142 = arith.constant 0 : index
    %260 = vector.load %arg6[%c134, %c0_142] : memref<232x64xf32, #tpu.memory_space<vmem>>, vector<1x64xf32>
    tpu.vector_store %arg6[%c134, %c0_142], %259 {strides = array<i32>} : memref<232x64xf32, #tpu.memory_space<vmem>>, vector<1x64xf32>,
    %261 = vector.extract_strided_slice %114 {offsets = [379, 0], sizes = [1, 64], strides = [1, 1]} : vector<648x64xf32> to vector<1x64xf32>
    %c137 = arith.constant 137 : index
    %c0_143 = arith.constant 0 : index
    %262 = vector.load %arg6[%c137, %c0_143] : memref<232x64xf32, #tpu.memory_space<vmem>>, vector<1x64xf32>
    tpu.vector_store %arg6[%c137, %c0_143], %261 {strides = array<i32>} : memref<232x64xf32, #tpu.memory_space<vmem>>, vector<1x64xf32>,
    %263 = vector.extract_strided_slice %114 {offsets = [381, 0], sizes = [1, 64], strides = [1, 1]} : vector<648x64xf32> to vector<1x64xf32>
    %c138 = arith.constant 138 : index
    %c0_144 = arith.constant 0 : index
    %264 = vector.load %arg6[%c138, %c0_144] : memref<232x64xf32, #tpu.memory_space<vmem>>, vector<1x64xf32>
    tpu.vector_store %arg6[%c138, %c0_144], %263 {strides = array<i32>} : memref<232x64xf32, #tpu.memory_space<vmem>>, vector<1x64xf32>,
    %265 = vector.extract_strided_slice %114 {offsets = [383, 0], sizes = [1, 64], strides = [1, 1]} : vector<648x64xf32> to vector<1x64xf32>
    %c139 = arith.constant 139 : index
    %c0_145 = arith.constant 0 : index
    %266 = vector.load %arg6[%c139, %c0_145] : memref<232x64xf32, #tpu.memory_space<vmem>>, vector<1x64xf32>
    tpu.vector_store %arg6[%c139, %c0_145], %265 {strides = array<i32>} : memref<232x64xf32, #tpu.memory_space<vmem>>, vector<1x64xf32>,
    %267 = vector.extract_strided_slice %114 {offsets = [385, 0], sizes = [1, 64], strides = [1, 1]} : vector<648x64xf32> to vector<1x64xf32>
    %c140 = arith.constant 140 : index
    %c0_146 = arith.constant 0 : index
    %268 = vector.load %arg6[%c140, %c0_146] : memref<232x64xf32, #tpu.memory_space<vmem>>, vector<1x64xf32>
    tpu.vector_store %arg6[%c140, %c0_146], %267 {strides = array<i32>} : memref<232x64xf32, #tpu.memory_space<vmem>>, vector<1x64xf32>,
    %269 = vector.extract_strided_slice %114 {offsets = [387, 0], sizes = [1, 64], strides = [1, 1]} : vector<648x64xf32> to vector<1x64xf32>
    %c141_147 = arith.constant 141 : index
    %c0_148 = arith.constant 0 : index
    %270 = vector.load %arg6[%c141_147, %c0_148] : memref<232x64xf32, #tpu.memory_space<vmem>>, vector<1x64xf32>
    tpu.vector_store %arg6[%c141_147, %c0_148], %269 {strides = array<i32>} : memref<232x64xf32, #tpu.memory_space<vmem>>, vector<1x64xf32>,
    %271 = vector.extract_strided_slice %114 {offsets = [389, 0], sizes = [1, 64], strides = [1, 1]} : vector<648x64xf32> to vector<1x64xf32>
    %c142 = arith.constant 142 : index
    %c0_149 = arith.constant 0 : index
    %272 = vector.load %arg6[%c142, %c0_149] : memref<232x64xf32, #tpu.memory_space<vmem>>, vector<1x64xf32>
    tpu.vector_store %arg6[%c142, %c0_149], %271 {strides = array<i32>} : memref<232x64xf32, #tpu.memory_space<vmem>>, vector<1x64xf32>,
    %273 = vector.extract_strided_slice %114 {offsets = [391, 0], sizes = [1, 64], strides = [1, 1]} : vector<648x64xf32> to vector<1x64xf32>
    %c143 = arith.constant 143 : index
    %c0_150 = arith.constant 0 : index
    %274 = vector.load %arg6[%c143, %c0_150] : memref<232x64xf32, #tpu.memory_space<vmem>>, vector<1x64xf32>
    tpu.vector_store %arg6[%c143, %c0_150], %273 {strides = array<i32>} : memref<232x64xf32, #tpu.memory_space<vmem>>, vector<1x64xf32>,
    %275 = vector.extract_strided_slice %114 {offsets = [393, 0], sizes = [1, 64], strides = [1, 1]} : vector<648x64xf32> to vector<1x64xf32>
    %c144 = arith.constant 144 : index
    %c0_151 = arith.constant 0 : index
    %276 = vector.load %arg6[%c144, %c0_151] : memref<232x64xf32, #tpu.memory_space<vmem>>, vector<1x64xf32>
    tpu.vector_store %arg6[%c144, %c0_151], %275 {strides = array<i32>} : memref<232x64xf32, #tpu.memory_space<vmem>>, vector<1x64xf32>,
    %277 = vector.extract_strided_slice %114 {offsets = [415, 0], sizes = [1, 64], strides = [1, 1]} : vector<648x64xf32> to vector<1x64xf32>
    %c147 = arith.constant 147 : index
    %c0_152 = arith.constant 0 : index
    %278 = vector.load %arg6[%c147, %c0_152] : memref<232x64xf32, #tpu.memory_space<vmem>>, vector<1x64xf32>
    tpu.vector_store %arg6[%c147, %c0_152], %277 {strides = array<i32>} : memref<232x64xf32, #tpu.memory_space<vmem>>, vector<1x64xf32>,
    %279 = vector.extract_strided_slice %114 {offsets = [417, 0], sizes = [1, 64], strides = [1, 1]} : vector<648x64xf32> to vector<1x64xf32>
    %c148 = arith.constant 148 : index
    %c0_153 = arith.constant 0 : index
    %280 = vector.load %arg6[%c148, %c0_153] : memref<232x64xf32, #tpu.memory_space<vmem>>, vector<1x64xf32>
    tpu.vector_store %arg6[%c148, %c0_153], %279 {strides = array<i32>} : memref<232x64xf32, #tpu.memory_space<vmem>>, vector<1x64xf32>,
    %281 = vector.extract_strided_slice %114 {offsets = [419, 0], sizes = [1, 64], strides = [1, 1]} : vector<648x64xf32> to vector<1x64xf32>
    %c149 = arith.constant 149 : index
    %c0_154 = arith.constant 0 : index
    %282 = vector.load %arg6[%c149, %c0_154] : memref<232x64xf32, #tpu.memory_space<vmem>>, vector<1x64xf32>
    tpu.vector_store %arg6[%c149, %c0_154], %281 {strides = array<i32>} : memref<232x64xf32, #tpu.memory_space<vmem>>, vector<1x64xf32>,
    %283 = vector.extract_strided_slice %114 {offsets = [421, 0], sizes = [1, 64], strides = [1, 1]} : vector<648x64xf32> to vector<1x64xf32>
    %c150 = arith.constant 150 : index
    %c0_155 = arith.constant 0 : index
    %284 = vector.load %arg6[%c150, %c0_155] : memref<232x64xf32, #tpu.memory_space<vmem>>, vector<1x64xf32>
    tpu.vector_store %arg6[%c150, %c0_155], %283 {strides = array<i32>} : memref<232x64xf32, #tpu.memory_space<vmem>>, vector<1x64xf32>,
    %285 = vector.extract_strided_slice %114 {offsets = [423, 0], sizes = [1, 64], strides = [1, 1]} : vector<648x64xf32> to vector<1x64xf32>
    %c151 = arith.constant 151 : index
    %c0_156 = arith.constant 0 : index
    %286 = vector.load %arg6[%c151, %c0_156] : memref<232x64xf32, #tpu.memory_space<vmem>>, vector<1x64xf32>
    tpu.vector_store %arg6[%c151, %c0_156], %285 {strides = array<i32>} : memref<232x64xf32, #tpu.memory_space<vmem>>, vector<1x64xf32>,
    %287 = vector.extract_strided_slice %114 {offsets = [425, 0], sizes = [1, 64], strides = [1, 1]} : vector<648x64xf32> to vector<1x64xf32>
    %c152 = arith.constant 152 : index
    %c0_157 = arith.constant 0 : index
    %288 = vector.load %arg6[%c152, %c0_157] : memref<232x64xf32, #tpu.memory_space<vmem>>, vector<1x64xf32>
    tpu.vector_store %arg6[%c152, %c0_157], %287 {strides = array<i32>} : memref<232x64xf32, #tpu.memory_space<vmem>>, vector<1x64xf32>,
    %289 = vector.extract_strided_slice %114 {offsets = [427, 0], sizes = [1, 64], strides = [1, 1]} : vector<648x64xf32> to vector<1x64xf32>
    %c153 = arith.constant 153 : index
    %c0_158 = arith.constant 0 : index
    %290 = vector.load %arg6[%c153, %c0_158] : memref<232x64xf32, #tpu.memory_space<vmem>>, vector<1x64xf32>
    tpu.vector_store %arg6[%c153, %c0_158], %289 {strides = array<i32>} : memref<232x64xf32, #tpu.memory_space<vmem>>, vector<1x64xf32>,
    %291 = vector.extract_strided_slice %114 {offsets = [429, 0], sizes = [1, 64], strides = [1, 1]} : vector<648x64xf32> to vector<1x64xf32>
    %c154 = arith.constant 154 : index
    %c0_159 = arith.constant 0 : index
    %292 = vector.load %arg6[%c154, %c0_159] : memref<232x64xf32, #tpu.memory_space<vmem>>, vector<1x64xf32>
    tpu.vector_store %arg6[%c154, %c0_159], %291 {strides = array<i32>} : memref<232x64xf32, #tpu.memory_space<vmem>>, vector<1x64xf32>,
    %293 = vector.extract_strided_slice %114 {offsets = [451, 0], sizes = [1, 64], strides = [1, 1]} : vector<648x64xf32> to vector<1x64xf32>
    %c157 = arith.constant 157 : index
    %c0_160 = arith.constant 0 : index
    %294 = vector.load %arg6[%c157, %c0_160] : memref<232x64xf32, #tpu.memory_space<vmem>>, vector<1x64xf32>
    tpu.vector_store %arg6[%c157, %c0_160], %293 {strides = array<i32>} : memref<232x64xf32, #tpu.memory_space<vmem>>, vector<1x64xf32>,
    %295 = vector.extract_strided_slice %114 {offsets = [453, 0], sizes = [1, 64], strides = [1, 1]} : vector<648x64xf32> to vector<1x64xf32>
    %c158 = arith.constant 158 : index
    %c0_161 = arith.constant 0 : index
    %296 = vector.load %arg6[%c158, %c0_161] : memref<232x64xf32, #tpu.memory_space<vmem>>, vector<1x64xf32>
    tpu.vector_store %arg6[%c158, %c0_161], %295 {strides = array<i32>} : memref<232x64xf32, #tpu.memory_space<vmem>>, vector<1x64xf32>,
    %297 = vector.extract_strided_slice %114 {offsets = [455, 0], sizes = [1, 64], strides = [1, 1]} : vector<648x64xf32> to vector<1x64xf32>
    %c159_162 = arith.constant 159 : index
    %c0_163 = arith.constant 0 : index
    %298 = vector.load %arg6[%c159_162, %c0_163] : memref<232x64xf32, #tpu.memory_space<vmem>>, vector<1x64xf32>
    tpu.vector_store %arg6[%c159_162, %c0_163], %297 {strides = array<i32>} : memref<232x64xf32, #tpu.memory_space<vmem>>, vector<1x64xf32>,
    %299 = vector.extract_strided_slice %114 {offsets = [457, 0], sizes = [1, 64], strides = [1, 1]} : vector<648x64xf32> to vector<1x64xf32>
    %c160 = arith.constant 160 : index
    %c0_164 = arith.constant 0 : index
    %300 = vector.load %arg6[%c160, %c0_164] : memref<232x64xf32, #tpu.memory_space<vmem>>, vector<1x64xf32>
    tpu.vector_store %arg6[%c160, %c0_164], %299 {strides = array<i32>} : memref<232x64xf32, #tpu.memory_space<vmem>>, vector<1x64xf32>,
    %301 = vector.extract_strided_slice %114 {offsets = [459, 0], sizes = [1, 64], strides = [1, 1]} : vector<648x64xf32> to vector<1x64xf32>
    %c161 = arith.constant 161 : index
    %c0_165 = arith.constant 0 : index
    %302 = vector.load %arg6[%c161, %c0_165] : memref<232x64xf32, #tpu.memory_space<vmem>>, vector<1x64xf32>
    tpu.vector_store %arg6[%c161, %c0_165], %301 {strides = array<i32>} : memref<232x64xf32, #tpu.memory_space<vmem>>, vector<1x64xf32>,
    %303 = vector.extract_strided_slice %114 {offsets = [461, 0], sizes = [1, 64], strides = [1, 1]} : vector<648x64xf32> to vector<1x64xf32>
    %c162 = arith.constant 162 : index
    %c0_166 = arith.constant 0 : index
    %304 = vector.load %arg6[%c162, %c0_166] : memref<232x64xf32, #tpu.memory_space<vmem>>, vector<1x64xf32>
    tpu.vector_store %arg6[%c162, %c0_166], %303 {strides = array<i32>} : memref<232x64xf32, #tpu.memory_space<vmem>>, vector<1x64xf32>,
    %305 = vector.extract_strided_slice %114 {offsets = [463, 0], sizes = [1, 64], strides = [1, 1]} : vector<648x64xf32> to vector<1x64xf32>
    %c163 = arith.constant 163 : index
    %c0_167 = arith.constant 0 : index
    %306 = vector.load %arg6[%c163, %c0_167] : memref<232x64xf32, #tpu.memory_space<vmem>>, vector<1x64xf32>
    tpu.vector_store %arg6[%c163, %c0_167], %305 {strides = array<i32>} : memref<232x64xf32, #tpu.memory_space<vmem>>, vector<1x64xf32>,
    %307 = vector.extract_strided_slice %114 {offsets = [465, 0], sizes = [1, 64], strides = [1, 1]} : vector<648x64xf32> to vector<1x64xf32>
    %c164 = arith.constant 164 : index
    %c0_168 = arith.constant 0 : index
    %308 = vector.load %arg6[%c164, %c0_168] : memref<232x64xf32, #tpu.memory_space<vmem>>, vector<1x64xf32>
    tpu.vector_store %arg6[%c164, %c0_168], %307 {strides = array<i32>} : memref<232x64xf32, #tpu.memory_space<vmem>>, vector<1x64xf32>,
    %309 = vector.extract_strided_slice %114 {offsets = [487, 0], sizes = [1, 64], strides = [1, 1]} : vector<648x64xf32> to vector<1x64xf32>
    %c167 = arith.constant 167 : index
    %c0_169 = arith.constant 0 : index
    %310 = vector.load %arg6[%c167, %c0_169] : memref<232x64xf32, #tpu.memory_space<vmem>>, vector<1x64xf32>
    tpu.vector_store %arg6[%c167, %c0_169], %309 {strides = array<i32>} : memref<232x64xf32, #tpu.memory_space<vmem>>, vector<1x64xf32>,
    %311 = vector.extract_strided_slice %114 {offsets = [489, 0], sizes = [1, 64], strides = [1, 1]} : vector<648x64xf32> to vector<1x64xf32>
    %c168 = arith.constant 168 : index
    %c0_170 = arith.constant 0 : index
    %312 = vector.load %arg6[%c168, %c0_170] : memref<232x64xf32, #tpu.memory_space<vmem>>, vector<1x64xf32>
    tpu.vector_store %arg6[%c168, %c0_170], %311 {strides = array<i32>} : memref<232x64xf32, #tpu.memory_space<vmem>>, vector<1x64xf32>,
    %313 = vector.extract_strided_slice %114 {offsets = [491, 0], sizes = [1, 64], strides = [1, 1]} : vector<648x64xf32> to vector<1x64xf32>
    %c169 = arith.constant 169 : index
    %c0_171 = arith.constant 0 : index
    %314 = vector.load %arg6[%c169, %c0_171] : memref<232x64xf32, #tpu.memory_space<vmem>>, vector<1x64xf32>
    tpu.vector_store %arg6[%c169, %c0_171], %313 {strides = array<i32>} : memref<232x64xf32, #tpu.memory_space<vmem>>, vector<1x64xf32>,
    %315 = vector.extract_strided_slice %114 {offsets = [493, 0], sizes = [1, 64], strides = [1, 1]} : vector<648x64xf32> to vector<1x64xf32>
    %c170 = arith.constant 170 : index
    %c0_172 = arith.constant 0 : index
    %316 = vector.load %arg6[%c170, %c0_172] : memref<232x64xf32, #tpu.memory_space<vmem>>, vector<1x64xf32>
    tpu.vector_store %arg6[%c170, %c0_172], %315 {strides = array<i32>} : memref<232x64xf32, #tpu.memory_space<vmem>>, vector<1x64xf32>,
    %317 = vector.extract_strided_slice %114 {offsets = [495, 0], sizes = [1, 64], strides = [1, 1]} : vector<648x64xf32> to vector<1x64xf32>
    %c171 = arith.constant 171 : index
    %c0_173 = arith.constant 0 : index
    %318 = vector.load %arg6[%c171, %c0_173] : memref<232x64xf32, #tpu.memory_space<vmem>>, vector<1x64xf32>
    tpu.vector_store %arg6[%c171, %c0_173], %317 {strides = array<i32>} : memref<232x64xf32, #tpu.memory_space<vmem>>, vector<1x64xf32>,
    %319 = vector.extract_strided_slice %114 {offsets = [497, 0], sizes = [1, 64], strides = [1, 1]} : vector<648x64xf32> to vector<1x64xf32>
    %c172 = arith.constant 172 : index
    %c0_174 = arith.constant 0 : index
    %320 = vector.load %arg6[%c172, %c0_174] : memref<232x64xf32, #tpu.memory_space<vmem>>, vector<1x64xf32>
    tpu.vector_store %arg6[%c172, %c0_174], %319 {strides = array<i32>} : memref<232x64xf32, #tpu.memory_space<vmem>>, vector<1x64xf32>,
    %321 = vector.extract_strided_slice %114 {offsets = [499, 0], sizes = [1, 64], strides = [1, 1]} : vector<648x64xf32> to vector<1x64xf32>
    %c173 = arith.constant 173 : index
    %c0_175 = arith.constant 0 : index
    %322 = vector.load %arg6[%c173, %c0_175] : memref<232x64xf32, #tpu.memory_space<vmem>>, vector<1x64xf32>
    tpu.vector_store %arg6[%c173, %c0_175], %321 {strides = array<i32>} : memref<232x64xf32, #tpu.memory_space<vmem>>, vector<1x64xf32>,
    %323 = vector.extract_strided_slice %114 {offsets = [501, 0], sizes = [1, 64], strides = [1, 1]} : vector<648x64xf32> to vector<1x64xf32>
    %c174 = arith.constant 174 : index
    %c0_176 = arith.constant 0 : index
    %324 = vector.load %arg6[%c174, %c0_176] : memref<232x64xf32, #tpu.memory_space<vmem>>, vector<1x64xf32>
    tpu.vector_store %arg6[%c174, %c0_176], %323 {strides = array<i32>} : memref<232x64xf32, #tpu.memory_space<vmem>>, vector<1x64xf32>,
    %325 = vector.extract_strided_slice %114 {offsets = [523, 0], sizes = [1, 64], strides = [1, 1]} : vector<648x64xf32> to vector<1x64xf32>
    %c177_177 = arith.constant 177 : index
    %c0_178 = arith.constant 0 : index
    %326 = vector.load %arg6[%c177_177, %c0_178] : memref<232x64xf32, #tpu.memory_space<vmem>>, vector<1x64xf32>
    tpu.vector_store %arg6[%c177_177, %c0_178], %325 {strides = array<i32>} : memref<232x64xf32, #tpu.memory_space<vmem>>, vector<1x64xf32>,
    %327 = vector.extract_strided_slice %114 {offsets = [525, 0], sizes = [1, 64], strides = [1, 1]} : vector<648x64xf32> to vector<1x64xf32>
    %c178 = arith.constant 178 : index
    %c0_179 = arith.constant 0 : index
    %328 = vector.load %arg6[%c178, %c0_179] : memref<232x64xf32, #tpu.memory_space<vmem>>, vector<1x64xf32>
    tpu.vector_store %arg6[%c178, %c0_179], %327 {strides = array<i32>} : memref<232x64xf32, #tpu.memory_space<vmem>>, vector<1x64xf32>,
    %329 = vector.extract_strided_slice %114 {offsets = [527, 0], sizes = [1, 64], strides = [1, 1]} : vector<648x64xf32> to vector<1x64xf32>
    %c179 = arith.constant 179 : index
    %c0_180 = arith.constant 0 : index
    %330 = vector.load %arg6[%c179, %c0_180] : memref<232x64xf32, #tpu.memory_space<vmem>>, vector<1x64xf32>
    tpu.vector_store %arg6[%c179, %c0_180], %329 {strides = array<i32>} : memref<232x64xf32, #tpu.memory_space<vmem>>, vector<1x64xf32>,
    %331 = vector.extract_strided_slice %114 {offsets = [529, 0], sizes = [1, 64], strides = [1, 1]} : vector<648x64xf32> to vector<1x64xf32>
    %c180 = arith.constant 180 : index
    %c0_181 = arith.constant 0 : index
    %332 = vector.load %arg6[%c180, %c0_181] : memref<232x64xf32, #tpu.memory_space<vmem>>, vector<1x64xf32>
    tpu.vector_store %arg6[%c180, %c0_181], %331 {strides = array<i32>} : memref<232x64xf32, #tpu.memory_space<vmem>>, vector<1x64xf32>,
    %333 = vector.extract_strided_slice %114 {offsets = [531, 0], sizes = [1, 64], strides = [1, 1]} : vector<648x64xf32> to vector<1x64xf32>
    %c181 = arith.constant 181 : index
    %c0_182 = arith.constant 0 : index
    %334 = vector.load %arg6[%c181, %c0_182] : memref<232x64xf32, #tpu.memory_space<vmem>>, vector<1x64xf32>
    tpu.vector_store %arg6[%c181, %c0_182], %333 {strides = array<i32>} : memref<232x64xf32, #tpu.memory_space<vmem>>, vector<1x64xf32>,
    %335 = vector.extract_strided_slice %114 {offsets = [533, 0], sizes = [1, 64], strides = [1, 1]} : vector<648x64xf32> to vector<1x64xf32>
    %c182 = arith.constant 182 : index
    %c0_183 = arith.constant 0 : index
    %336 = vector.load %arg6[%c182, %c0_183] : memref<232x64xf32, #tpu.memory_space<vmem>>, vector<1x64xf32>
    tpu.vector_store %arg6[%c182, %c0_183], %335 {strides = array<i32>} : memref<232x64xf32, #tpu.memory_space<vmem>>, vector<1x64xf32>,
    %337 = vector.extract_strided_slice %114 {offsets = [535, 0], sizes = [1, 64], strides = [1, 1]} : vector<648x64xf32> to vector<1x64xf32>
    %c183 = arith.constant 183 : index
    %c0_184 = arith.constant 0 : index
    %338 = vector.load %arg6[%c183, %c0_184] : memref<232x64xf32, #tpu.memory_space<vmem>>, vector<1x64xf32>
    tpu.vector_store %arg6[%c183, %c0_184], %337 {strides = array<i32>} : memref<232x64xf32, #tpu.memory_space<vmem>>, vector<1x64xf32>,
    %339 = vector.extract_strided_slice %114 {offsets = [537, 0], sizes = [1, 64], strides = [1, 1]} : vector<648x64xf32> to vector<1x64xf32>
    %c184 = arith.constant 184 : index
    %c0_185 = arith.constant 0 : index
    %340 = vector.load %arg6[%c184, %c0_185] : memref<232x64xf32, #tpu.memory_space<vmem>>, vector<1x64xf32>
    tpu.vector_store %arg6[%c184, %c0_185], %339 {strides = array<i32>} : memref<232x64xf32, #tpu.memory_space<vmem>>, vector<1x64xf32>,
    %341 = vector.extract_strided_slice %114 {offsets = [559, 0], sizes = [1, 64], strides = [1, 1]} : vector<648x64xf32> to vector<1x64xf32>
    %c187 = arith.constant 187 : index
    %c0_186 = arith.constant 0 : index
    %342 = vector.load %arg6[%c187, %c0_186] : memref<232x64xf32, #tpu.memory_space<vmem>>, vector<1x64xf32>
    tpu.vector_store %arg6[%c187, %c0_186], %341 {strides = array<i32>} : memref<232x64xf32, #tpu.memory_space<vmem>>, vector<1x64xf32>,
    %343 = vector.extract_strided_slice %114 {offsets = [561, 0], sizes = [1, 64], strides = [1, 1]} : vector<648x64xf32> to vector<1x64xf32>
    %c188 = arith.constant 188 : index
    %c0_187 = arith.constant 0 : index
    %344 = vector.load %arg6[%c188, %c0_187] : memref<232x64xf32, #tpu.memory_space<vmem>>, vector<1x64xf32>
    tpu.vector_store %arg6[%c188, %c0_187], %343 {strides = array<i32>} : memref<232x64xf32, #tpu.memory_space<vmem>>, vector<1x64xf32>,
    %345 = vector.extract_strided_slice %114 {offsets = [563, 0], sizes = [1, 64], strides = [1, 1]} : vector<648x64xf32> to vector<1x64xf32>
    %c189 = arith.constant 189 : index
    %c0_188 = arith.constant 0 : index
    %346 = vector.load %arg6[%c189, %c0_188] : memref<232x64xf32, #tpu.memory_space<vmem>>, vector<1x64xf32>
    tpu.vector_store %arg6[%c189, %c0_188], %345 {strides = array<i32>} : memref<232x64xf32, #tpu.memory_space<vmem>>, vector<1x64xf32>,
    %347 = vector.extract_strided_slice %114 {offsets = [565, 0], sizes = [1, 64], strides = [1, 1]} : vector<648x64xf32> to vector<1x64xf32>
    %c190 = arith.constant 190 : index
    %c0_189 = arith.constant 0 : index
    %348 = vector.load %arg6[%c190, %c0_189] : memref<232x64xf32, #tpu.memory_space<vmem>>, vector<1x64xf32>
    tpu.vector_store %arg6[%c190, %c0_189], %347 {strides = array<i32>} : memref<232x64xf32, #tpu.memory_space<vmem>>, vector<1x64xf32>,
    %349 = vector.extract_strided_slice %114 {offsets = [567, 0], sizes = [1, 64], strides = [1, 1]} : vector<648x64xf32> to vector<1x64xf32>
    %c191 = arith.constant 191 : index
    %c0_190 = arith.constant 0 : index
    %350 = vector.load %arg6[%c191, %c0_190] : memref<232x64xf32, #tpu.memory_space<vmem>>, vector<1x64xf32>
    tpu.vector_store %arg6[%c191, %c0_190], %349 {strides = array<i32>} : memref<232x64xf32, #tpu.memory_space<vmem>>, vector<1x64xf32>,
    %351 = vector.extract_strided_slice %114 {offsets = [569, 0], sizes = [1, 64], strides = [1, 1]} : vector<648x64xf32> to vector<1x64xf32>
    %c192 = arith.constant 192 : index
    %c0_191 = arith.constant 0 : index
    %352 = vector.load %arg6[%c192, %c0_191] : memref<232x64xf32, #tpu.memory_space<vmem>>, vector<1x64xf32>
    tpu.vector_store %arg6[%c192, %c0_191], %351 {strides = array<i32>} : memref<232x64xf32, #tpu.memory_space<vmem>>, vector<1x64xf32>,
    %353 = vector.extract_strided_slice %114 {offsets = [571, 0], sizes = [1, 64], strides = [1, 1]} : vector<648x64xf32> to vector<1x64xf32>
    %c193 = arith.constant 193 : index
    %c0_192 = arith.constant 0 : index
    %354 = vector.load %arg6[%c193, %c0_192] : memref<232x64xf32, #tpu.memory_space<vmem>>, vector<1x64xf32>
    tpu.vector_store %arg6[%c193, %c0_192], %353 {strides = array<i32>} : memref<232x64xf32, #tpu.memory_space<vmem>>, vector<1x64xf32>,
    %355 = vector.extract_strided_slice %114 {offsets = [573, 0], sizes = [1, 64], strides = [1, 1]} : vector<648x64xf32> to vector<1x64xf32>
    %c194 = arith.constant 194 : index
    %c0_193 = arith.constant 0 : index
    %356 = vector.load %arg6[%c194, %c0_193] : memref<232x64xf32, #tpu.memory_space<vmem>>, vector<1x64xf32>
    tpu.vector_store %arg6[%c194, %c0_193], %355 {strides = array<i32>} : memref<232x64xf32, #tpu.memory_space<vmem>>, vector<1x64xf32>,
    %357 = vector.extract_strided_slice %114 {offsets = [595, 0], sizes = [1, 64], strides = [1, 1]} : vector<648x64xf32> to vector<1x64xf32>
    %c197 = arith.constant 197 : index
    %c0_194 = arith.constant 0 : index
    %358 = vector.load %arg6[%c197, %c0_194] : memref<232x64xf32, #tpu.memory_space<vmem>>, vector<1x64xf32>
    tpu.vector_store %arg6[%c197, %c0_194], %357 {strides = array<i32>} : memref<232x64xf32, #tpu.memory_space<vmem>>, vector<1x64xf32>,
    %359 = vector.extract_strided_slice %114 {offsets = [597, 0], sizes = [1, 64], strides = [1, 1]} : vector<648x64xf32> to vector<1x64xf32>
    %c198 = arith.constant 198 : index
    %c0_195 = arith.constant 0 : index
    %360 = vector.load %arg6[%c198, %c0_195] : memref<232x64xf32, #tpu.memory_space<vmem>>, vector<1x64xf32>
    tpu.vector_store %arg6[%c198, %c0_195], %359 {strides = array<i32>} : memref<232x64xf32, #tpu.memory_space<vmem>>, vector<1x64xf32>,
    %361 = vector.extract_strided_slice %114 {offsets = [599, 0], sizes = [1, 64], strides = [1, 1]} : vector<648x64xf32> to vector<1x64xf32>
    %c199 = arith.constant 199 : index
    %c0_196 = arith.constant 0 : index
    %362 = vector.load %arg6[%c199, %c0_196] : memref<232x64xf32, #tpu.memory_space<vmem>>, vector<1x64xf32>
    tpu.vector_store %arg6[%c199, %c0_196], %361 {strides = array<i32>} : memref<232x64xf32, #tpu.memory_space<vmem>>, vector<1x64xf32>,
    %363 = vector.extract_strided_slice %114 {offsets = [601, 0], sizes = [1, 64], strides = [1, 1]} : vector<648x64xf32> to vector<1x64xf32>
    %c200 = arith.constant 200 : index
    %c0_197 = arith.constant 0 : index
    %364 = vector.load %arg6[%c200, %c0_197] : memref<232x64xf32, #tpu.memory_space<vmem>>, vector<1x64xf32>
    tpu.vector_store %arg6[%c200, %c0_197], %363 {strides = array<i32>} : memref<232x64xf32, #tpu.memory_space<vmem>>, vector<1x64xf32>,
    %365 = vector.extract_strided_slice %114 {offsets = [603, 0], sizes = [1, 64], strides = [1, 1]} : vector<648x64xf32> to vector<1x64xf32>
    %c201 = arith.constant 201 : index
    %c0_198 = arith.constant 0 : index
    %366 = vector.load %arg6[%c201, %c0_198] : memref<232x64xf32, #tpu.memory_space<vmem>>, vector<1x64xf32>
    tpu.vector_store %arg6[%c201, %c0_198], %365 {strides = array<i32>} : memref<232x64xf32, #tpu.memory_space<vmem>>, vector<1x64xf32>,
    %367 = vector.extract_strided_slice %114 {offsets = [605, 0], sizes = [1, 64], strides = [1, 1]} : vector<648x64xf32> to vector<1x64xf32>
    %c202 = arith.constant 202 : index
    %c0_199 = arith.constant 0 : index
    %368 = vector.load %arg6[%c202, %c0_199] : memref<232x64xf32, #tpu.memory_space<vmem>>, vector<1x64xf32>
    tpu.vector_store %arg6[%c202, %c0_199], %367 {strides = array<i32>} : memref<232x64xf32, #tpu.memory_space<vmem>>, vector<1x64xf32>,
    %369 = vector.extract_strided_slice %114 {offsets = [607, 0], sizes = [1, 64], strides = [1, 1]} : vector<648x64xf32> to vector<1x64xf32>
    %c203 = arith.constant 203 : index
    %c0_200 = arith.constant 0 : index
    %370 = vector.load %arg6[%c203, %c0_200] : memref<232x64xf32, #tpu.memory_space<vmem>>, vector<1x64xf32>
    tpu.vector_store %arg6[%c203, %c0_200], %369 {strides = array<i32>} : memref<232x64xf32, #tpu.memory_space<vmem>>, vector<1x64xf32>,
    %371 = vector.extract_strided_slice %114 {offsets = [609, 0], sizes = [1, 64], strides = [1, 1]} : vector<648x64xf32> to vector<1x64xf32>
    %c204 = arith.constant 204 : index
    %c0_201 = arith.constant 0 : index
    %372 = vector.load %arg6[%c204, %c0_201] : memref<232x64xf32, #tpu.memory_space<vmem>>, vector<1x64xf32>
    tpu.vector_store %arg6[%c204, %c0_201], %371 {strides = array<i32>} : memref<232x64xf32, #tpu.memory_space<vmem>>, vector<1x64xf32>,
    %c0_202 = arith.constant 0 : index
    %c0_203 = arith.constant 0 : index
    %373 = vector.load %arg6[%c0_202, %c0_203] : memref<232x64xf32, #tpu.memory_space<vmem>>, vector<232x64xf32>
    %374 = arith.truncf %373 : vector<232x64xf32> to vector<232x64xbf16>
    %c0_204 = arith.constant 0 : index
    %c0_205 = arith.constant 0 : index
    %375 = vector.load %arg4[%c0_204, %c0_205] : memref<232x64xbf16, #tpu.memory_space<vmem>>, vector<232x64xbf16>
    tpu.vector_store %arg4[%c0_204, %c0_205], %374 {strides = array<i32>} : memref<232x64xbf16, #tpu.memory_space<vmem>>, vector<232x64xbf16>,
    return
  }
}

</mosaic_0001>

<llo_original>
// kernel: tpu_custom_call.1
$region0: #{tpu_custom_call.1}
  #allocation0 [shape = 'u32[]', space=smem, size = 0x4, offset = 0x4, fixed_abs, tag = 'smem constant byte address 0x4 - core index']
  #allocation1 [shape = 'u32[72,128]{1,0:T(1,128)}', space=vmem, size = 0x9000, scoped, tag = 'internal scratch']
  #allocation2 [shape = 'f32[712,64]{1,0:T(8,128)}', space=vmem, size = 0x59000, scoped, tag = 'scratch operand']
  #allocation3 [shape = 'f32[232,64]{1,0:T(8,128)}', space=vmem, size = 0x1d000, scoped, tag = 'scratch operand']
  %s0 = inlined_call_operand.hbm [shape: bf16[512,256], index: 0, kind: input, shape index: {}]
  %s1 = inlined_call_operand.vmem [shape: bf16[256,64], index: 1, kind: input, shape index: {}]
  %s2 = inlined_call_operand.vmem [shape: f32[1,64], index: 2, kind: input, shape index: {}]
  %s3 = inlined_call_operand.vmem [shape: f32[1,64], index: 3, kind: input, shape index: {}]
  %s4 = inlined_call_operand.vmem [shape: bf16[232,64], index: 4, kind: output, shape index: {}]
  %s5 = sld [smem:[#allocation0]]
  $region30: #{tpu_custom_call.1} parent=0
    _
  %s7 = ssub.s32 1, %s5
  %s8 = scalar_select 0, %s7, %s5
  $region1: #{tpu_custom_call.1} parent=0
    #allocation4 [shape = 'u8[262144]{0}', space=vmem, size = 0x40000, scoped, tag = 'input window, operand 0, single buffered']
    #allocation5 [shape = 's32[1]{0}', space=sflag, size = 0x4, scoped, tag = 'scoped memory for tpu_custom_call.1']
    %9 = vsyncpa [#allocation5], 0
    // Predicated region
    $region2: #{tpu_custom_call.1} parent=1 // pred_check
      _
    $region3: #{tpu_custom_call.1} parent=1 // pred_check_branch
      %11 = sbr.rel (0) target = $region5
    $region4: #{tpu_custom_call.1} parent=1 // pred_region
      %13 = vsyncadd [#allocation5], 0
      %s14 = sshll.u32 %s0, 4
      %s15 = int_to_ptr.hbm [resolvable:$true] %s14
      %s16 = sshll.u32 [#allocation4], 4
      %s17 = int_to_ptr.vmem [resolvable:$true] %s16
      %22 = dma.hbm_to_vmem [thread:$0]  %s15, 8192, %s17, [#allocation5], 128, 128, 8
    $region5: #{tpu_custom_call.1} parent=1 // pred_fallthru
      _
    // Predicated region
    $region6: #{tpu_custom_call.1} parent=1 // pred_check
      _
    $region7: #{tpu_custom_call.1} parent=1 // pred_check_branch
      %24 = sbr.rel (0) target = $region9
    $region8: #{tpu_custom_call.1} parent=1 // pred_region
      _
    $region9: #{tpu_custom_call.1} parent=1 // pred_fallthru
      _
    // Predicated region
    $region10: #{tpu_custom_call.1} parent=1 // pred_check
      _
    $region11: #{tpu_custom_call.1} parent=1 // pred_check_branch
      %26 = sbr.rel (0) target = $region13
    $region12: #{tpu_custom_call.1} parent=1 // pred_region
      _
    $region13: #{tpu_custom_call.1} parent=1 // pred_fallthru
      _
    // Predicated region
    $region14: #{tpu_custom_call.1} parent=1 // pred_check
      _
    $region15: #{tpu_custom_call.1} parent=1 // pred_check_branch
      %28 = sbr.rel (0) target = $region17
    $region16: #{tpu_custom_call.1} parent=1 // pred_region
      _
    $region17: #{tpu_custom_call.1} parent=1 // pred_fallthru
      _
    // Predicated region
    $region18: #{tpu_custom_call.1} parent=1 // pred_check
      _
    $region19: #{tpu_custom_call.1} parent=1 // pred_check_branch
      %30 = sbr.rel (0) target = $region21
    $region20: #{tpu_custom_call.1} parent=1 // pred_region
      %32 = dma.done [#allocation5], 8192
    $region21: #{tpu_custom_call.1} parent=1 // pred_fallthru
      _
    %v33 = vld [vmem:[#allocation4] sm:$0xff]
    %v34 = vld [vmem:[#allocation4 + $0x8] sm:$0xff]
    %v35 = vld [vmem:[#allocation4 + $0x10] sm:$0xff]
    %v36 = vld [vmem:[#allocation4 + $0x18] sm:$0xff]
    %v37 = vld [vmem:[#allocation4 + $0x20] sm:$0xff]
    %v38 = vld [vmem:[#allocation4 + $0x28] sm:$0xff]
    %v39 = vld [vmem:[#allocation4 + $0x30] sm:$0xff]
    %v40 = vld [vmem:[#allocation4 + $0x38] sm:$0xff]
    %v41 = vld [vmem:[#allocation4 + $0x40] sm:$0xff]
    %v42 = vld [vmem:[#allocation4 + $0x48] sm:$0xff]
    %v43 = vld [vmem:[#allocation4 + $0x50] sm:$0xff]
    %v44 = vld [vmem:[#allocation4 + $0x58] sm:$0xff]
    %v45 = vld [vmem:[#allocation4 + $0x60] sm:$0xff]
    %v46 = vld [vmem:[#allocation4 + $0x68] sm:$0xff]
    %v47 = vld [vmem:[#allocation4 + $0x70] sm:$0xff]
    %v48 = vld [vmem:[#allocation4 + $0x78] sm:$0xff]
    %v49 = vld [vmem:[#allocation4 + $0x80] sm:$0xff]
    %v50 = vld [vmem:[#allocation4 + $0x88] sm:$0xff]
    %v51 = vld [vmem:[#allocation4 + $0x90] sm:$0xff]
    %v52 = vld [vmem:[#allocation4 + $0x98] sm:$0xff]
    %v53 = vld [vmem:[#allocation4 + $0xa0] sm:$0xff]
    %v54 = vld [vmem:[#allocation4 + $0xa8] sm:$0xff]
    %v55 = vld [vmem:[#allocation4 + $0xb0] sm:$0xff]
    %v56 = vld [vmem:[#allocation4 + $0xb8] sm:$0xff]
    %v57 = vld [vmem:[#allocation4 + $0xc0] sm:$0xff]
    %v58 = vld [vmem:[#allocation4 + $0xc8] sm:$0xff]
    %v59 = vld [vmem:[#allocation4 + $0xd0] sm:$0xff]
    %v60 = vld [vmem:[#allocation4 + $0xd8] sm:$0xff]
    %v61 = vld [vmem:[#allocation4 + $0xe0] sm:$0xff]
    %v62 = vld [vmem:[#allocation4 + $0xe8] sm:$0xff]
    %v63 = vld [vmem:[#allocation4 + $0xf0] sm:$0xff]
    %v64 = vld [vmem:[#allocation4 + $0xf8] sm:$0xff]
    %v65 = vld [vmem:[#allocation4 + $0x100] sm:$0xff]
    %v66 = vld [vmem:[#allocation4 + $0x108] sm:$0xff]
    %v67 = vld [vmem:[#allocation4 + $0x110] sm:$0xff]
    %v68 = vld [vmem:[#allocation4 + $0x118] sm:$0xff]
    %v69 = vld [vmem:[#allocation4 + $0x120] sm:$0xff]
    %v70 = vld [vmem:[#allocation4 + $0x128] sm:$0xff]
    %v71 = vld [vmem:[#allocation4 + $0x130] sm:$0xff]
    %v72 = vld [vmem:[#allocation4 + $0x138] sm:$0xff]
    %v73 = vld [vmem:[#allocation4 + $0x140] sm:$0xff]
    %v74 = vld [vmem:[#allocation4 + $0x148] sm:$0xff]
    %v75 = vld [vmem:[#allocation4 + $0x150] sm:$0xff]
    %v76 = vld [vmem:[#allocation4 + $0x158] sm:$0xff]
    %v77 = vld [vmem:[#allocation4 + $0x160] sm:$0xff]
    %v78 = vld [vmem:[#allocation4 + $0x168] sm:$0xff]
    %v79 = vld [vmem:[#allocation4 + $0x170] sm:$0xff]
    %v80 = vld [vmem:[#allocation4 + $0x178] sm:$0xff]
    %v81 = vld [vmem:[#allocation4 + $0x180] sm:$0xff]
    %v82 = vld [vmem:[#allocation4 + $0x188] sm:$0xff]
    %v83 = vld [vmem:[#allocation4 + $0x190] sm:$0xff]
    %v84 = vld [vmem:[#allocation4 + $0x198] sm:$0xff]
    %v85 = vld [vmem:[#allocation4 + $0x1a0] sm:$0xff]
    %v86 = vld [vmem:[#allocation4 + $0x1a8] sm:$0xff]
    %v87 = vld [vmem:[#allocation4 + $0x1b0] sm:$0xff]
    %v88 = vld [vmem:[#allocation4 + $0x1b8] sm:$0xff]
    %v89 = vld [vmem:[#allocation4 + $0x1c0] sm:$0xff]
    %v90 = vld [vmem:[#allocation4 + $0x1c8] sm:$0xff]
    %v91 = vld [vmem:[#allocation4 + $0x1d0] sm:$0xff]
    %v92 = vld [vmem:[#allocation4 + $0x1d8] sm:$0xff]
    %v93 = vld [vmem:[#allocation4 + $0x1e0] sm:$0xff]
    %v94 = vld [vmem:[#allocation4 + $0x1e8] sm:$0xff]
    %v95 = vld [vmem:[#allocation4 + $0x1f0] sm:$0xff]
    %v96 = vld [vmem:[#allocation4 + $0x1f8] sm:$0xff]
    %v97 = vld [vmem:[%s1] sm:$0xf]
    %v98 = vld [vmem:[%s1 + $0x4] sm:$0xf]
    %v99 = vld [vmem:[%s1 + $0x8] sm:$0xf]
    %v100 = vld [vmem:[%s1 + $0xc] sm:$0xf]
    %v101 = vld [vmem:[%s1 + $0x10] sm:$0xf]
    %v102 = vld [vmem:[%s1 + $0x14] sm:$0xf]
    %v103 = vld [vmem:[%s1 + $0x18] sm:$0xf]
    %v104 = vld [vmem:[%s1 + $0x1c] sm:$0xf]
    %v105 = vld [vmem:[%s1 + $0x20] sm:$0xf]
    %v106 = vld [vmem:[%s1 + $0x24] sm:$0xf]
    %v107 = vld [vmem:[%s1 + $0x28] sm:$0xf]
    %v108 = vld [vmem:[%s1 + $0x2c] sm:$0xf]
    %v109 = vld [vmem:[%s1 + $0x30] sm:$0xf]
    %v110 = vld [vmem:[%s1 + $0x34] sm:$0xf]
    %v111 = vld [vmem:[%s1 + $0x38] sm:$0xf]
    %v112 = vld [vmem:[%s1 + $0x3c] sm:$0xf]
    %v113 = vld [vmem:[%s1 + $0x40] sm:$0xf]
    %v114 = vld [vmem:[%s1 + $0x44] sm:$0xf]
    %v115 = vld [vmem:[%s1 + $0x48] sm:$0xf]
    %v116 = vld [vmem:[%s1 + $0x4c] sm:$0xf]
    %v117 = vld [vmem:[%s1 + $0x50] sm:$0xf]
    %v118 = vld [vmem:[%s1 + $0x54] sm:$0xf]
    %v119 = vld [vmem:[%s1 + $0x58] sm:$0xf]
    %v120 = vld [vmem:[%s1 + $0x5c] sm:$0xf]
    %v121 = vld [vmem:[%s1 + $0x60] sm:$0xf]
    %v122 = vld [vmem:[%s1 + $0x64] sm:$0xf]
    %v123 = vld [vmem:[%s1 + $0x68] sm:$0xf]
    %v124 = vld [vmem:[%s1 + $0x6c] sm:$0xf]
    %v125 = vld [vmem:[%s1 + $0x70] sm:$0xf]
    %v126 = vld [vmem:[%s1 + $0x74] sm:$0xf]
    %v127 = vld [vmem:[%s1 + $0x78] sm:$0xf]
    %v128 = vld [vmem:[%s1 + $0x7c] sm:$0xf]
    %v193 = vunpack.c.l.b16 %v33
    %v194 = vunpack.c.h.b16 %v33
    %v195 = vunpack.c.l.b16 %v34
    %v196 = vunpack.c.h.b16 %v34
    %v197 = vunpack.c.l.b16 %v35
    %v198 = vunpack.c.h.b16 %v35
    %v199 = vunpack.c.l.b16 %v36
    %v200 = vunpack.c.h.b16 %v36
    %v201 = vunpack.c.l.b16 %v37
    %v202 = vunpack.c.h.b16 %v37
    %v203 = vunpack.c.l.b16 %v38
    %v204 = vunpack.c.h.b16 %v38
    %v205 = vunpack.c.l.b16 %v39
    %v206 = vunpack.c.h.b16 %v39
    %v207 = vunpack.c.l.b16 %v40
    %v208 = vunpack.c.h.b16 %v40
    %v209 = vunpack.c.l.b16 %v41
    %v210 = vunpack.c.h.b16 %v41
    %v211 = vunpack.c.l.b16 %v42
    %v212 = vunpack.c.h.b16 %v42
    %v213 = vunpack.c.l.b16 %v43
    %v214 = vunpack.c.h.b16 %v43
    %v215 = vunpack.c.l.b16 %v44
    %v216 = vunpack.c.h.b16 %v44
    %v217 = vunpack.c.l.b16 %v45
    %v218 = vunpack.c.h.b16 %v45
    %v219 = vunpack.c.l.b16 %v46
    %v220 = vunpack.c.h.b16 %v46
    %v221 = vunpack.c.l.b16 %v47
    %v222 = vunpack.c.h.b16 %v47
    %v223 = vunpack.c.l.b16 %v48
    %v224 = vunpack.c.h.b16 %v48
    %v225 = vunpack.c.l.b16 %v49
    %v226 = vunpack.c.h.b16 %v49
    %v227 = vunpack.c.l.b16 %v50
    %v228 = vunpack.c.h.b16 %v50
    %v229 = vunpack.c.l.b16 %v51
    %v230 = vunpack.c.h.b16 %v51
    %v231 = vunpack.c.l.b16 %v52
    %v232 = vunpack.c.h.b16 %v52
    %v233 = vunpack.c.l.b16 %v53
    %v234 = vunpack.c.h.b16 %v53
    %v235 = vunpack.c.l.b16 %v54
    %v236 = vunpack.c.h.b16 %v54
    %v237 = vunpack.c.l.b16 %v55
    %v238 = vunpack.c.h.b16 %v55
    %v239 = vunpack.c.l.b16 %v56
    %v240 = vunpack.c.h.b16 %v56
    %v241 = vunpack.c.l.b16 %v57
    %v242 = vunpack.c.h.b16 %v57
    %v243 = vunpack.c.l.b16 %v58
    %v244 = vunpack.c.h.b16 %v58
    %v245 = vunpack.c.l.b16 %v59
    %v246 = vunpack.c.h.b16 %v59
    %v247 = vunpack.c.l.b16 %v60
    %v248 = vunpack.c.h.b16 %v60
    %v249 = vunpack.c.l.b16 %v61
    %v250 = vunpack.c.h.b16 %v61
    %v251 = vunpack.c.l.b16 %v62
    %v252 = vunpack.c.h.b16 %v62
    %v253 = vunpack.c.l.b16 %v63
    %v254 = vunpack.c.h.b16 %v63
    %v255 = vunpack.c.l.b16 %v64
    %v256 = vunpack.c.h.b16 %v64
    %v257 = vunpack.c.l.b16 %v65
    %v258 = vunpack.c.h.b16 %v65
    %v259 = vunpack.c.l.b16 %v66
    %v260 = vunpack.c.h.b16 %v66
    %v261 = vunpack.c.l.b16 %v67
    %v262 = vunpack.c.h.b16 %v67
    %v263 = vunpack.c.l.b16 %v68
    %v264 = vunpack.c.h.b16 %v68
    %v265 = vunpack.c.l.b16 %v69
    %v266 = vunpack.c.h.b16 %v69
    %v267 = vunpack.c.l.b16 %v70
    %v268 = vunpack.c.h.b16 %v70
    %v269 = vunpack.c.l.b16 %v71
    %v270 = vunpack.c.h.b16 %v71
    %v271 = vunpack.c.l.b16 %v72
    %v272 = vunpack.c.h.b16 %v72
    %v273 = vunpack.c.l.b16 %v73
    %v274 = vunpack.c.h.b16 %v73
    %v275 = vunpack.c.l.b16 %v74
    %v276 = vunpack.c.h.b16 %v74
    %v277 = vunpack.c.l.b16 %v75
    %v278 = vunpack.c.h.b16 %v75
    %v279 = vunpack.c.l.b16 %v76
    %v280 = vunpack.c.h.b16 %v76
    %v281 = vunpack.c.l.b16 %v77
    %v282 = vunpack.c.h.b16 %v77
    %v283 = vunpack.c.l.b16 %v78
    %v284 = vunpack.c.h.b16 %v78
    %v285 = vunpack.c.l.b16 %v79
    %v286 = vunpack.c.h.b16 %v79
    %v287 = vunpack.c.l.b16 %v80
    %v288 = vunpack.c.h.b16 %v80
    %v289 = vunpack.c.l.b16 %v81
    %v290 = vunpack.c.h.b16 %v81
    %v291 = vunpack.c.l.b16 %v82
    %v292 = vunpack.c.h.b16 %v82
    %v293 = vunpack.c.l.b16 %v83
    %v294 = vunpack.c.h.b16 %v83
    %v295 = vunpack.c.l.b16 %v84
    %v296 = vunpack.c.h.b16 %v84
    %v297 = vunpack.c.l.b16 %v85
    %v298 = vunpack.c.h.b16 %v85
    %v299 = vunpack.c.l.b16 %v86
    %v300 = vunpack.c.h.b16 %v86
    %v301 = vunpack.c.l.b16 %v87
    %v302 = vunpack.c.h.b16 %v87
    %v303 = vunpack.c.l.b16 %v88
    %v304 = vunpack.c.h.b16 %v88
    %v305 = vunpack.c.l.b16 %v89
    %v306 = vunpack.c.h.b16 %v89
    %v307 = vunpack.c.l.b16 %v90
    %v308 = vunpack.c.h.b16 %v90
    %v309 = vunpack.c.l.b16 %v91
    %v310 = vunpack.c.h.b16 %v91
    %v311 = vunpack.c.l.b16 %v92
    %v312 = vunpack.c.h.b16 %v92
    %v313 = vunpack.c.l.b16 %v93
    %v314 = vunpack.c.h.b16 %v93
    %v315 = vunpack.c.l.b16 %v94
    %v316 = vunpack.c.h.b16 %v94
    %v317 = vunpack.c.l.b16 %v95
    %v318 = vunpack.c.h.b16 %v95
    %v319 = vunpack.c.l.b16 %v96
    %v320 = vunpack.c.h.b16 %v96
    %v321 = vpack.c.b16 %v195, %v193
    %v322 = vpack.c.b16 %v196, %v194
    %v323 = vpack.c.b16 %v199, %v197
    %v324 = vpack.c.b16 %v200, %v198
    %v325 = vpack.c.b16 %v203, %v201
    %v326 = vpack.c.b16 %v204, %v202
    %v327 = vpack.c.b16 %v207, %v205
    %v328 = vpack.c.b16 %v208, %v206
    %v329 = vpack.c.b16 %v211, %v209
    %v330 = vpack.c.b16 %v212, %v210
    %v331 = vpack.c.b16 %v215, %v213
    %v332 = vpack.c.b16 %v216, %v214
    %v333 = vpack.c.b16 %v219, %v217
    %v334 = vpack.c.b16 %v220, %v218
    %v335 = vpack.c.b16 %v223, %v221
    %v336 = vpack.c.b16 %v224, %v222
    %v337 = vpack.c.b16 %v227, %v225
    %v338 = vpack.c.b16 %v228, %v226
    %v339 = vpack.c.b16 %v231, %v229
    %v340 = vpack.c.b16 %v232, %v230
    %v341 = vpack.c.b16 %v235, %v233
    %v342 = vpack.c.b16 %v236, %v234
    %v343 = vpack.c.b16 %v239, %v237
    %v344 = vpack.c.b16 %v240, %v238
    %v345 = vpack.c.b16 %v243, %v241
    %v346 = vpack.c.b16 %v244, %v242
    %v347 = vpack.c.b16 %v247, %v245
    %v348 = vpack.c.b16 %v248, %v246
    %v349 = vpack.c.b16 %v251, %v249
    %v350 = vpack.c.b16 %v252, %v250
    %v351 = vpack.c.b16 %v255, %v253
    %v352 = vpack.c.b16 %v256, %v254
    %v353 = vpack.c.b16 %v259, %v257
    %v354 = vpack.c.b16 %v260, %v258
    %v355 = vpack.c.b16 %v263, %v261
    %v356 = vpack.c.b16 %v264, %v262
    %v357 = vpack.c.b16 %v267, %v265
    %v358 = vpack.c.b16 %v268, %v266
    %v359 = vpack.c.b16 %v271, %v269
    %v360 = vpack.c.b16 %v272, %v270
    %v361 = vpack.c.b16 %v275, %v273
    %v362 = vpack.c.b16 %v276, %v274
    %v363 = vpack.c.b16 %v279, %v277
    %v364 = vpack.c.b16 %v280, %v278
    %v365 = vpack.c.b16 %v283, %v281
    %v366 = vpack.c.b16 %v284, %v282
    %v367 = vpack.c.b16 %v287, %v285
    %v368 = vpack.c.b16 %v288, %v286
    %v369 = vpack.c.b16 %v291, %v289
    %v370 = vpack.c.b16 %v292, %v290
    %v371 = vpack.c.b16 %v295, %v293
    %v372 = vpack.c.b16 %v296, %v294
    %v373 = vpack.c.b16 %v299, %v297
    %v374 = vpack.c.b16 %v300, %v298
    %v375 = vpack.c.b16 %v303, %v301
    %v376 = vpack.c.b16 %v304, %v302
    %v377 = vpack.c.b16 %v307, %v305
    %v378 = vpack.c.b16 %v308, %v306
    %v379 = vpack.c.b16 %v311, %v309
    %v380 = vpack.c.b16 %v312, %v310
    %v381 = vpack.c.b16 %v315, %v313
    %v382 = vpack.c.b16 %v316, %v314
    %v383 = vpack.c.b16 %v319, %v317
    %v384 = vpack.c.b16 %v320, %v318
    %v481 = vunpack.c.l.b16 %v97
    %v482 = vunpack.c.l.b16 %v98
    %v483 = vunpack.c.l.b16 %v99
    %v484 = vunpack.c.l.b16 %v100
    %v485 = vunpack.c.l.b16 %v101
    %v486 = vunpack.c.l.b16 %v102
    %v487 = vunpack.c.l.b16 %v103
    %v488 = vunpack.c.l.b16 %v104
    %v489 = vunpack.c.l.b16 %v105
    %v490 = vunpack.c.l.b16 %v106
    %v491 = vunpack.c.l.b16 %v107
    %v492 = vunpack.c.l.b16 %v108
    %v493 = vunpack.c.l.b16 %v109
    %v494 = vunpack.c.l.b16 %v110
    %v495 = vunpack.c.l.b16 %v111
    %v496 = vunpack.c.l.b16 %v112
    %v497 = vunpack.c.l.b16 %v113
    %v498 = vunpack.c.l.b16 %v114
    %v499 = vunpack.c.l.b16 %v115
    %v500 = vunpack.c.l.b16 %v116
    %v501 = vunpack.c.l.b16 %v117
    %v502 = vunpack.c.l.b16 %v118
    %v503 = vunpack.c.l.b16 %v119
    %v504 = vunpack.c.l.b16 %v120
    %v505 = vunpack.c.l.b16 %v121
    %v506 = vunpack.c.l.b16 %v122
    %v507 = vunpack.c.l.b16 %v123
    %v508 = vunpack.c.l.b16 %v124
    %v509 = vunpack.c.l.b16 %v125
    %v510 = vunpack.c.l.b16 %v126
    %v511 = vunpack.c.l.b16 %v127
    %v512 = vunpack.c.l.b16 %v128
    %v513 = vpack.c.b16 %v482, %v481
    %v514 = vpack.c.b16 %v484, %v483
    %v515 = vpack.c.b16 %v486, %v485
    %v516 = vpack.c.b16 %v488, %v487
    %v517 = vpack.c.b16 %v490, %v489
    %v518 = vpack.c.b16 %v492, %v491
    %v519 = vpack.c.b16 %v494, %v493
    %v520 = vpack.c.b16 %v496, %v495
    %v521 = vpack.c.b16 %v498, %v497
    %v522 = vpack.c.b16 %v500, %v499
    %v523 = vpack.c.b16 %v502, %v501
    %v524 = vpack.c.b16 %v504, %v503
    %v525 = vpack.c.b16 %v506, %v505
    %v526 = vpack.c.b16 %v508, %v507
    %v527 = vpack.c.b16 %v510, %v509
    %v528 = vpack.c.b16 %v512, %v511
    %545 = vmatpush.bf16.msra.mxu0 %v520
    %546 = vmatpush.bf16.msra.mxu0 %v519
    %547 = vmatpush.bf16.msra.mxu0 %v518
    %548 = vmatpush.bf16.msra.mxu0 %v517
    %549 = vmatpush.bf16.msra.mxu0 %v516
    %550 = vmatpush.bf16.msra.mxu0 %v515
    %551 = vmatpush.bf16.msra.mxu0 %v514
    %552 = vmatpush.bf16.msra.mxu0 %v513
    %553 = vmatmul.bf16.gmra.mxu0 %v321
    %v554 = vpop.f32.mrf.mxu0
    %v555 = vadd.f32 0.0, %v554
    %v556 = vpop.f32.mrf.mxu0
    %v557 = vadd.f32 0.0, %v556
    %558 = vmatmul.bf16.gmra.mxu0 %v323
    %v559 = vpop.f32.mrf.mxu0
    %v560 = vadd.f32 0.0, %v559
    %v561 = vpop.f32.mrf.mxu0
    %v562 = vadd.f32 0.0, %v561
    %563 = vmatmul.bf16.gmra.mxu0 %v325
    %v564 = vpop.f32.mrf.mxu0
    %v565 = vadd.f32 0.0, %v564
    %v566 = vpop.f32.mrf.mxu0
    %v567 = vadd.f32 0.0, %v566
    %568 = vmatmul.bf16.gmra.mxu0 %v327
    %v569 = vpop.f32.mrf.mxu0
    %v570 = vadd.f32 0.0, %v569
    %v571 = vpop.f32.mrf.mxu0
    %v572 = vadd.f32 0.0, %v571
    %573 = vmatmul.bf16.gmra.mxu0 %v329
    %v574 = vpop.f32.mrf.mxu0
    %v575 = vadd.f32 0.0, %v574
    %v576 = vpop.f32.mrf.mxu0
    %v577 = vadd.f32 0.0, %v576
    %578 = vmatmul.bf16.gmra.mxu0 %v331
    %v579 = vpop.f32.mrf.mxu0
    %v580 = vadd.f32 0.0, %v579
    %v581 = vpop.f32.mrf.mxu0
    %v582 = vadd.f32 0.0, %v581
    %583 = vmatmul.bf16.gmra.mxu0 %v333
    %v584 = vpop.f32.mrf.mxu0
    %v585 = vadd.f32 0.0, %v584
    %v586 = vpop.f32.mrf.mxu0
    %v587 = vadd.f32 0.0, %v586
    %588 = vmatmul.bf16.gmra.mxu0 %v335
    %v589 = vpop.f32.mrf.mxu0
    %v590 = vadd.f32 0.0, %v589
    %v591 = vpop.f32.mrf.mxu0
    %v592 = vadd.f32 0.0, %v591
    %593 = vmatmul.bf16.gmra.mxu0 %v337
    %v594 = vpop.f32.mrf.mxu0
    %v595 = vadd.f32 0.0, %v594
    %v596 = vpop.f32.mrf.mxu0
    %v597 = vadd.f32 0.0, %v596
    %598 = vmatmul.bf16.gmra.mxu0 %v339
    %v599 = vpop.f32.mrf.mxu0
    %v600 = vadd.f32 0.0, %v599
    %v601 = vpop.f32.mrf.mxu0
    %v602 = vadd.f32 0.0, %v601
    %603 = vmatmul.bf16.gmra.mxu0 %v341
    %v604 = vpop.f32.mrf.mxu0
    %v605 = vadd.f32 0.0, %v604
    %v606 = vpop.f32.mrf.mxu0
    %v607 = vadd.f32 0.0, %v606
    %608 = vmatmul.bf16.gmra.mxu0 %v343
    %v609 = vpop.f32.mrf.mxu0
    %v610 = vadd.f32 0.0, %v609
    %v611 = vpop.f32.mrf.mxu0
    %v612 = vadd.f32 0.0, %v611
    %613 = vmatmul.bf16.gmra.mxu0 %v345
    %v614 = vpop.f32.mrf.mxu0
    %v615 = vadd.f32 0.0, %v614
    %v616 = vpop.f32.mrf.mxu0
    %v617 = vadd.f32 0.0, %v616
    %618 = vmatmul.bf16.gmra.mxu0 %v347
    %v619 = vpop.f32.mrf.mxu0
    %v620 = vadd.f32 0.0, %v619
    %v621 = vpop.f32.mrf.mxu0
    %v622 = vadd.f32 0.0, %v621
    %623 = vmatmul.bf16.gmra.mxu0 %v349
    %v624 = vpop.f32.mrf.mxu0
    %v625 = vadd.f32 0.0, %v624
    %v626 = vpop.f32.mrf.mxu0
    %v627 = vadd.f32 0.0, %v626
    %628 = vmatmul.bf16.gmra.mxu0 %v351
    %v629 = vpop.f32.mrf.mxu0
    %v630 = vadd.f32 0.0, %v629
    %v631 = vpop.f32.mrf.mxu0
    %v632 = vadd.f32 0.0, %v631
    %633 = vmatmul.bf16.gmra.mxu0 %v353
    %v634 = vpop.f32.mrf.mxu0
    %v635 = vadd.f32 0.0, %v634
    %v636 = vpop.f32.mrf.mxu0
    %v637 = vadd.f32 0.0, %v636
    %638 = vmatmul.bf16.gmra.mxu0 %v355
    %v639 = vpop.f32.mrf.mxu0
    %v640 = vadd.f32 0.0, %v639
    %v641 = vpop.f32.mrf.mxu0
    %v642 = vadd.f32 0.0, %v641
    %643 = vmatmul.bf16.gmra.mxu0 %v357
    %v644 = vpop.f32.mrf.mxu0
    %v645 = vadd.f32 0.0, %v644
    %v646 = vpop.f32.mrf.mxu0
    %v647 = vadd.f32 0.0, %v646
    %648 = vmatmul.bf16.gmra.mxu0 %v359
    %v649 = vpop.f32.mrf.mxu0
    %v650 = vadd.f32 0.0, %v649
    %v651 = vpop.f32.mrf.mxu0
    %v652 = vadd.f32 0.0, %v651
    %653 = vmatmul.bf16.gmra.mxu0 %v361
    %v654 = vpop.f32.mrf.mxu0
    %v655 = vadd.f32 0.0, %v654
    %v656 = vpop.f32.mrf.mxu0
    %v657 = vadd.f32 0.0, %v656
    %658 = vmatmul.bf16.gmra.mxu0 %v363
    %v659 = vpop.f32.mrf.mxu0
    %v660 = vadd.f32 0.0, %v659
    %v661 = vpop.f32.mrf.mxu0
    %v662 = vadd.f32 0.0, %v661
    %663 = vmatmul.bf16.gmra.mxu0 %v365
    %v664 = vpop.f32.mrf.mxu0
    %v665 = vadd.f32 0.0, %v664
    %v666 = vpop.f32.mrf.mxu0
    %v667 = vadd.f32 0.0, %v666
    %668 = vmatmul.bf16.gmra.mxu0 %v367
    %v669 = vpop.f32.mrf.mxu0
    %v670 = vadd.f32 0.0, %v669
    %v671 = vpop.f32.mrf.mxu0
    %v672 = vadd.f32 0.0, %v671
    %673 = vmatmul.bf16.gmra.mxu0 %v369
    %v674 = vpop.f32.mrf.mxu0
    %v675 = vadd.f32 0.0, %v674
    %v676 = vpop.f32.mrf.mxu0
    %v677 = vadd.f32 0.0, %v676
    %678 = vmatmul.bf16.gmra.mxu0 %v371
    %v679 = vpop.f32.mrf.mxu0
    %v680 = vadd.f32 0.0, %v679
    %v681 = vpop.f32.mrf.mxu0
    %v682 = vadd.f32 0.0, %v681
    %683 = vmatmul.bf16.gmra.mxu0 %v373
    %v684 = vpop.f32.mrf.mxu0
    %v685 = vadd.f32 0.0, %v684
    %v686 = vpop.f32.mrf.mxu0
    %v687 = vadd.f32 0.0, %v686
    %688 = vmatmul.bf16.gmra.mxu0 %v375
    %v689 = vpop.f32.mrf.mxu0
    %v690 = vadd.f32 0.0, %v689
    %v691 = vpop.f32.mrf.mxu0
    %v692 = vadd.f32 0.0, %v691
    %693 = vmatmul.bf16.gmra.mxu0 %v377
    %v694 = vpop.f32.mrf.mxu0
    %v695 = vadd.f32 0.0, %v694
    %v696 = vpop.f32.mrf.mxu0
    %v697 = vadd.f32 0.0, %v696
    %698 = vmatmul.bf16.gmra.mxu0 %v379
    %v699 = vpop.f32.mrf.mxu0
    %v700 = vadd.f32 0.0, %v699
    %v701 = vpop.f32.mrf.mxu0
    %v702 = vadd.f32 0.0, %v701
    %703 = vmatmul.bf16.gmra.mxu0 %v381
    %v704 = vpop.f32.mrf.mxu0
    %v705 = vadd.f32 0.0, %v704
    %v706 = vpop.f32.mrf.mxu0
    %v707 = vadd.f32 0.0, %v706
    %708 = vmatmul.bf16.gmra.mxu0 %v383
    %v709 = vpop.f32.mrf.mxu0
    %v710 = vadd.f32 0.0, %v709
    %v711 = vpop.f32.mrf.mxu0
    %v712 = vadd.f32 0.0, %v711
    %713 = vdwg.mxu0
    %714 = vmatpush.bf16.msra.mxu0 %v528
    %715 = vmatpush.bf16.msra.mxu0 %v527
    %716 = vmatpush.bf16.msra.mxu0 %v526
    %717 = vmatpush.bf16.msra.mxu0 %v525
    %718 = vmatpush.bf16.msra.mxu0 %v524
    %719 = vmatpush.bf16.msra.mxu0 %v523
    %720 = vmatpush.bf16.msra.mxu0 %v522
    %721 = vmatpush.bf16.msra.mxu0 %v521
    %722 = vmatmul.bf16.gmra.mxu0 %v322
    %v723 = vpop.f32.mrf.mxu0
    %v724 = vadd.f32 %v555, %v723
    %v725 = vpop.f32.mrf.mxu0
    %v726 = vadd.f32 %v557, %v725
    %727 = vmatmul.bf16.gmra.mxu0 %v324
    %v728 = vpop.f32.mrf.mxu0
    %v729 = vadd.f32 %v560, %v728
    %v730 = vpop.f32.mrf.mxu0
    %v731 = vadd.f32 %v562, %v730
    %732 = vmatmul.bf16.gmra.mxu0 %v326
    %v733 = vpop.f32.mrf.mxu0
    %v734 = vadd.f32 %v565, %v733
    %v735 = vpop.f32.mrf.mxu0
    %v736 = vadd.f32 %v567, %v735
    %737 = vmatmul.bf16.gmra.mxu0 %v328
    %v738 = vpop.f32.mrf.mxu0
    %v739 = vadd.f32 %v570, %v738
    %v740 = vpop.f32.mrf.mxu0
    %v741 = vadd.f32 %v572, %v740
    %742 = vmatmul.bf16.gmra.mxu0 %v330
    %v743 = vpop.f32.mrf.mxu0
    %v744 = vadd.f32 %v575, %v743
    %v745 = vpop.f32.mrf.mxu0
    %v746 = vadd.f32 %v577, %v745
    %747 = vmatmul.bf16.gmra.mxu0 %v332
    %v748 = vpop.f32.mrf.mxu0
    %v749 = vadd.f32 %v580, %v748
    %v750 = vpop.f32.mrf.mxu0
    %v751 = vadd.f32 %v582, %v750
    %752 = vmatmul.bf16.gmra.mxu0 %v334
    %v753 = vpop.f32.mrf.mxu0
    %v754 = vadd.f32 %v585, %v753
    %v755 = vpop.f32.mrf.mxu0
    %v756 = vadd.f32 %v587, %v755
    %757 = vmatmul.bf16.gmra.mxu0 %v336
    %v758 = vpop.f32.mrf.mxu0
    %v759 = vadd.f32 %v590, %v758
    %v760 = vpop.f32.mrf.mxu0
    %v761 = vadd.f32 %v592, %v760
    %762 = vmatmul.bf16.gmra.mxu0 %v338
    %v763 = vpop.f32.mrf.mxu0
    %v764 = vadd.f32 %v595, %v763
    %v765 = vpop.f32.mrf.mxu0
    %v766 = vadd.f32 %v597, %v765
    %767 = vmatmul.bf16.gmra.mxu0 %v340
    %v768 = vpop.f32.mrf.mxu0
    %v769 = vadd.f32 %v600, %v768
    %v770 = vpop.f32.mrf.mxu0
    %v771 = vadd.f32 %v602, %v770
    %772 = vmatmul.bf16.gmra.mxu0 %v342
    %v773 = vpop.f32.mrf.mxu0
    %v774 = vadd.f32 %v605, %v773
    %v775 = vpop.f32.mrf.mxu0
    %v776 = vadd.f32 %v607, %v775
    %777 = vmatmul.bf16.gmra.mxu0 %v344
    %v778 = vpop.f32.mrf.mxu0
    %v779 = vadd.f32 %v610, %v778
    %v780 = vpop.f32.mrf.mxu0
    %v781 = vadd.f32 %v612, %v780
    %782 = vmatmul.bf16.gmra.mxu0 %v346
    %v783 = vpop.f32.mrf.mxu0
    %v784 = vadd.f32 %v615, %v783
    %v785 = vpop.f32.mrf.mxu0
    %v786 = vadd.f32 %v617, %v785
    %787 = vmatmul.bf16.gmra.mxu0 %v348
    %v788 = vpop.f32.mrf.mxu0
    %v789 = vadd.f32 %v620, %v788
    %v790 = vpop.f32.mrf.mxu0
    %v791 = vadd.f32 %v622, %v790
    %792 = vmatmul.bf16.gmra.mxu0 %v350
    %v793 = vpop.f32.mrf.mxu0
    %v794 = vadd.f32 %v625, %v793
    %v795 = vpop.f32.mrf.mxu0
    %v796 = vadd.f32 %v627, %v795
    %797 = vmatmul.bf16.gmra.mxu0 %v352
    %v798 = vpop.f32.mrf.mxu0
    %v799 = vadd.f32 %v630, %v798
    %v800 = vpop.f32.mrf.mxu0
    %v801 = vadd.f32 %v632, %v800
    %802 = vmatmul.bf16.gmra.mxu0 %v354
    %v803 = vpop.f32.mrf.mxu0
    %v804 = vadd.f32 %v635, %v803
    %v805 = vpop.f32.mrf.mxu0
    %v806 = vadd.f32 %v637, %v805
    %807 = vmatmul.bf16.gmra.mxu0 %v356
    %v808 = vpop.f32.mrf.mxu0
    %v809 = vadd.f32 %v640, %v808
    %v810 = vpop.f32.mrf.mxu0
    %v811 = vadd.f32 %v642, %v810
    %812 = vmatmul.bf16.gmra.mxu0 %v358
    %v813 = vpop.f32.mrf.mxu0
    %v814 = vadd.f32 %v645, %v813
    %v815 = vpop.f32.mrf.mxu0
    %v816 = vadd.f32 %v647, %v815
    %817 = vmatmul.bf16.gmra.mxu0 %v360
    %v818 = vpop.f32.mrf.mxu0
    %v819 = vadd.f32 %v650, %v818
    %v820 = vpop.f32.mrf.mxu0
    %v821 = vadd.f32 %v652, %v820
    %822 = vmatmul.bf16.gmra.mxu0 %v362
    %v823 = vpop.f32.mrf.mxu0
    %v824 = vadd.f32 %v655, %v823
    %v825 = vpop.f32.mrf.mxu0
    %v826 = vadd.f32 %v657, %v825
    %827 = vmatmul.bf16.gmra.mxu0 %v364
    %v828 = vpop.f32.mrf.mxu0
    %v829 = vadd.f32 %v660, %v828
    %v830 = vpop.f32.mrf.mxu0
    %v831 = vadd.f32 %v662, %v830
    %832 = vmatmul.bf16.gmra.mxu0 %v366
    %v833 = vpop.f32.mrf.mxu0
    %v834 = vadd.f32 %v665, %v833
    %v835 = vpop.f32.mrf.mxu0
    %v836 = vadd.f32 %v667, %v835
    %837 = vmatmul.bf16.gmra.mxu0 %v368
    %v838 = vpop.f32.mrf.mxu0
    %v839 = vadd.f32 %v670, %v838
    %v840 = vpop.f32.mrf.mxu0
    %v841 = vadd.f32 %v672, %v840
    %842 = vmatmul.bf16.gmra.mxu0 %v370
    %v843 = vpop.f32.mrf.mxu0
    %v844 = vadd.f32 %v675, %v843
    %v845 = vpop.f32.mrf.mxu0
    %v846 = vadd.f32 %v677, %v845
    %847 = vmatmul.bf16.gmra.mxu0 %v372
    %v848 = vpop.f32.mrf.mxu0
    %v849 = vadd.f32 %v680, %v848
    %v850 = vpop.f32.mrf.mxu0
    %v851 = vadd.f32 %v682, %v850
    %852 = vmatmul.bf16.gmra.mxu0 %v374
    %v853 = vpop.f32.mrf.mxu0
    %v854 = vadd.f32 %v685, %v853
    %v855 = vpop.f32.mrf.mxu0
    %v856 = vadd.f32 %v687, %v855
    %857 = vmatmul.bf16.gmra.mxu0 %v376
    %v858 = vpop.f32.mrf.mxu0
    %v859 = vadd.f32 %v690, %v858
    %v860 = vpop.f32.mrf.mxu0
    %v861 = vadd.f32 %v692, %v860
    %862 = vmatmul.bf16.gmra.mxu0 %v378
    %v863 = vpop.f32.mrf.mxu0
    %v864 = vadd.f32 %v695, %v863
    %v865 = vpop.f32.mrf.mxu0
    %v866 = vadd.f32 %v697, %v865
    %867 = vmatmul.bf16.gmra.mxu0 %v380
    %v868 = vpop.f32.mrf.mxu0
    %v869 = vadd.f32 %v700, %v868
    %v870 = vpop.f32.mrf.mxu0
    %v871 = vadd.f32 %v702, %v870
    %872 = vmatmul.bf16.gmra.mxu0 %v382
    %v873 = vpop.f32.mrf.mxu0
    %v874 = vadd.f32 %v705, %v873
    %v875 = vpop.f32.mrf.mxu0
    %v876 = vadd.f32 %v707, %v875
    %877 = vmatmul.bf16.gmra.mxu0 %v384
    %v878 = vpop.f32.mrf.mxu0
    %v879 = vadd.f32 %v710, %v878
    %v880 = vpop.f32.mrf.mxu0
    %v881 = vadd.f32 %v712, %v880
    %882 = vdwg.mxu0
    %v883 = vld [vmem:[%s2] sm:$0x1]
    %v884 = vld [vmem:[%s3] sm:$0x1]
    %vm885 = vcmask 523264
    %v886 = vsel %vm885, %v724, 0.0
    %v887 = vsel %vm885, %v726, 0.0
    %v888 = vadd.f32 %v886, %v887
    %v889 = vsel %vm885, %v729, 0.0
    %v890 = vadd.f32 %v888, %v889
    %v891 = vsel %vm885, %v731, 0.0
    %v892 = vadd.f32 %v890, %v891
    %v893 = vsel %vm885, %v734, 0.0
    %v894 = vadd.f32 %v892, %v893
    %v895 = vsel %vm885, %v736, 0.0
    %v896 = vadd.f32 %v894, %v895
    %v897 = vsel %vm885, %v739, 0.0
    %v898 = vadd.f32 %v896, %v897
    %v899 = vsel %vm885, %v741, 0.0
    %v900 = vadd.f32 %v898, %v899
    %v901 = vsel %vm885, %v744, 0.0
    %v902 = vadd.f32 %v900, %v901
    %v903 = vsel %vm885, %v746, 0.0
    %v904 = vadd.f32 %v902, %v903
    %v905 = vsel %vm885, %v749, 0.0
    %v906 = vadd.f32 %v904, %v905
    %v907 = vsel %vm885, %v751, 0.0
    %v908 = vadd.f32 %v906, %v907
    %v909 = vsel %vm885, %v754, 0.0
    %v910 = vadd.f32 %v908, %v909
    %v911 = vsel %vm885, %v756, 0.0
    %v912 = vadd.f32 %v910, %v911
    %v913 = vsel %vm885, %v759, 0.0
    %v914 = vadd.f32 %v912, %v913
    %v915 = vsel %vm885, %v761, 0.0
    %v916 = vadd.f32 %v914, %v915
    %v917 = vsel %vm885, %v764, 0.0
    %v918 = vadd.f32 %v916, %v917
    %v919 = vsel %vm885, %v766, 0.0
    %v920 = vadd.f32 %v918, %v919
    %v921 = vsel %vm885, %v769, 0.0
    %v922 = vadd.f32 %v920, %v921
    %v923 = vsel %vm885, %v771, 0.0
    %v924 = vadd.f32 %v922, %v923
    %v925 = vsel %vm885, %v774, 0.0
    %v926 = vadd.f32 %v924, %v925
    %v927 = vsel %vm885, %v776, 0.0
    %v928 = vadd.f32 %v926, %v927
    %v929 = vsel %vm885, %v779, 0.0
    %v930 = vadd.f32 %v928, %v929
    %v931 = vsel %vm885, %v781, 0.0
    %v932 = vadd.f32 %v930, %v931
    %v933 = vsel %vm885, %v784, 0.0
    %v934 = vadd.f32 %v932, %v933
    %v935 = vsel %vm885, %v786, 0.0
    %v936 = vadd.f32 %v934, %v935
    %v937 = vsel %vm885, %v789, 0.0
    %v938 = vadd.f32 %v936, %v937
    %v939 = vsel %vm885, %v791, 0.0
    %v940 = vadd.f32 %v938, %v939
    %v941 = vsel %vm885, %v794, 0.0
    %v942 = vadd.f32 %v940, %v941
    %v943 = vsel %vm885, %v796, 0.0
    %v944 = vadd.f32 %v942, %v943
    %v945 = vsel %vm885, %v799, 0.0
    %v946 = vadd.f32 %v944, %v945
    %v947 = vsel %vm885, %v801, 0.0
    %v948 = vadd.f32 %v946, %v947
    %v949 = vsel %vm885, %v804, 0.0
    %v950 = vadd.f32 %v948, %v949
    %v951 = vsel %vm885, %v806, 0.0
    %v952 = vadd.f32 %v950, %v951
    %v953 = vsel %vm885, %v809, 0.0
    %v954 = vadd.f32 %v952, %v953
    %v955 = vsel %vm885, %v811, 0.0
    %v956 = vadd.f32 %v954, %v955
    %v957 = vsel %vm885, %v814, 0.0
    %v958 = vadd.f32 %v956, %v957
    %v959 = vsel %vm885, %v816, 0.0
    %v960 = vadd.f32 %v958, %v959
    %v961 = vsel %vm885, %v819, 0.0
    %v962 = vadd.f32 %v960, %v961
    %v963 = vsel %vm885, %v821, 0.0
    %v964 = vadd.f32 %v962, %v963
    %v965 = vsel %vm885, %v824, 0.0
    %v966 = vadd.f32 %v964, %v965
    %v967 = vsel %vm885, %v826, 0.0
    %v968 = vadd.f32 %v966, %v967
    %v969 = vsel %vm885, %v829, 0.0
    %v970 = vadd.f32 %v968, %v969
    %v971 = vsel %vm885, %v831, 0.0
    %v972 = vadd.f32 %v970, %v971
    %v973 = vsel %vm885, %v834, 0.0
    %v974 = vadd.f32 %v972, %v973
    %v975 = vsel %vm885, %v836, 0.0
    %v976 = vadd.f32 %v974, %v975
    %v977 = vsel %vm885, %v839, 0.0
    %v978 = vadd.f32 %v976, %v977
    %v979 = vsel %vm885, %v841, 0.0
    %v980 = vadd.f32 %v978, %v979
    %v981 = vsel %vm885, %v844, 0.0
    %v982 = vadd.f32 %v980, %v981
    %v983 = vsel %vm885, %v846, 0.0
    %v984 = vadd.f32 %v982, %v983
    %v985 = vsel %vm885, %v849, 0.0
    %v986 = vadd.f32 %v984, %v985
    %v987 = vsel %vm885, %v851, 0.0
    %v988 = vadd.f32 %v986, %v987
    %v989 = vsel %vm885, %v854, 0.0
    %v990 = vadd.f32 %v988, %v989
    %v991 = vsel %vm885, %v856, 0.0
    %v992 = vadd.f32 %v990, %v991
    %v993 = vsel %vm885, %v859, 0.0
    %v994 = vadd.f32 %v992, %v993
    %v995 = vsel %vm885, %v861, 0.0
    %v996 = vadd.f32 %v994, %v995
    %v997 = vsel %vm885, %v864, 0.0
    %v998 = vadd.f32 %v996, %v997
    %v999 = vsel %vm885, %v866, 0.0
    %v1000 = vadd.f32 %v998, %v999
    %v1001 = vsel %vm885, %v869, 0.0
    %v1002 = vadd.f32 %v1000, %v1001
    %v1003 = vsel %vm885, %v871, 0.0
    %v1004 = vadd.f32 %v1002, %v1003
    %v1005 = vsel %vm885, %v874, 0.0
    %v1006 = vadd.f32 %v1004, %v1005
    %v1007 = vsel %vm885, %v876, 0.0
    %v1008 = vadd.f32 %v1006, %v1007
    %v1009 = vsel %vm885, %v879, 0.0
    %v1010 = vadd.f32 %v1008, %v1009
    %v1011 = vsel %vm885, %v881, 0.0
    %v1012 = vadd.f32 %v1010, %v1011
    %v1013 = vrot.slane %v1012, 4
    %v1014 = vadd.f32 %v1012, %v1013
    %v1015 = vrot.slane %v1014, 2
    %v1016 = vadd.f32 %v1014, %v1015
    %v1017 = vrot.slane %v1016, 1
    %v1018 = vadd.f32 %v1016, %v1017
    %v1019 = vmul.f32 %v724, %v724
    %v1020 = vmul.f32 %v726, %v726
    %v1021 = vmul.f32 %v729, %v729
    %v1022 = vmul.f32 %v731, %v731
    %v1023 = vmul.f32 %v734, %v734
    %v1024 = vmul.f32 %v736, %v736
    %v1025 = vmul.f32 %v739, %v739
    %v1026 = vmul.f32 %v741, %v741
    %v1027 = vmul.f32 %v744, %v744
    %v1028 = vmul.f32 %v746, %v746
    %v1029 = vmul.f32 %v749, %v749
    %v1030 = vmul.f32 %v751, %v751
    %v1031 = vmul.f32 %v754, %v754
    %v1032 = vmul.f32 %v756, %v756
    %v1033 = vmul.f32 %v759, %v759
    %v1034 = vmul.f32 %v761, %v761
    %v1035 = vmul.f32 %v764, %v764
    %v1036 = vmul.f32 %v766, %v766
    %v1037 = vmul.f32 %v769, %v769
    %v1038 = vmul.f32 %v771, %v771
    %v1039 = vmul.f32 %v774, %v774
    %v1040 = vmul.f32 %v776, %v776
    %v1041 = vmul.f32 %v779, %v779
    %v1042 = vmul.f32 %v781, %v781
    %v1043 = vmul.f32 %v784, %v784
    %v1044 = vmul.f32 %v786, %v786
    %v1045 = vmul.f32 %v789, %v789
    %v1046 = vmul.f32 %v791, %v791
    %v1047 = vmul.f32 %v794, %v794
    %v1048 = vmul.f32 %v796, %v796
    %v1049 = vmul.f32 %v799, %v799
    %v1050 = vmul.f32 %v801, %v801
    %v1051 = vmul.f32 %v804, %v804
    %v1052 = vmul.f32 %v806, %v806
    %v1053 = vmul.f32 %v809, %v809
    %v1054 = vmul.f32 %v811, %v811
    %v1055 = vmul.f32 %v814, %v814
    %v1056 = vmul.f32 %v816, %v816
    %v1057 = vmul.f32 %v819, %v819
    %v1058 = vmul.f32 %v821, %v821
    %v1059 = vmul.f32 %v824, %v824
    %v1060 = vmul.f32 %v826, %v826
    %v1061 = vmul.f32 %v829, %v829
    %v1062 = vmul.f32 %v831, %v831
    %v1063 = vmul.f32 %v834, %v834
    %v1064 = vmul.f32 %v836, %v836
    %v1065 = vmul.f32 %v839, %v839
    %v1066 = vmul.f32 %v841, %v841
    %v1067 = vmul.f32 %v844, %v844
    %v1068 = vmul.f32 %v846, %v846
    %v1069 = vmul.f32 %v849, %v849
    %v1070 = vmul.f32 %v851, %v851
    %v1071 = vmul.f32 %v854, %v854
    %v1072 = vmul.f32 %v856, %v856
    %v1073 = vmul.f32 %v859, %v859
    %v1074 = vmul.f32 %v861, %v861
    %v1075 = vmul.f32 %v864, %v864
    %v1076 = vmul.f32 %v866, %v866
    %v1077 = vmul.f32 %v869, %v869
    %v1078 = vmul.f32 %v871, %v871
    %v1079 = vmul.f32 %v874, %v874
    %v1080 = vmul.f32 %v876, %v876
    %v1081 = vmul.f32 %v879, %v879
    %v1082 = vmul.f32 %v881, %v881
    %v1083 = vsel %vm885, %v1019, 0.0
    %v1084 = vsel %vm885, %v1020, 0.0
    %v1085 = vadd.f32 %v1083, %v1084
    %v1086 = vsel %vm885, %v1021, 0.0
    %v1087 = vadd.f32 %v1085, %v1086
    %v1088 = vsel %vm885, %v1022, 0.0
    %v1089 = vadd.f32 %v1087, %v1088
    %v1090 = vsel %vm885, %v1023, 0.0
    %v1091 = vadd.f32 %v1089, %v1090
    %v1092 = vsel %vm885, %v1024, 0.0
    %v1093 = vadd.f32 %v1091, %v1092
    %v1094 = vsel %vm885, %v1025, 0.0
    %v1095 = vadd.f32 %v1093, %v1094
    %v1096 = vsel %vm885, %v1026, 0.0
    %v1097 = vadd.f32 %v1095, %v1096
    %v1098 = vsel %vm885, %v1027, 0.0
    %v1099 = vadd.f32 %v1097, %v1098
    %v1100 = vsel %vm885, %v1028, 0.0
    %v1101 = vadd.f32 %v1099, %v1100
    %v1102 = vsel %vm885, %v1029, 0.0
    %v1103 = vadd.f32 %v1101, %v1102
    %v1104 = vsel %vm885, %v1030, 0.0
    %v1105 = vadd.f32 %v1103, %v1104
    %v1106 = vsel %vm885, %v1031, 0.0
    %v1107 = vadd.f32 %v1105, %v1106
    %v1108 = vsel %vm885, %v1032, 0.0
    %v1109 = vadd.f32 %v1107, %v1108
    %v1110 = vsel %vm885, %v1033, 0.0
    %v1111 = vadd.f32 %v1109, %v1110
    %v1112 = vsel %vm885, %v1034, 0.0
    %v1113 = vadd.f32 %v1111, %v1112
    %v1114 = vsel %vm885, %v1035, 0.0
    %v1115 = vadd.f32 %v1113, %v1114
    %v1116 = vsel %vm885, %v1036, 0.0
    %v1117 = vadd.f32 %v1115, %v1116
    %v1118 = vsel %vm885, %v1037, 0.0
    %v1119 = vadd.f32 %v1117, %v1118
    %v1120 = vsel %vm885, %v1038, 0.0
    %v1121 = vadd.f32 %v1119, %v1120
    %v1122 = vsel %vm885, %v1039, 0.0
    %v1123 = vadd.f32 %v1121, %v1122
    %v1124 = vsel %vm885, %v1040, 0.0
    %v1125 = vadd.f32 %v1123, %v1124
    %v1126 = vsel %vm885, %v1041, 0.0
    %v1127 = vadd.f32 %v1125, %v1126
    %v1128 = vsel %vm885, %v1042, 0.0
    %v1129 = vadd.f32 %v1127, %v1128
    %v1130 = vsel %vm885, %v1043, 0.0
    %v1131 = vadd.f32 %v1129, %v1130
    %v1132 = vsel %vm885, %v1044, 0.0
    %v1133 = vadd.f32 %v1131, %v1132
    %v1134 = vsel %vm885, %v1045, 0.0
    %v1135 = vadd.f32 %v1133, %v1134
    %v1136 = vsel %vm885, %v1046, 0.0
    %v1137 = vadd.f32 %v1135, %v1136
    %v1138 = vsel %vm885, %v1047, 0.0
    %v1139 = vadd.f32 %v1137, %v1138
    %v1140 = vsel %vm885, %v1048, 0.0
    %v1141 = vadd.f32 %v1139, %v1140
    %v1142 = vsel %vm885, %v1049, 0.0
    %v1143 = vadd.f32 %v1141, %v1142
    %v1144 = vsel %vm885, %v1050, 0.0
    %v1145 = vadd.f32 %v1143, %v1144
    %v1146 = vsel %vm885, %v1051, 0.0
    %v1147 = vadd.f32 %v1145, %v1146
    %v1148 = vsel %vm885, %v1052, 0.0
    %v1149 = vadd.f32 %v1147, %v1148
    %v1150 = vsel %vm885, %v1053, 0.0
    %v1151 = vadd.f32 %v1149, %v1150
    %v1152 = vsel %vm885, %v1054, 0.0
    %v1153 = vadd.f32 %v1151, %v1152
    %v1154 = vsel %vm885, %v1055, 0.0
    %v1155 = vadd.f32 %v1153, %v1154
    %v1156 = vsel %vm885, %v1056, 0.0
    %v1157 = vadd.f32 %v1155, %v1156
    %v1158 = vsel %vm885, %v1057, 0.0
    %v1159 = vadd.f32 %v1157, %v1158
    %v1160 = vsel %vm885, %v1058, 0.0
    %v1161 = vadd.f32 %v1159, %v1160
    %v1162 = vsel %vm885, %v1059, 0.0
    %v1163 = vadd.f32 %v1161, %v1162
    %v1164 = vsel %vm885, %v1060, 0.0
    %v1165 = vadd.f32 %v1163, %v1164
    %v1166 = vsel %vm885, %v1061, 0.0
    %v1167 = vadd.f32 %v1165, %v1166
    %v1168 = vsel %vm885, %v1062, 0.0
    %v1169 = vadd.f32 %v1167, %v1168
    %v1170 = vsel %vm885, %v1063, 0.0
    %v1171 = vadd.f32 %v1169, %v1170
    %v1172 = vsel %vm885, %v1064, 0.0
    %v1173 = vadd.f32 %v1171, %v1172
    %v1174 = vsel %vm885, %v1065, 0.0
    %v1175 = vadd.f32 %v1173, %v1174
    %v1176 = vsel %vm885, %v1066, 0.0
    %v1177 = vadd.f32 %v1175, %v1176
    %v1178 = vsel %vm885, %v1067, 0.0
    %v1179 = vadd.f32 %v1177, %v1178
    %v1180 = vsel %vm885, %v1068, 0.0
    %v1181 = vadd.f32 %v1179, %v1180
    %v1182 = vsel %vm885, %v1069, 0.0
    %v1183 = vadd.f32 %v1181, %v1182
    %v1184 = vsel %vm885, %v1070, 0.0
    %v1185 = vadd.f32 %v1183, %v1184
    %v1186 = vsel %vm885, %v1071, 0.0
    %v1187 = vadd.f32 %v1185, %v1186
    %v1188 = vsel %vm885, %v1072, 0.0
    %v1189 = vadd.f32 %v1187, %v1188
    %v1190 = vsel %vm885, %v1073, 0.0
    %v1191 = vadd.f32 %v1189, %v1190
    %v1192 = vsel %vm885, %v1074, 0.0
    %v1193 = vadd.f32 %v1191, %v1192
    %v1194 = vsel %vm885, %v1075, 0.0
    %v1195 = vadd.f32 %v1193, %v1194
    %v1196 = vsel %vm885, %v1076, 0.0
    %v1197 = vadd.f32 %v1195, %v1196
    %v1198 = vsel %vm885, %v1077, 0.0
    %v1199 = vadd.f32 %v1197, %v1198
    %v1200 = vsel %vm885, %v1078, 0.0
    %v1201 = vadd.f32 %v1199, %v1200
    %v1202 = vsel %vm885, %v1079, 0.0
    %v1203 = vadd.f32 %v1201, %v1202
    %v1204 = vsel %vm885, %v1080, 0.0
    %v1205 = vadd.f32 %v1203, %v1204
    %v1206 = vsel %vm885, %v1081, 0.0
    %v1207 = vadd.f32 %v1205, %v1206
    %v1208 = vsel %vm885, %v1082, 0.0
    %v1209 = vadd.f32 %v1207, %v1208
    %v1210 = vrot.slane %v1209, 4
    %v1211 = vadd.f32 %v1209, %v1210
    %v1212 = vrot.slane %v1211, 2
    %v1213 = vadd.f32 %v1211, %v1212
    %v1214 = vrot.slane %v1213, 1
    %v1215 = vadd.f32 %v1213, %v1214
    %v1216 = vmul.f32 %v1018, 0.001953125
    %v1217 = vmul.f32 %v1215, 0.001953125
    %v1218 = vmul.f32 %v1216, %v1216
    %v1219 = vsub.f32 %v1217, %v1218
    %v1220 = vmax.f32 %v1219, 0.0
    %v1221 = vadd.f32 %v1220, 1e-05
    %v1222 = vrsqrt.pop %v1221
    %v1223 = vmul.f32 %v1222, %v1221
    %v1224 = vmul.f32 %v1223, %v1222
    %v1225 = vmul.f32 0.5, %v1224
    %v1226 = vsub.f32 1.5, %v1225
    %v1227 = vmul.f32 %v1222, %v1226
    %vm1228 = vweird.f32 %v1221
    %vm1229 = vweird.f32 %v1222
    %vm1230 = vmor %vm1228, %vm1229
    %v1231 = vsel %vm1230, %v1222, %v1227
    %v1232 = vmul.f32 %v883, %v1231
    %v1233 = vmul.f32 %v1216, %v1232
    %v1234 = vsub.f32 %v884, %v1233
    %v1236 = vperm.slane %v1232, 0
    %v1238 = vmul.f32 %v724, %v1236
    %v1239 = vmul.f32 %v726, %v1236
    %v1240 = vmul.f32 %v729, %v1236
    %v1241 = vmul.f32 %v731, %v1236
    %v1242 = vmul.f32 %v734, %v1236
    %v1243 = vmul.f32 %v736, %v1236
    %v1244 = vmul.f32 %v739, %v1236
    %v1245 = vmul.f32 %v741, %v1236
    %v1246 = vmul.f32 %v744, %v1236
    %v1247 = vmul.f32 %v746, %v1236
    %v1248 = vmul.f32 %v749, %v1236
    %v1249 = vmul.f32 %v751, %v1236
    %v1250 = vmul.f32 %v754, %v1236
    %v1251 = vmul.f32 %v756, %v1236
    %v1252 = vmul.f32 %v759, %v1236
    %v1253 = vmul.f32 %v761, %v1236
    %v1254 = vmul.f32 %v764, %v1236
    %v1255 = vmul.f32 %v766, %v1236
    %v1256 = vmul.f32 %v769, %v1236
    %v1257 = vmul.f32 %v771, %v1236
    %v1258 = vmul.f32 %v774, %v1236
    %v1259 = vmul.f32 %v776, %v1236
    %v1260 = vmul.f32 %v779, %v1236
    %v1261 = vmul.f32 %v781, %v1236
    %v1262 = vmul.f32 %v784, %v1236
    %v1263 = vmul.f32 %v786, %v1236
    %v1264 = vmul.f32 %v789, %v1236
    %v1265 = vmul.f32 %v791, %v1236
    %v1266 = vmul.f32 %v794, %v1236
    %v1267 = vmul.f32 %v796, %v1236
    %v1268 = vmul.f32 %v799, %v1236
    %v1269 = vmul.f32 %v801, %v1236
    %v1270 = vmul.f32 %v804, %v1236
    %v1271 = vmul.f32 %v806, %v1236
    %v1272 = vmul.f32 %v809, %v1236
    %v1273 = vmul.f32 %v811, %v1236
    %v1274 = vmul.f32 %v814, %v1236
    %v1275 = vmul.f32 %v816, %v1236
    %v1276 = vmul.f32 %v819, %v1236
    %v1277 = vmul.f32 %v821, %v1236
    %v1278 = vmul.f32 %v824, %v1236
    %v1279 = vmul.f32 %v826, %v1236
    %v1280 = vmul.f32 %v829, %v1236
    %v1281 = vmul.f32 %v831, %v1236
    %v1282 = vmul.f32 %v834, %v1236
    %v1283 = vmul.f32 %v836, %v1236
    %v1284 = vmul.f32 %v839, %v1236
    %v1285 = vmul.f32 %v841, %v1236
    %v1286 = vmul.f32 %v844, %v1236
    %v1287 = vmul.f32 %v846, %v1236
    %v1288 = vmul.f32 %v849, %v1236
    %v1289 = vmul.f32 %v851, %v1236
    %v1290 = vmul.f32 %v854, %v1236
    %v1291 = vmul.f32 %v856, %v1236
    %v1292 = vmul.f32 %v859, %v1236
    %v1293 = vmul.f32 %v861, %v1236
    %v1294 = vmul.f32 %v864, %v1236
    %v1295 = vmul.f32 %v866, %v1236
    %v1296 = vmul.f32 %v869, %v1236
    %v1297 = vmul.f32 %v871, %v1236
    %v1298 = vmul.f32 %v874, %v1236
    %v1299 = vmul.f32 %v876, %v1236
    %v1300 = vmul.f32 %v879, %v1236
    %v1301 = vmul.f32 %v881, %v1236
    %v1303 = vperm.slane %v1234, 0
    %v1305 = vadd.f32 %v1238, %v1303
    %v1306 = vadd.f32 %v1239, %v1303
    %v1307 = vadd.f32 %v1240, %v1303
    %v1308 = vadd.f32 %v1241, %v1303
    %v1309 = vadd.f32 %v1242, %v1303
    %v1310 = vadd.f32 %v1243, %v1303
    %v1311 = vadd.f32 %v1244, %v1303
    %v1312 = vadd.f32 %v1245, %v1303
    %v1313 = vadd.f32 %v1246, %v1303
    %v1314 = vadd.f32 %v1247, %v1303
    %v1315 = vadd.f32 %v1248, %v1303
    %v1316 = vadd.f32 %v1249, %v1303
    %v1317 = vadd.f32 %v1250, %v1303
    %v1318 = vadd.f32 %v1251, %v1303
    %v1319 = vadd.f32 %v1252, %v1303
    %v1320 = vadd.f32 %v1253, %v1303
    %v1321 = vadd.f32 %v1254, %v1303
    %v1322 = vadd.f32 %v1255, %v1303
    %v1323 = vadd.f32 %v1256, %v1303
    %v1324 = vadd.f32 %v1257, %v1303
    %v1325 = vadd.f32 %v1258, %v1303
    %v1326 = vadd.f32 %v1259, %v1303
    %v1327 = vadd.f32 %v1260, %v1303
    %v1328 = vadd.f32 %v1261, %v1303
    %v1329 = vadd.f32 %v1262, %v1303
    %v1330 = vadd.f32 %v1263, %v1303
    %v1331 = vadd.f32 %v1264, %v1303
    %v1332 = vadd.f32 %v1265, %v1303
    %v1333 = vadd.f32 %v1266, %v1303
    %v1334 = vadd.f32 %v1267, %v1303
    %v1335 = vadd.f32 %v1268, %v1303
    %v1336 = vadd.f32 %v1269, %v1303
    %v1337 = vadd.f32 %v1270, %v1303
    %v1338 = vadd.f32 %v1271, %v1303
    %v1339 = vadd.f32 %v1272, %v1303
    %v1340 = vadd.f32 %v1273, %v1303
    %v1341 = vadd.f32 %v1274, %v1303
    %v1342 = vadd.f32 %v1275, %v1303
    %v1343 = vadd.f32 %v1276, %v1303
    %v1344 = vadd.f32 %v1277, %v1303
    %v1345 = vadd.f32 %v1278, %v1303
    %v1346 = vadd.f32 %v1279, %v1303
    %v1347 = vadd.f32 %v1280, %v1303
    %v1348 = vadd.f32 %v1281, %v1303
    %v1349 = vadd.f32 %v1282, %v1303
    %v1350 = vadd.f32 %v1283, %v1303
    %v1351 = vadd.f32 %v1284, %v1303
    %v1352 = vadd.f32 %v1285, %v1303
    %v1353 = vadd.f32 %v1286, %v1303
    %v1354 = vadd.f32 %v1287, %v1303
    %v1355 = vadd.f32 %v1288, %v1303
    %v1356 = vadd.f32 %v1289, %v1303
    %v1357 = vadd.f32 %v1290, %v1303
    %v1358 = vadd.f32 %v1291, %v1303
    %v1359 = vadd.f32 %v1292, %v1303
    %v1360 = vadd.f32 %v1293, %v1303
    %v1361 = vadd.f32 %v1294, %v1303
    %v1362 = vadd.f32 %v1295, %v1303
    %v1363 = vadd.f32 %v1296, %v1303
    %v1364 = vadd.f32 %v1297, %v1303
    %v1365 = vadd.f32 %v1298, %v1303
    %v1366 = vadd.f32 %v1299, %v1303
    %v1367 = vadd.f32 %v1300, %v1303
    %v1368 = vadd.f32 %v1301, %v1303
    %v1369 = vmax.f32 %v1305, 0.0
    %v1370 = vmax.f32 %v1306, 0.0
    %v1371 = vmax.f32 %v1307, 0.0
    %v1372 = vmax.f32 %v1308, 0.0
    %v1373 = vmax.f32 %v1309, 0.0
    %v1374 = vmax.f32 %v1310, 0.0
    %v1375 = vmax.f32 %v1311, 0.0
    %v1376 = vmax.f32 %v1312, 0.0
    %v1377 = vmax.f32 %v1313, 0.0
    %v1378 = vmax.f32 %v1314, 0.0
    %v1379 = vmax.f32 %v1315, 0.0
    %v1380 = vmax.f32 %v1316, 0.0
    %v1381 = vmax.f32 %v1317, 0.0
    %v1382 = vmax.f32 %v1318, 0.0
    %v1383 = vmax.f32 %v1319, 0.0
    %v1384 = vmax.f32 %v1320, 0.0
    %v1385 = vmax.f32 %v1321, 0.0
    %v1386 = vmax.f32 %v1322, 0.0
    %v1387 = vmax.f32 %v1323, 0.0
    %v1388 = vmax.f32 %v1324, 0.0
    %v1389 = vmax.f32 %v1325, 0.0
    %v1390 = vmax.f32 %v1326, 0.0
    %v1391 = vmax.f32 %v1327, 0.0
    %v1392 = vmax.f32 %v1328, 0.0
    %v1393 = vmax.f32 %v1329, 0.0
    %v1394 = vmax.f32 %v1330, 0.0
    %v1395 = vmax.f32 %v1331, 0.0
    %v1396 = vmax.f32 %v1332, 0.0
    %v1397 = vmax.f32 %v1333, 0.0
    %v1398 = vmax.f32 %v1334, 0.0
    %v1399 = vmax.f32 %v1335, 0.0
    %v1400 = vmax.f32 %v1336, 0.0
    %v1401 = vmax.f32 %v1337, 0.0
    %v1402 = vmax.f32 %v1338, 0.0
    %v1403 = vmax.f32 %v1339, 0.0
    %v1404 = vmax.f32 %v1340, 0.0
    %v1405 = vmax.f32 %v1341, 0.0
    %v1406 = vmax.f32 %v1342, 0.0
    %v1407 = vmax.f32 %v1343, 0.0
    %v1408 = vmax.f32 %v1344, 0.0
    %v1409 = vmax.f32 %v1345, 0.0
    %v1410 = vmax.f32 %v1346, 0.0
    %v1411 = vmax.f32 %v1347, 0.0
    %v1412 = vmax.f32 %v1348, 0.0
    %v1413 = vmax.f32 %v1349, 0.0
    %v1414 = vmax.f32 %v1350, 0.0
    %v1415 = vmax.f32 %v1351, 0.0
    %v1416 = vmax.f32 %v1352, 0.0
    %v1417 = vmax.f32 %v1353, 0.0
    %v1418 = vmax.f32 %v1354, 0.0
    %v1419 = vmax.f32 %v1355, 0.0
    %v1420 = vmax.f32 %v1356, 0.0
    %v1421 = vmax.f32 %v1357, 0.0
    %v1422 = vmax.f32 %v1358, 0.0
    %v1423 = vmax.f32 %v1359, 0.0
    %v1424 = vmax.f32 %v1360, 0.0
    %v1425 = vmax.f32 %v1361, 0.0
    %v1426 = vmax.f32 %v1362, 0.0
    %v1427 = vmax.f32 %v1363, 0.0
    %v1428 = vmax.f32 %v1364, 0.0
    %v1429 = vmax.f32 %v1365, 0.0
    %v1430 = vmax.f32 %v1366, 0.0
    %v1431 = vmax.f32 %v1367, 0.0
    %v1432 = vmax.f32 %v1368, 0.0
    %1433 = vst.msk [vmem:[#allocation2] sm:$0xff] %vm885, 0.0
    %1434 = vst.msk [vmem:[#allocation2 + $0x8] sm:$0xff] %vm885, 0.0
    %1435 = vst.msk [vmem:[#allocation2 + $0x10] sm:$0xff] %vm885, 0.0
    %1436 = vst.msk [vmem:[#allocation2 + $0x18] sm:$0xff] %vm885, 0.0
    %1437 = vst.msk [vmem:[#allocation2 + $0x20] sm:$0xff] %vm885, 0.0
    %1438 = vst.msk [vmem:[#allocation2 + $0x28] sm:$0xff] %vm885, 0.0
    %1439 = vst.msk [vmem:[#allocation2 + $0x30] sm:$0xff] %vm885, 0.0
    %1440 = vst.msk [vmem:[#allocation2 + $0x38] sm:$0xff] %vm885, 0.0
    %1441 = vst.msk [vmem:[#allocation2 + $0x40] sm:$0xff] %vm885, 0.0
    %1442 = vst.msk [vmem:[#allocation2 + $0x48] sm:$0xff] %vm885, 0.0
    %1443 = vst.msk [vmem:[#allocation2 + $0x50] sm:$0xff] %vm885, 0.0
    %1444 = vst.msk [vmem:[#allocation2 + $0x58] sm:$0xff] %vm885, 0.0
    %1445 = vst.msk [vmem:[#allocation2 + $0x60] sm:$0xff] %vm885, 0.0
    %1446 = vst.msk [vmem:[#allocation2 + $0x68] sm:$0xff] %vm885, 0.0
    %1447 = vst.msk [vmem:[#allocation2 + $0x70] sm:$0xff] %vm885, 0.0
    %1448 = vst.msk [vmem:[#allocation2 + $0x78] sm:$0xff] %vm885, 0.0
    %1449 = vst.msk [vmem:[#allocation2 + $0x80] sm:$0xff] %vm885, 0.0
    %1450 = vst.msk [vmem:[#allocation2 + $0x88] sm:$0xff] %vm885, 0.0
    %1451 = vst.msk [vmem:[#allocation2 + $0x90] sm:$0xff] %vm885, 0.0
    %1452 = vst.msk [vmem:[#allocation2 + $0x98] sm:$0xff] %vm885, 0.0
    %1453 = vst.msk [vmem:[#allocation2 + $0xa0] sm:$0xff] %vm885, 0.0
    %1454 = vst.msk [vmem:[#allocation2 + $0xa8] sm:$0xff] %vm885, 0.0
    %1455 = vst.msk [vmem:[#allocation2 + $0xb0] sm:$0xff] %vm885, 0.0
    %1456 = vst.msk [vmem:[#allocation2 + $0xb8] sm:$0xff] %vm885, 0.0
    %1457 = vst.msk [vmem:[#allocation2 + $0xc0] sm:$0xff] %vm885, 0.0
    %1458 = vst.msk [vmem:[#allocation2 + $0xc8] sm:$0xff] %vm885, 0.0
    %1459 = vst.msk [vmem:[#allocation2 + $0xd0] sm:$0xff] %vm885, 0.0
    %1460 = vst.msk [vmem:[#allocation2 + $0xd8] sm:$0xff] %vm885, 0.0
    %1461 = vst.msk [vmem:[#allocation2 + $0xe0] sm:$0xff] %vm885, 0.0
    %1462 = vst.msk [vmem:[#allocation2 + $0xe8] sm:$0xff] %vm885, 0.0
    %1463 = vst.msk [vmem:[#allocation2 + $0xf0] sm:$0xff] %vm885, 0.0
    %1464 = vst.msk [vmem:[#allocation2 + $0xf8] sm:$0xff] %vm885, 0.0
    %1465 = vst.msk [vmem:[#allocation2 + $0x100] sm:$0xff] %vm885, 0.0
    %1466 = vst.msk [vmem:[#allocation2 + $0x108] sm:$0xff] %vm885, 0.0
    %1467 = vst.msk [vmem:[#allocation2 + $0x110] sm:$0xff] %vm885, 0.0
    %1468 = vst.msk [vmem:[#allocation2 + $0x118] sm:$0xff] %vm885, 0.0
    %1469 = vst.msk [vmem:[#allocation2 + $0x120] sm:$0xff] %vm885, 0.0
    %1470 = vst.msk [vmem:[#allocation2 + $0x128] sm:$0xff] %vm885, 0.0
    %1471 = vst.msk [vmem:[#allocation2 + $0x130] sm:$0xff] %vm885, 0.0
    %1472 = vst.msk [vmem:[#allocation2 + $0x138] sm:$0xff] %vm885, 0.0
    %1473 = vst.msk [vmem:[#allocation2 + $0x140] sm:$0xff] %vm885, 0.0
    %1474 = vst.msk [vmem:[#allocation2 + $0x148] sm:$0xff] %vm885, 0.0
    %1475 = vst.msk [vmem:[#allocation2 + $0x150] sm:$0xff] %vm885, 0.0
    %1476 = vst.msk [vmem:[#allocation2 + $0x158] sm:$0xff] %vm885, 0.0
    %1477 = vst.msk [vmem:[#allocation2 + $0x160] sm:$0xff] %vm885, 0.0
    %1478 = vst.msk [vmem:[#allocation2 + $0x168] sm:$0xff] %vm885, 0.0
    %1479 = vst.msk [vmem:[#allocation2 + $0x170] sm:$0xff] %vm885, 0.0
    %1480 = vst.msk [vmem:[#allocation2 + $0x178] sm:$0xff] %vm885, 0.0
    %1481 = vst.msk [vmem:[#allocation2 + $0x180] sm:$0xff] %vm885, 0.0
    %1482 = vst.msk [vmem:[#allocation2 + $0x188] sm:$0xff] %vm885, 0.0
    %1483 = vst.msk [vmem:[#allocation2 + $0x190] sm:$0xff] %vm885, 0.0
    %1484 = vst.msk [vmem:[#allocation2 + $0x198] sm:$0xff] %vm885, 0.0
    %1485 = vst.msk [vmem:[#allocation2 + $0x1a0] sm:$0xff] %vm885, 0.0
    %1486 = vst.msk [vmem:[#allocation2 + $0x1a8] sm:$0xff] %vm885, 0.0
    %1487 = vst.msk [vmem:[#allocation2 + $0x1b0] sm:$0xff] %vm885, 0.0
    %1488 = vst.msk [vmem:[#allocation2 + $0x1b8] sm:$0xff] %vm885, 0.0
    %1489 = vst.msk [vmem:[#allocation2 + $0x1c0] sm:$0xff] %vm885, 0.0
    %1490 = vst.msk [vmem:[#allocation2 + $0x1c8] sm:$0xff] %vm885, 0.0
    %1491 = vst.msk [vmem:[#allocation2 + $0x1d0] sm:$0xff] %vm885, 0.0
    %1492 = vst.msk [vmem:[#allocation2 + $0x1d8] sm:$0xff] %vm885, 0.0
    %1493 = vst.msk [vmem:[#allocation2 + $0x1e0] sm:$0xff] %vm885, 0.0
    %1494 = vst.msk [vmem:[#allocation2 + $0x1e8] sm:$0xff] %vm885, 0.0
    %1495 = vst.msk [vmem:[#allocation2 + $0x1f0] sm:$0xff] %vm885, 0.0
    %1496 = vst.msk [vmem:[#allocation2 + $0x1f8] sm:$0xff] %vm885, 0.0
    %1497 = vst.msk [vmem:[#allocation2 + $0x200] sm:$0xff] %vm885, 0.0
    %1498 = vst.msk [vmem:[#allocation2 + $0x208] sm:$0xff] %vm885, 0.0
    %1499 = vst.msk [vmem:[#allocation2 + $0x210] sm:$0xff] %vm885, 0.0
    %1500 = vst.msk [vmem:[#allocation2 + $0x218] sm:$0xff] %vm885, 0.0
    %1501 = vst.msk [vmem:[#allocation2 + $0x220] sm:$0xff] %vm885, 0.0
    %1502 = vst.msk [vmem:[#allocation2 + $0x228] sm:$0xff] %vm885, 0.0
    %1503 = vst.msk [vmem:[#allocation2 + $0x230] sm:$0xff] %vm885, 0.0
    %1504 = vst.msk [vmem:[#allocation2 + $0x238] sm:$0xff] %vm885, 0.0
    %1505 = vst.msk [vmem:[#allocation2 + $0x240] sm:$0xff] %vm885, 0.0
    %1506 = vst.msk [vmem:[#allocation2 + $0x248] sm:$0xff] %vm885, 0.0
    %1507 = vst.msk [vmem:[#allocation2 + $0x250] sm:$0xff] %vm885, 0.0
    %1508 = vst.msk [vmem:[#allocation2 + $0x258] sm:$0xff] %vm885, 0.0
    %1509 = vst.msk [vmem:[#allocation2 + $0x260] sm:$0xff] %vm885, 0.0
    %1510 = vst.msk [vmem:[#allocation2 + $0x268] sm:$0xff] %vm885, 0.0
    %1511 = vst.msk [vmem:[#allocation2 + $0x270] sm:$0xff] %vm885, 0.0
    %1512 = vst.msk [vmem:[#allocation2 + $0x278] sm:$0xff] %vm885, 0.0
    %1513 = vst.msk [vmem:[#allocation2 + $0x280] sm:$0xff] %vm885, 0.0
    %1514 = vst.msk [vmem:[#allocation2 + $0x288] sm:$0xff] %vm885, 0.0
    %1515 = vst.msk [vmem:[#allocation2 + $0x290] sm:$0xff] %vm885, 0.0
    %1516 = vst.msk [vmem:[#allocation2 + $0x298] sm:$0xff] %vm885, 0.0
    %1517 = vst.msk [vmem:[#allocation2 + $0x2a0] sm:$0xff] %vm885, 0.0
    %1518 = vst.msk [vmem:[#allocation2 + $0x2a8] sm:$0xff] %vm885, 0.0
    %1519 = vst.msk [vmem:[#allocation2 + $0x2b0] sm:$0xff] %vm885, 0.0
    %1520 = vst.msk [vmem:[#allocation2 + $0x2b8] sm:$0xff] %vm885, 0.0
    %1521 = vst.msk [vmem:[#allocation2 + $0x2c0] sm:$0xff] %vm885, 0.0
    %1522 = vst.msk [vmem:[#allocation2 + $0x33] sm:$0xff] %vm885, %v1369
    %1523 = vst.msk [vmem:[#allocation2 + $0x3b] sm:$0xff] %vm885, %v1370
    %1524 = vst.msk [vmem:[#allocation2 + $0x45] sm:$0xff] %vm885, %v1371
    %1525 = vst.msk [vmem:[#allocation2 + $0x4d] sm:$0xff] %vm885, %v1372
    %1526 = vst.msk [vmem:[#allocation2 + $0x57] sm:$0xff] %vm885, %v1373
    %1527 = vst.msk [vmem:[#allocation2 + $0x5f] sm:$0xff] %vm885, %v1374
    %1528 = vst.msk [vmem:[#allocation2 + $0x69] sm:$0xff] %vm885, %v1375
    %1529 = vst.msk [vmem:[#allocation2 + $0x71] sm:$0xff] %vm885, %v1376
    %1530 = vst.msk [vmem:[#allocation2 + $0x7b] sm:$0xff] %vm885, %v1377
    %1531 = vst.msk [vmem:[#allocation2 + $0x83] sm:$0xff] %vm885, %v1378
    %1532 = vst.msk [vmem:[#allocation2 + $0x8d] sm:$0xff] %vm885, %v1379
    %1533 = vst.msk [vmem:[#allocation2 + $0x95] sm:$0xff] %vm885, %v1380
    %1534 = vst.msk [vmem:[#allocation2 + $0x9f] sm:$0xff] %vm885, %v1381
    %1535 = vst.msk [vmem:[#allocation2 + $0xa7] sm:$0xff] %vm885, %v1382
    %1536 = vst.msk [vmem:[#allocation2 + $0xb1] sm:$0xff] %vm885, %v1383
    %1537 = vst.msk [vmem:[#allocation2 + $0xb9] sm:$0xff] %vm885, %v1384
    %1538 = vst.msk [vmem:[#allocation2 + $0xc3] sm:$0xff] %vm885, %v1385
    %1539 = vst.msk [vmem:[#allocation2 + $0xcb] sm:$0xff] %vm885, %v1386
    %1540 = vst.msk [vmem:[#allocation2 + $0xd5] sm:$0xff] %vm885, %v1387
    %1541 = vst.msk [vmem:[#allocation2 + $0xdd] sm:$0xff] %vm885, %v1388
    %1542 = vst.msk [vmem:[#allocation2 + $0xe7] sm:$0xff] %vm885, %v1389
    %1543 = vst.msk [vmem:[#allocation2 + $0xef] sm:$0xff] %vm885, %v1390
    %1544 = vst.msk [vmem:[#allocation2 + $0xf9] sm:$0xff] %vm885, %v1391
    %1545 = vst.msk [vmem:[#allocation2 + $0x101] sm:$0xff] %vm885, %v1392
    %1546 = vst.msk [vmem:[#allocation2 + $0x10b] sm:$0xff] %vm885, %v1393
    %1547 = vst.msk [vmem:[#allocation2 + $0x113] sm:$0xff] %vm885, %v1394
    %1548 = vst.msk [vmem:[#allocation2 + $0x11d] sm:$0xff] %vm885, %v1395
    %1549 = vst.msk [vmem:[#allocation2 + $0x125] sm:$0xff] %vm885, %v1396
    %1550 = vst.msk [vmem:[#allocation2 + $0x12f] sm:$0xff] %vm885, %v1397
    %1551 = vst.msk [vmem:[#allocation2 + $0x137] sm:$0xff] %vm885, %v1398
    %1552 = vst.msk [vmem:[#allocation2 + $0x141] sm:$0xff] %vm885, %v1399
    %1553 = vst.msk [vmem:[#allocation2 + $0x149] sm:$0xff] %vm885, %v1400
    %1554 = vst.msk [vmem:[#allocation2 + $0x177] sm:$0xff] %vm885, %v1401
    %1555 = vst.msk [vmem:[#allocation2 + $0x17f] sm:$0xff] %vm885, %v1402
    %1556 = vst.msk [vmem:[#allocation2 + $0x189] sm:$0xff] %vm885, %v1403
    %1557 = vst.msk [vmem:[#allocation2 + $0x191] sm:$0xff] %vm885, %v1404
    %1558 = vst.msk [vmem:[#allocation2 + $0x19b] sm:$0xff] %vm885, %v1405
    %1559 = vst.msk [vmem:[#allocation2 + $0x1a3] sm:$0xff] %vm885, %v1406
    %1560 = vst.msk [vmem:[#allocation2 + $0x1ad] sm:$0xff] %vm885, %v1407
    %1561 = vst.msk [vmem:[#allocation2 + $0x1b5] sm:$0xff] %vm885, %v1408
    %1562 = vst.msk [vmem:[#allocation2 + $0x1bf] sm:$0xff] %vm885, %v1409
    %1563 = vst.msk [vmem:[#allocation2 + $0x1c7] sm:$0xff] %vm885, %v1410
    %1564 = vst.msk [vmem:[#allocation2 + $0x1d1] sm:$0xff] %vm885, %v1411
    %1565 = vst.msk [vmem:[#allocation2 + $0x1d9] sm:$0xff] %vm885, %v1412
    %1566 = vst.msk [vmem:[#allocation2 + $0x1e3] sm:$0xff] %vm885, %v1413
    %1567 = vst.msk [vmem:[#allocation2 + $0x1eb] sm:$0xff] %vm885, %v1414
    %1568 = vst.msk [vmem:[#allocation2 + $0x1f5] sm:$0xff] %vm885, %v1415
    %1569 = vst.msk [vmem:[#allocation2 + $0x1fd] sm:$0xff] %vm885, %v1416
    %1570 = vst.msk [vmem:[#allocation2 + $0x207] sm:$0xff] %vm885, %v1417
    %1571 = vst.msk [vmem:[#allocation2 + $0x20f] sm:$0xff] %vm885, %v1418
    %1572 = vst.msk [vmem:[#allocation2 + $0x219] sm:$0xff] %vm885, %v1419
    %1573 = vst.msk [vmem:[#allocation2 + $0x221] sm:$0xff] %vm885, %v1420
    %1574 = vst.msk [vmem:[#allocation2 + $0x22b] sm:$0xff] %vm885, %v1421
    %1575 = vst.msk [vmem:[#allocation2 + $0x233] sm:$0xff] %vm885, %v1422
    %1576 = vst.msk [vmem:[#allocation2 + $0x23d] sm:$0xff] %vm885, %v1423
    %1577 = vst.msk [vmem:[#allocation2 + $0x245] sm:$0xff] %vm885, %v1424
    %1578 = vst.msk [vmem:[#allocation2 + $0x24f] sm:$0xff] %vm885, %v1425
    %1579 = vst.msk [vmem:[#allocation2 + $0x257] sm:$0xff] %vm885, %v1426
    %1580 = vst.msk [vmem:[#allocation2 + $0x261] sm:$0xff] %vm885, %v1427
    %1581 = vst.msk [vmem:[#allocation2 + $0x269] sm:$0xff] %vm885, %v1428
    %1582 = vst.msk [vmem:[#allocation2 + $0x273] sm:$0xff] %vm885, %v1429
    %1583 = vst.msk [vmem:[#allocation2 + $0x27b] sm:$0xff] %vm885, %v1430
    %1584 = vst.msk [vmem:[#allocation2 + $0x285] sm:$0xff] %vm885, %v1431
    %1585 = vst.msk [vmem:[#allocation2 + $0x28d] sm:$0xff] %vm885, %v1432
    %v1586 = vld [vmem:[#allocation2 + $0x1d] sm:$0xff]
    %v1587 = vld [vmem:[#allocation2 + $0x25] sm:$0xff]
    %v1588 = vld [vmem:[#allocation2 + $0x2d] sm:$0xff]
    %v1589 = vld [vmem:[#allocation2 + $0x3d] sm:$0xff]
    %v1590 = vld [vmem:[#allocation2 + $0x45] sm:$0xff]
    %v1591 = vld [vmem:[#allocation2 + $0x4d] sm:$0xff]
    %v1592 = vld [vmem:[#allocation2 + $0x65] sm:$0xff]
    %v1593 = vld [vmem:[#allocation2 + $0x6d] sm:$0xff]
    %v1594 = vld [vmem:[#allocation2 + $0x75] sm:$0xff]
    %v1595 = vld [vmem:[#allocation2 + $0x85] sm:$0xff]
    %v1596 = vld [vmem:[#allocation2 + $0x8d] sm:$0xff]
    %v1597 = vld [vmem:[#allocation2 + $0x95] sm:$0xff]
    %v1598 = vld [vmem:[#allocation2 + $0xad] sm:$0xff]
    %v1599 = vld [vmem:[#allocation2 + $0xb5] sm:$0xff]
    %v1600 = vld [vmem:[#allocation2 + $0xbd] sm:$0xff]
    %v1601 = vld [vmem:[#allocation2 + $0xcd] sm:$0xff]
    %v1602 = vld [vmem:[#allocation2 + $0xd5] sm:$0xff]
    %v1603 = vld [vmem:[#allocation2 + $0xdd] sm:$0xff]
    %v1604 = vld [vmem:[#allocation2 + $0xf5] sm:$0xff]
    %v1605 = vld [vmem:[#allocation2 + $0xfd] sm:$0xff]
    %v1606 = vld [vmem:[#allocation2 + $0x105] sm:$0xff]
    %v1607 = vld [vmem:[#allocation2 + $0x115] sm:$0xff]
    %v1608 = vld [vmem:[#allocation2 + $0x11d] sm:$0xff]
    %v1609 = vld [vmem:[#allocation2 + $0x125] sm:$0xff]
    %v1610 = vld [vmem:[#allocation2 + $0x15d] sm:$0xff]
    %v1611 = vld [vmem:[#allocation2 + $0x165] sm:$0xff]
    %v1612 = vld [vmem:[#allocation2 + $0x16d] sm:$0xff]
    %v1613 = vld [vmem:[#allocation2 + $0x185] sm:$0xff]
    %v1614 = vld [vmem:[#allocation2 + $0x18d] sm:$0xff]
    %v1615 = vld [vmem:[#allocation2 + $0x195] sm:$0xff]
    %v1616 = vld [vmem:[#allocation2 + $0x1a5] sm:$0xff]
    %v1617 = vld [vmem:[#allocation2 + $0x1ad] sm:$0xff]
    %v1618 = vld [vmem:[#allocation2 + $0x1b5] sm:$0xff]
    %v1619 = vld [vmem:[#allocation2 + $0x1cd] sm:$0xff]
    %v1620 = vld [vmem:[#allocation2 + $0x1d5] sm:$0xff]
    %v1621 = vld [vmem:[#allocation2 + $0x1dd] sm:$0xff]
    %v1622 = vld [vmem:[#allocation2 + $0x1ed] sm:$0xff]
    %v1623 = vld [vmem:[#allocation2 + $0x1f5] sm:$0xff]
    %v1624 = vld [vmem:[#allocation2 + $0x1fd] sm:$0xff]
    %v1625 = vld [vmem:[#allocation2 + $0x215] sm:$0xff]
    %v1626 = vld [vmem:[#allocation2 + $0x21d] sm:$0xff]
    %v1627 = vld [vmem:[#allocation2 + $0x225] sm:$0xff]
    %v1628 = vld [vmem:[#allocation2 + $0x235] sm:$0xff]
    %v1629 = vld [vmem:[#allocation2 + $0x23d] sm:$0xff]
    %v1630 = vld [vmem:[#allocation2 + $0x245] sm:$0xff]
    %v1631 = vld [vmem:[#allocation2 + $0x25d] sm:$0xff]
    %v1632 = vld [vmem:[#allocation2 + $0x265] sm:$0xff]
    %v1633 = vld [vmem:[#allocation2 + $0x26d] sm:$0xff]
    %v1634 = vld [vmem:[#allocation2 + $0x1e] sm:$0xff]
    %v1635 = vld [vmem:[#allocation2 + $0x26] sm:$0xff]
    %v1636 = vld [vmem:[#allocation2 + $0x2e] sm:$0xff]
    %v1637 = vld [vmem:[#allocation2 + $0x3e] sm:$0xff]
    %v1638 = vld [vmem:[#allocation2 + $0x46] sm:$0xff]
    %v1639 = vld [vmem:[#allocation2 + $0x4e] sm:$0xff]
    %v1640 = vld [vmem:[#allocation2 + $0x66] sm:$0xff]
    %v1641 = vld [vmem:[#allocation2 + $0x6e] sm:$0xff]
    %v1642 = vld [vmem:[#allocation2 + $0x76] sm:$0xff]
    %v1643 = vld [vmem:[#allocation2 + $0x86] sm:$0xff]
    %v1644 = vld [vmem:[#allocation2 + $0x8e] sm:$0xff]
    %v1645 = vld [vmem:[#allocation2 + $0x96] sm:$0xff]
    %v1646 = vld [vmem:[#allocation2 + $0xae] sm:$0xff]
    %v1647 = vld [vmem:[#allocation2 + $0xb6] sm:$0xff]
    %v1648 = vld [vmem:[#allocation2 + $0xbe] sm:$0xff]
    %v1649 = vld [vmem:[#allocation2 + $0xce] sm:$0xff]
    %v1650 = vld [vmem:[#allocation2 + $0xd6] sm:$0xff]
    %v1651 = vld [vmem:[#allocation2 + $0xde] sm:$0xff]
    %v1652 = vld [vmem:[#allocation2 + $0xf6] sm:$0xff]
    %v1653 = vld [vmem:[#allocation2 + $0xfe] sm:$0xff]
    %v1654 = vld [vmem:[#allocation2 + $0x106] sm:$0xff]
    %v1655 = vld [vmem:[#allocation2 + $0x116] sm:$0xff]
    %v1656 = vld [vmem:[#allocation2 + $0x11e] sm:$0xff]
    %v1657 = vld [vmem:[#allocation2 + $0x126] sm:$0xff]
    %v1658 = vld [vmem:[#allocation2 + $0x15e] sm:$0xff]
    %v1659 = vld [vmem:[#allocation2 + $0x166] sm:$0xff]
    %v1660 = vld [vmem:[#allocation2 + $0x16e] sm:$0xff]
    %v1661 = vld [vmem:[#allocation2 + $0x186] sm:$0xff]
    %v1662 = vld [vmem:[#allocation2 + $0x18e] sm:$0xff]
    %v1663 = vld [vmem:[#allocation2 + $0x196] sm:$0xff]
    %v1664 = vld [vmem:[#allocation2 + $0x1a6] sm:$0xff]
    %v1665 = vld [vmem:[#allocation2 + $0x1ae] sm:$0xff]
    %v1666 = vld [vmem:[#allocation2 + $0x1b6] sm:$0xff]
    %v1667 = vld [vmem:[#allocation2 + $0x1ce] sm:$0xff]
    %v1668 = vld [vmem:[#allocation2 + $0x1d6] sm:$0xff]
    %v1669 = vld [vmem:[#allocation2 + $0x1de] sm:$0xff]
    %v1670 = vld [vmem:[#allocation2 + $0x1ee] sm:$0xff]
    %v1671 = vld [vmem:[#allocation2 + $0x1f6] sm:$0xff]
    %v1672 = vld [vmem:[#allocation2 + $0x1fe] sm:$0xff]
    %v1673 = vld [vmem:[#allocation2 + $0x216] sm:$0xff]
    %v1674 = vld [vmem:[#allocation2 + $0x21e] sm:$0xff]
    %v1675 = vld [vmem:[#allocation2 + $0x226] sm:$0xff]
    %v1676 = vld [vmem:[#allocation2 + $0x236] sm:$0xff]
    %v1677 = vld [vmem:[#allocation2 + $0x23e] sm:$0xff]
    %v1678 = vld [vmem:[#allocation2 + $0x246] sm:$0xff]
    %v1679 = vld [vmem:[#allocation2 + $0x25e] sm:$0xff]
    %v1680 = vld [vmem:[#allocation2 + $0x266] sm:$0xff]
    %v1681 = vld [vmem:[#allocation2 + $0x26e] sm:$0xff]
    %v1682 = vmax.f32 %v1586, %v1634
    %v1683 = vmax.f32 %v1587, %v1635
    %v1684 = vmax.f32 %v1588, %v1636
    %v1685 = vmax.f32 %v1589, %v1637
    %v1686 = vmax.f32 %v1590, %v1638
    %v1687 = vmax.f32 %v1591, %v1639
    %v1688 = vmax.f32 %v1592, %v1640
    %v1689 = vmax.f32 %v1593, %v1641
    %v1690 = vmax.f32 %v1594, %v1642
    %v1691 = vmax.f32 %v1595, %v1643
    %v1692 = vmax.f32 %v1596, %v1644
    %v1693 = vmax.f32 %v1597, %v1645
    %v1694 = vmax.f32 %v1598, %v1646
    %v1695 = vmax.f32 %v1599, %v1647
    %v1696 = vmax.f32 %v1600, %v1648
    %v1697 = vmax.f32 %v1601, %v1649
    %v1698 = vmax.f32 %v1602, %v1650
    %v1699 = vmax.f32 %v1603, %v1651
    %v1700 = vmax.f32 %v1604, %v1652
    %v1701 = vmax.f32 %v1605, %v1653
    %v1702 = vmax.f32 %v1606, %v1654
    %v1703 = vmax.f32 %v1607, %v1655
    %v1704 = vmax.f32 %v1608, %v1656
    %v1705 = vmax.f32 %v1609, %v1657
    %v1706 = vmax.f32 %v1610, %v1658
    %v1707 = vmax.f32 %v1611, %v1659
    %v1708 = vmax.f32 %v1612, %v1660
    %v1709 = vmax.f32 %v1613, %v1661
    %v1710 = vmax.f32 %v1614, %v1662
    %v1711 = vmax.f32 %v1615, %v1663
    %v1712 = vmax.f32 %v1616, %v1664
    %v1713 = vmax.f32 %v1617, %v1665
    %v1714 = vmax.f32 %v1618, %v1666
    %v1715 = vmax.f32 %v1619, %v1667
    %v1716 = vmax.f32 %v1620, %v1668
    %v1717 = vmax.f32 %v1621, %v1669
    %v1718 = vmax.f32 %v1622, %v1670
    %v1719 = vmax.f32 %v1623, %v1671
    %v1720 = vmax.f32 %v1624, %v1672
    %v1721 = vmax.f32 %v1625, %v1673
    %v1722 = vmax.f32 %v1626, %v1674
    %v1723 = vmax.f32 %v1627, %v1675
    %v1724 = vmax.f32 %v1628, %v1676
    %v1725 = vmax.f32 %v1629, %v1677
    %v1726 = vmax.f32 %v1630, %v1678
    %v1727 = vmax.f32 %v1631, %v1679
    %v1728 = vmax.f32 %v1632, %v1680
    %v1729 = vmax.f32 %v1633, %v1681
    %v1730 = vld [vmem:[#allocation2 + $0x1f] sm:$0xff]
    %v1731 = vld [vmem:[#allocation2 + $0x27] sm:$0xff]
    %v1732 = vld [vmem:[#allocation2 + $0x2f] sm:$0xff]
    %v1733 = vld [vmem:[#allocation2 + $0x3f] sm:$0xff]
    %v1734 = vld [vmem:[#allocation2 + $0x47] sm:$0xff]
    %v1735 = vld [vmem:[#allocation2 + $0x4f] sm:$0xff]
    %v1736 = vld [vmem:[#allocation2 + $0x67] sm:$0xff]
    %v1737 = vld [vmem:[#allocation2 + $0x6f] sm:$0xff]
    %v1738 = vld [vmem:[#allocation2 + $0x77] sm:$0xff]
    %v1739 = vld [vmem:[#allocation2 + $0x87] sm:$0xff]
    %v1740 = vld [vmem:[#allocation2 + $0x8f] sm:$0xff]
    %v1741 = vld [vmem:[#allocation2 + $0x97] sm:$0xff]
    %v1742 = vld [vmem:[#allocation2 + $0xaf] sm:$0xff]
    %v1743 = vld [vmem:[#allocation2 + $0xb7] sm:$0xff]
    %v1744 = vld [vmem:[#allocation2 + $0xbf] sm:$0xff]
    %v1745 = vld [vmem:[#allocation2 + $0xcf] sm:$0xff]
    %v1746 = vld [vmem:[#allocation2 + $0xd7] sm:$0xff]
    %v1747 = vld [vmem:[#allocation2 + $0xdf] sm:$0xff]
    %v1748 = vld [vmem:[#allocation2 + $0xf7] sm:$0xff]
    %v1749 = vld [vmem:[#allocation2 + $0xff] sm:$0xff]
    %v1750 = vld [vmem:[#allocation2 + $0x107] sm:$0xff]
    %v1751 = vld [vmem:[#allocation2 + $0x117] sm:$0xff]
    %v1752 = vld [vmem:[#allocation2 + $0x11f] sm:$0xff]
    %v1753 = vld [vmem:[#allocation2 + $0x127] sm:$0xff]
    %v1754 = vld [vmem:[#allocation2 + $0x15f] sm:$0xff]
    %v1755 = vld [vmem:[#allocation2 + $0x167] sm:$0xff]
    %v1756 = vld [vmem:[#allocation2 + $0x16f] sm:$0xff]
    %v1757 = vld [vmem:[#allocation2 + $0x187] sm:$0xff]
    %v1758 = vld [vmem:[#allocation2 + $0x18f] sm:$0xff]
    %v1759 = vld [vmem:[#allocation2 + $0x197] sm:$0xff]
    %v1760 = vld [vmem:[#allocation2 + $0x1a7] sm:$0xff]
    %v1761 = vld [vmem:[#allocation2 + $0x1af] sm:$0xff]
    %v1762 = vld [vmem:[#allocation2 + $0x1b7] sm:$0xff]
    %v1763 = vld [vmem:[#allocation2 + $0x1cf] sm:$0xff]
    %v1764 = vld [vmem:[#allocation2 + $0x1d7] sm:$0xff]
    %v1765 = vld [vmem:[#allocation2 + $0x1df] sm:$0xff]
    %v1766 = vld [vmem:[#allocation2 + $0x1ef] sm:$0xff]
    %v1767 = vld [vmem:[#allocation2 + $0x1f7] sm:$0xff]
    %v1768 = vld [vmem:[#allocation2 + $0x1ff] sm:$0xff]
    %v1769 = vld [vmem:[#allocation2 + $0x217] sm:$0xff]
    %v1770 = vld [vmem:[#allocation2 + $0x21f] sm:$0xff]
    %v1771 = vld [vmem:[#allocation2 + $0x227] sm:$0xff]
    %v1772 = vld [vmem:[#allocation2 + $0x237] sm:$0xff]
    %v1773 = vld [vmem:[#allocation2 + $0x23f] sm:$0xff]
    %v1774 = vld [vmem:[#allocation2 + $0x247] sm:$0xff]
    %v1775 = vld [vmem:[#allocation2 + $0x25f] sm:$0xff]
    %v1776 = vld [vmem:[#allocation2 + $0x267] sm:$0xff]
    %v1777 = vld [vmem:[#allocation2 + $0x26f] sm:$0xff]
    %v1778 = vmax.f32 %v1682, %v1730
    %v1779 = vmax.f32 %v1683, %v1731
    %v1780 = vmax.f32 %v1684, %v1732
    %v1781 = vmax.f32 %v1685, %v1733
    %v1782 = vmax.f32 %v1686, %v1734
    %v1783 = vmax.f32 %v1687, %v1735
    %v1784 = vmax.f32 %v1688, %v1736
    %v1785 = vmax.f32 %v1689, %v1737
    %v1786 = vmax.f32 %v1690, %v1738
    %v1787 = vmax.f32 %v1691, %v1739
    %v1788 = vmax.f32 %v1692, %v1740
    %v1789 = vmax.f32 %v1693, %v1741
    %v1790 = vmax.f32 %v1694, %v1742
    %v1791 = vmax.f32 %v1695, %v1743
    %v1792 = vmax.f32 %v1696, %v1744
    %v1793 = vmax.f32 %v1697, %v1745
    %v1794 = vmax.f32 %v1698, %v1746
    %v1795 = vmax.f32 %v1699, %v1747
    %v1796 = vmax.f32 %v1700, %v1748
    %v1797 = vmax.f32 %v1701, %v1749
    %v1798 = vmax.f32 %v1702, %v1750
    %v1799 = vmax.f32 %v1703, %v1751
    %v1800 = vmax.f32 %v1704, %v1752
    %v1801 = vmax.f32 %v1705, %v1753
    %v1802 = vmax.f32 %v1706, %v1754
    %v1803 = vmax.f32 %v1707, %v1755
    %v1804 = vmax.f32 %v1708, %v1756
    %v1805 = vmax.f32 %v1709, %v1757
    %v1806 = vmax.f32 %v1710, %v1758
    %v1807 = vmax.f32 %v1711, %v1759
    %v1808 = vmax.f32 %v1712, %v1760
    %v1809 = vmax.f32 %v1713, %v1761
    %v1810 = vmax.f32 %v1714, %v1762
    %v1811 = vmax.f32 %v1715, %v1763
    %v1812 = vmax.f32 %v1716, %v1764
    %v1813 = vmax.f32 %v1717, %v1765
    %v1814 = vmax.f32 %v1718, %v1766
    %v1815 = vmax.f32 %v1719, %v1767
    %v1816 = vmax.f32 %v1720, %v1768
    %v1817 = vmax.f32 %v1721, %v1769
    %v1818 = vmax.f32 %v1722, %v1770
    %v1819 = vmax.f32 %v1723, %v1771
    %v1820 = vmax.f32 %v1724, %v1772
    %v1821 = vmax.f32 %v1725, %v1773
    %v1822 = vmax.f32 %v1726, %v1774
    %v1823 = vmax.f32 %v1727, %v1775
    %v1824 = vmax.f32 %v1728, %v1776
    %v1825 = vmax.f32 %v1729, %v1777
    %v1826 = vld [vmem:[#allocation2 + $0x37] sm:$0xff]
    %v1827 = vld [vmem:[#allocation2 + $0x57] sm:$0xff]
    %v1828 = vld [vmem:[#allocation2 + $0x5f] sm:$0xff]
    %v1829 = vld [vmem:[#allocation2 + $0x7f] sm:$0xff]
    %v1830 = vld [vmem:[#allocation2 + $0x9f] sm:$0xff]
    %v1831 = vld [vmem:[#allocation2 + $0xa7] sm:$0xff]
    %v1832 = vld [vmem:[#allocation2 + $0xc7] sm:$0xff]
    %v1833 = vld [vmem:[#allocation2 + $0xe7] sm:$0xff]
    %v1834 = vld [vmem:[#allocation2 + $0xef] sm:$0xff]
    %v1835 = vld [vmem:[#allocation2 + $0x10f] sm:$0xff]
    %v1836 = vld [vmem:[#allocation2 + $0x12f] sm:$0xff]
    %v1837 = vld [vmem:[#allocation2 + $0x137] sm:$0xff]
    %v1838 = vld [vmem:[#allocation2 + $0x177] sm:$0xff]
    %v1839 = vld [vmem:[#allocation2 + $0x17f] sm:$0xff]
    %v1840 = vld [vmem:[#allocation2 + $0x19f] sm:$0xff]
    %v1841 = vld [vmem:[#allocation2 + $0x1bf] sm:$0xff]
    %v1842 = vld [vmem:[#allocation2 + $0x1c7] sm:$0xff]
    %v1843 = vld [vmem:[#allocation2 + $0x1e7] sm:$0xff]
    %v1844 = vld [vmem:[#allocation2 + $0x207] sm:$0xff]
    %v1845 = vld [vmem:[#allocation2 + $0x20f] sm:$0xff]
    %v1846 = vld [vmem:[#allocation2 + $0x22f] sm:$0xff]
    %v1847 = vld [vmem:[#allocation2 + $0x24f] sm:$0xff]
    %v1848 = vld [vmem:[#allocation2 + $0x257] sm:$0xff]
    %v1849 = vld [vmem:[#allocation2 + $0x277] sm:$0xff]
    %v1850 = vld [vmem:[#allocation2 + $0x27f] sm:$0xff]
    %v1851 = vmax.f32 %v1778, %v1732
    %v1852 = vmax.f32 %v1779, %v1826
    %v1853 = vmax.f32 %v1780, %v1733
    %v1854 = vmax.f32 %v1781, %v1735
    %v1855 = vmax.f32 %v1782, %v1827
    %v1856 = vmax.f32 %v1783, %v1828
    %v1857 = vmax.f32 %v1784, %v1738
    %v1858 = vmax.f32 %v1785, %v1829
    %v1859 = vmax.f32 %v1786, %v1739
    %v1860 = vmax.f32 %v1787, %v1741
    %v1861 = vmax.f32 %v1788, %v1830
    %v1862 = vmax.f32 %v1789, %v1831
    %v1863 = vmax.f32 %v1790, %v1744
    %v1864 = vmax.f32 %v1791, %v1832
    %v1865 = vmax.f32 %v1792, %v1745
    %v1866 = vmax.f32 %v1793, %v1747
    %v1867 = vmax.f32 %v1794, %v1833
    %v1868 = vmax.f32 %v1795, %v1834
    %v1869 = vmax.f32 %v1796, %v1750
    %v1870 = vmax.f32 %v1797, %v1835
    %v1871 = vmax.f32 %v1798, %v1751
    %v1872 = vmax.f32 %v1799, %v1753
    %v1873 = vmax.f32 %v1800, %v1836
    %v1874 = vmax.f32 %v1801, %v1837
    %v1875 = vmax.f32 %v1802, %v1756
    %v1876 = vmax.f32 %v1803, %v1838
    %v1877 = vmax.f32 %v1804, %v1839
    %v1878 = vmax.f32 %v1805, %v1759
    %v1879 = vmax.f32 %v1806, %v1840
    %v1880 = vmax.f32 %v1807, %v1760
    %v1881 = vmax.f32 %v1808, %v1762
    %v1882 = vmax.f32 %v1809, %v1841
    %v1883 = vmax.f32 %v1810, %v1842
    %v1884 = vmax.f32 %v1811, %v1765
    %v1885 = vmax.f32 %v1812, %v1843
    %v1886 = vmax.f32 %v1813, %v1766
    %v1887 = vmax.f32 %v1814, %v1768
    %v1888 = vmax.f32 %v1815, %v1844
    %v1889 = vmax.f32 %v1816, %v1845
    %v1890 = vmax.f32 %v1817, %v1771
    %v1891 = vmax.f32 %v1818, %v1846
    %v1892 = vmax.f32 %v1819, %v1772
    %v1893 = vmax.f32 %v1820, %v1774
    %v1894 = vmax.f32 %v1821, %v1847
    %v1895 = vmax.f32 %v1822, %v1848
    %v1896 = vmax.f32 %v1823, %v1777
    %v1897 = vmax.f32 %v1824, %v1849
    %v1898 = vmax.f32 %v1825, %v1850
    %v1899 = vld [vmem:[#allocation2 + $0x30] sm:$0xff]
    %v1900 = vld [vmem:[#allocation2 + $0x38] sm:$0xff]
    %v1901 = vld [vmem:[#allocation2 + $0x40] sm:$0xff]
    %v1902 = vld [vmem:[#allocation2 + $0x50] sm:$0xff]
    %v1903 = vld [vmem:[#allocation2 + $0x58] sm:$0xff]
    %v1904 = vld [vmem:[#allocation2 + $0x60] sm:$0xff]
    %v1905 = vld [vmem:[#allocation2 + $0x78] sm:$0xff]
    %v1906 = vld [vmem:[#allocation2 + $0x80] sm:$0xff]
    %v1907 = vld [vmem:[#allocation2 + $0x88] sm:$0xff]
    %v1908 = vld [vmem:[#allocation2 + $0x98] sm:$0xff]
    %v1909 = vld [vmem:[#allocation2 + $0xa0] sm:$0xff]
    %v1910 = vld [vmem:[#allocation2 + $0xa8] sm:$0xff]
    %v1911 = vld [vmem:[#allocation2 + $0xc0] sm:$0xff]
    %v1912 = vld [vmem:[#allocation2 + $0xc8] sm:$0xff]
    %v1913 = vld [vmem:[#allocation2 + $0xd0] sm:$0xff]
    %v1914 = vld [vmem:[#allocation2 + $0xe0] sm:$0xff]
    %v1915 = vld [vmem:[#allocation2 + $0xe8] sm:$0xff]
    %v1916 = vld [vmem:[#allocation2 + $0xf0] sm:$0xff]
    %v1917 = vld [vmem:[#allocation2 + $0x108] sm:$0xff]
    %v1918 = vld [vmem:[#allocation2 + $0x110] sm:$0xff]
    %v1919 = vld [vmem:[#allocation2 + $0x118] sm:$0xff]
    %v1920 = vld [vmem:[#allocation2 + $0x128] sm:$0xff]
    %v1921 = vld [vmem:[#allocation2 + $0x130] sm:$0xff]
    %v1922 = vld [vmem:[#allocation2 + $0x138] sm:$0xff]
    %v1923 = vld [vmem:[#allocation2 + $0x170] sm:$0xff]
    %v1924 = vld [vmem:[#allocation2 + $0x178] sm:$0xff]
    %v1925 = vld [vmem:[#allocation2 + $0x180] sm:$0xff]
    %v1926 = vld [vmem:[#allocation2 + $0x198] sm:$0xff]
    %v1927 = vld [vmem:[#allocation2 + $0x1a0] sm:$0xff]
    %v1928 = vld [vmem:[#allocation2 + $0x1a8] sm:$0xff]
    %v1929 = vld [vmem:[#allocation2 + $0x1b8] sm:$0xff]
    %v1930 = vld [vmem:[#allocation2 + $0x1c0] sm:$0xff]
    %v1931 = vld [vmem:[#allocation2 + $0x1c8] sm:$0xff]
    %v1932 = vld [vmem:[#allocation2 + $0x1e0] sm:$0xff]
    %v1933 = vld [vmem:[#allocation2 + $0x1e8] sm:$0xff]
    %v1934 = vld [vmem:[#allocation2 + $0x1f0] sm:$0xff]
    %v1935 = vld [vmem:[#allocation2 + $0x200] sm:$0xff]
    %v1936 = vld [vmem:[#allocation2 + $0x208] sm:$0xff]
    %v1937 = vld [vmem:[#allocation2 + $0x210] sm:$0xff]
    %v1938 = vld [vmem:[#allocation2 + $0x228] sm:$0xff]
    %v1939 = vld [vmem:[#allocation2 + $0x230] sm:$0xff]
    %v1940 = vld [vmem:[#allocation2 + $0x238] sm:$0xff]
    %v1941 = vld [vmem:[#allocation2 + $0x248] sm:$0xff]
    %v1942 = vld [vmem:[#allocation2 + $0x250] sm:$0xff]
    %v1943 = vld [vmem:[#allocation2 + $0x258] sm:$0xff]
    %v1944 = vld [vmem:[#allocation2 + $0x270] sm:$0xff]
    %v1945 = vld [vmem:[#allocation2 + $0x278] sm:$0xff]
    %v1946 = vld [vmem:[#allocation2 + $0x280] sm:$0xff]
    %v1947 = vmax.f32 %v1851, %v1899
    %v1948 = vmax.f32 %v1852, %v1900
    %v1949 = vmax.f32 %v1853, %v1901
    %v1950 = vmax.f32 %v1854, %v1902
    %v1951 = vmax.f32 %v1855, %v1903
    %v1952 = vmax.f32 %v1856, %v1904
    %v1953 = vmax.f32 %v1857, %v1905
    %v1954 = vmax.f32 %v1858, %v1906
    %v1955 = vmax.f32 %v1859, %v1907
    %v1956 = vmax.f32 %v1860, %v1908
    %v1957 = vmax.f32 %v1861, %v1909
    %v1958 = vmax.f32 %v1862, %v1910
    %v1959 = vmax.f32 %v1863, %v1911
    %v1960 = vmax.f32 %v1864, %v1912
    %v1961 = vmax.f32 %v1865, %v1913
    %v1962 = vmax.f32 %v1866, %v1914
    %v1963 = vmax.f32 %v1867, %v1915
    %v1964 = vmax.f32 %v1868, %v1916
    %v1965 = vmax.f32 %v1869, %v1917
    %v1966 = vmax.f32 %v1870, %v1918
    %v1967 = vmax.f32 %v1871, %v1919
    %v1968 = vmax.f32 %v1872, %v1920
    %v1969 = vmax.f32 %v1873, %v1921
    %v1970 = vmax.f32 %v1874, %v1922
    %v1971 = vmax.f32 %v1875, %v1923
    %v1972 = vmax.f32 %v1876, %v1924
    %v1973 = vmax.f32 %v1877, %v1925
    %v1974 = vmax.f32 %v1878, %v1926
    %v1975 = vmax.f32 %v1879, %v1927
    %v1976 = vmax.f32 %v1880, %v1928
    %v1977 = vmax.f32 %v1881, %v1929
    %v1978 = vmax.f32 %v1882, %v1930
    %v1979 = vmax.f32 %v1883, %v1931
    %v1980 = vmax.f32 %v1884, %v1932
    %v1981 = vmax.f32 %v1885, %v1933
    %v1982 = vmax.f32 %v1886, %v1934
    %v1983 = vmax.f32 %v1887, %v1935
    %v1984 = vmax.f32 %v1888, %v1936
    %v1985 = vmax.f32 %v1889, %v1937
    %v1986 = vmax.f32 %v1890, %v1938
    %v1987 = vmax.f32 %v1891, %v1939
    %v1988 = vmax.f32 %v1892, %v1940
    %v1989 = vmax.f32 %v1893, %v1941
    %v1990 = vmax.f32 %v1894, %v1942
    %v1991 = vmax.f32 %v1895, %v1943
    %v1992 = vmax.f32 %v1896, %v1944
    %v1993 = vmax.f32 %v1897, %v1945
    %v1994 = vmax.f32 %v1898, %v1946
    %v1995 = vld [vmem:[#allocation2 + $0x31] sm:$0xff]
    %v1996 = vld [vmem:[#allocation2 + $0x39] sm:$0xff]
    %v1997 = vld [vmem:[#allocation2 + $0x41] sm:$0xff]
    %v1998 = vld [vmem:[#allocation2 + $0x51] sm:$0xff]
    %v1999 = vld [vmem:[#allocation2 + $0x59] sm:$0xff]
    %v2000 = vld [vmem:[#allocation2 + $0x61] sm:$0xff]
    %v2001 = vld [vmem:[#allocation2 + $0x79] sm:$0xff]
    %v2002 = vld [vmem:[#allocation2 + $0x81] sm:$0xff]
    %v2003 = vld [vmem:[#allocation2 + $0x89] sm:$0xff]
    %v2004 = vld [vmem:[#allocation2 + $0x99] sm:$0xff]
    %v2005 = vld [vmem:[#allocation2 + $0xa1] sm:$0xff]
    %v2006 = vld [vmem:[#allocation2 + $0xa9] sm:$0xff]
    %v2007 = vld [vmem:[#allocation2 + $0xc1] sm:$0xff]
    %v2008 = vld [vmem:[#allocation2 + $0xc9] sm:$0xff]
    %v2009 = vld [vmem:[#allocation2 + $0xd1] sm:$0xff]
    %v2010 = vld [vmem:[#allocation2 + $0xe1] sm:$0xff]
    %v2011 = vld [vmem:[#allocation2 + $0xe9] sm:$0xff]
    %v2012 = vld [vmem:[#allocation2 + $0xf1] sm:$0xff]
    %v2013 = vld [vmem:[#allocation2 + $0x109] sm:$0xff]
    %v2014 = vld [vmem:[#allocation2 + $0x111] sm:$0xff]
    %v2015 = vld [vmem:[#allocation2 + $0x119] sm:$0xff]
    %v2016 = vld [vmem:[#allocation2 + $0x129] sm:$0xff]
    %v2017 = vld [vmem:[#allocation2 + $0x131] sm:$0xff]
    %v2018 = vld [vmem:[#allocation2 + $0x139] sm:$0xff]
    %v2019 = vld [vmem:[#allocation2 + $0x171] sm:$0xff]
    %v2020 = vld [vmem:[#allocation2 + $0x179] sm:$0xff]
    %v2021 = vld [vmem:[#allocation2 + $0x181] sm:$0xff]
    %v2022 = vld [vmem:[#allocation2 + $0x199] sm:$0xff]
    %v2023 = vld [vmem:[#allocation2 + $0x1a1] sm:$0xff]
    %v2024 = vld [vmem:[#allocation2 + $0x1a9] sm:$0xff]
    %v2025 = vld [vmem:[#allocation2 + $0x1b9] sm:$0xff]
    %v2026 = vld [vmem:[#allocation2 + $0x1c1] sm:$0xff]
    %v2027 = vld [vmem:[#allocation2 + $0x1c9] sm:$0xff]
    %v2028 = vld [vmem:[#allocation2 + $0x1e1] sm:$0xff]
    %v2029 = vld [vmem:[#allocation2 + $0x1e9] sm:$0xff]
    %v2030 = vld [vmem:[#allocation2 + $0x1f1] sm:$0xff]
    %v2031 = vld [vmem:[#allocation2 + $0x201] sm:$0xff]
    %v2032 = vld [vmem:[#allocation2 + $0x209] sm:$0xff]
    %v2033 = vld [vmem:[#allocation2 + $0x211] sm:$0xff]
    %v2034 = vld [vmem:[#allocation2 + $0x229] sm:$0xff]
    %v2035 = vld [vmem:[#allocation2 + $0x231] sm:$0xff]
    %v2036 = vld [vmem:[#allocation2 + $0x239] sm:$0xff]
    %v2037 = vld [vmem:[#allocation2 + $0x249] sm:$0xff]
    %v2038 = vld [vmem:[#allocation2 + $0x251] sm:$0xff]
    %v2039 = vld [vmem:[#allocation2 + $0x259] sm:$0xff]
    %v2040 = vld [vmem:[#allocation2 + $0x271] sm:$0xff]
    %v2041 = vld [vmem:[#allocation2 + $0x279] sm:$0xff]
    %v2042 = vld [vmem:[#allocation2 + $0x281] sm:$0xff]
    %v2043 = vmax.f32 %v1947, %v1995
    %v2044 = vmax.f32 %v1948, %v1996
    %v2045 = vmax.f32 %v1949, %v1997
    %v2046 = vmax.f32 %v1950, %v1998
    %v2047 = vmax.f32 %v1951, %v1999
    %v2048 = vmax.f32 %v1952, %v2000
    %v2049 = vmax.f32 %v1953, %v2001
    %v2050 = vmax.f32 %v1954, %v2002
    %v2051 = vmax.f32 %v1955, %v2003
    %v2052 = vmax.f32 %v1956, %v2004
    %v2053 = vmax.f32 %v1957, %v2005
    %v2054 = vmax.f32 %v1958, %v2006
    %v2055 = vmax.f32 %v1959, %v2007
    %v2056 = vmax.f32 %v1960, %v2008
    %v2057 = vmax.f32 %v1961, %v2009
    %v2058 = vmax.f32 %v1962, %v2010
    %v2059 = vmax.f32 %v1963, %v2011
    %v2060 = vmax.f32 %v1964, %v2012
    %v2061 = vmax.f32 %v1965, %v2013
    %v2062 = vmax.f32 %v1966, %v2014
    %v2063 = vmax.f32 %v1967, %v2015
    %v2064 = vmax.f32 %v1968, %v2016
    %v2065 = vmax.f32 %v1969, %v2017
    %v2066 = vmax.f32 %v1970, %v2018
    %v2067 = vmax.f32 %v1971, %v2019
    %v2068 = vmax.f32 %v1972, %v2020
    %v2069 = vmax.f32 %v1973, %v2021
    %v2070 = vmax.f32 %v1974, %v2022
    %v2071 = vmax.f32 %v1975, %v2023
    %v2072 = vmax.f32 %v1976, %v2024
    %v2073 = vmax.f32 %v1977, %v2025
    %v2074 = vmax.f32 %v1978, %v2026
    %v2075 = vmax.f32 %v1979, %v2027
    %v2076 = vmax.f32 %v1980, %v2028
    %v2077 = vmax.f32 %v1981, %v2029
    %v2078 = vmax.f32 %v1982, %v2030
    %v2079 = vmax.f32 %v1983, %v2031
    %v2080 = vmax.f32 %v1984, %v2032
    %v2081 = vmax.f32 %v1985, %v2033
    %v2082 = vmax.f32 %v1986, %v2034
    %v2083 = vmax.f32 %v1987, %v2035
    %v2084 = vmax.f32 %v1988, %v2036
    %v2085 = vmax.f32 %v1989, %v2037
    %v2086 = vmax.f32 %v1990, %v2038
    %v2087 = vmax.f32 %v1991, %v2039
    %v2088 = vmax.f32 %v1992, %v2040
    %v2089 = vmax.f32 %v1993, %v2041
    %v2090 = vmax.f32 %v1994, %v2042
    %v2091 = vld [vmem:[#allocation2 + $0x49] sm:$0xff]
    %v2092 = vld [vmem:[#allocation2 + $0x69] sm:$0xff]
    %v2093 = vld [vmem:[#allocation2 + $0x71] sm:$0xff]
    %v2094 = vld [vmem:[#allocation2 + $0x91] sm:$0xff]
    %v2095 = vld [vmem:[#allocation2 + $0xb1] sm:$0xff]
    %v2096 = vld [vmem:[#allocation2 + $0xb9] sm:$0xff]
    %v2097 = vld [vmem:[#allocation2 + $0xd9] sm:$0xff]
    %v2098 = vld [vmem:[#allocation2 + $0xf9] sm:$0xff]
    %v2099 = vld [vmem:[#allocation2 + $0x101] sm:$0xff]
    %v2100 = vld [vmem:[#allocation2 + $0x121] sm:$0xff]
    %v2101 = vld [vmem:[#allocation2 + $0x141] sm:$0xff]
    %v2102 = vld [vmem:[#allocation2 + $0x149] sm:$0xff]
    %v2103 = vld [vmem:[#allocation2 + $0x189] sm:$0xff]
    %v2104 = vld [vmem:[#allocation2 + $0x191] sm:$0xff]
    %v2105 = vld [vmem:[#allocation2 + $0x1b1] sm:$0xff]
    %v2106 = vld [vmem:[#allocation2 + $0x1d1] sm:$0xff]
    %v2107 = vld [vmem:[#allocation2 + $0x1d9] sm:$0xff]
    %v2108 = vld [vmem:[#allocation2 + $0x1f9] sm:$0xff]
    %v2109 = vld [vmem:[#allocation2 + $0x219] sm:$0xff]
    %v2110 = vld [vmem:[#allocation2 + $0x221] sm:$0xff]
    %v2111 = vld [vmem:[#allocation2 + $0x241] sm:$0xff]
    %v2112 = vld [vmem:[#allocation2 + $0x261] sm:$0xff]
    %v2113 = vld [vmem:[#allocation2 + $0x269] sm:$0xff]
    %v2114 = vld [vmem:[#allocation2 + $0x289] sm:$0xff]
    %v2115 = vld [vmem:[#allocation2 + $0x291] sm:$0xff]
    %v2116 = vmax.f32 %v2043, %v1997
    %v2117 = vmax.f32 %v2044, %v2091
    %v2118 = vmax.f32 %v2045, %v1998
    %v2119 = vmax.f32 %v2046, %v2000
    %v2120 = vmax.f32 %v2047, %v2092
    %v2121 = vmax.f32 %v2048, %v2093
    %v2122 = vmax.f32 %v2049, %v2003
    %v2123 = vmax.f32 %v2050, %v2094
    %v2124 = vmax.f32 %v2051, %v2004
    %v2125 = vmax.f32 %v2052, %v2006
    %v2126 = vmax.f32 %v2053, %v2095
    %v2127 = vmax.f32 %v2054, %v2096
    %v2128 = vmax.f32 %v2055, %v2009
    %v2129 = vmax.f32 %v2056, %v2097
    %v2130 = vmax.f32 %v2057, %v2010
    %v2131 = vmax.f32 %v2058, %v2012
    %v2132 = vmax.f32 %v2059, %v2098
    %v2133 = vmax.f32 %v2060, %v2099
    %v2134 = vmax.f32 %v2061, %v2015
    %v2135 = vmax.f32 %v2062, %v2100
    %v2136 = vmax.f32 %v2063, %v2016
    %v2137 = vmax.f32 %v2064, %v2018
    %v2138 = vmax.f32 %v2065, %v2101
    %v2139 = vmax.f32 %v2066, %v2102
    %v2140 = vmax.f32 %v2067, %v2021
    %v2141 = vmax.f32 %v2068, %v2103
    %v2142 = vmax.f32 %v2069, %v2104
    %v2143 = vmax.f32 %v2070, %v2024
    %v2144 = vmax.f32 %v2071, %v2105
    %v2145 = vmax.f32 %v2072, %v2025
    %v2146 = vmax.f32 %v2073, %v2027
    %v2147 = vmax.f32 %v2074, %v2106
    %v2148 = vmax.f32 %v2075, %v2107
    %v2149 = vmax.f32 %v2076, %v2030
    %v2150 = vmax.f32 %v2077, %v2108
    %v2151 = vmax.f32 %v2078, %v2031
    %v2152 = vmax.f32 %v2079, %v2033
    %v2153 = vmax.f32 %v2080, %v2109
    %v2154 = vmax.f32 %v2081, %v2110
    %v2155 = vmax.f32 %v2082, %v2036
    %v2156 = vmax.f32 %v2083, %v2111
    %v2157 = vmax.f32 %v2084, %v2037
    %v2158 = vmax.f32 %v2085, %v2039
    %v2159 = vmax.f32 %v2086, %v2112
    %v2160 = vmax.f32 %v2087, %v2113
    %v2161 = vmax.f32 %v2088, %v2042
    %v2162 = vmax.f32 %v2089, %v2114
    %v2163 = vmax.f32 %v2090, %v2115
    %v2164 = vld [vmem:[#allocation2 + $0x42] sm:$0xff]
    %v2165 = vld [vmem:[#allocation2 + $0x4a] sm:$0xff]
    %v2166 = vld [vmem:[#allocation2 + $0x52] sm:$0xff]
    %v2167 = vld [vmem:[#allocation2 + $0x62] sm:$0xff]
    %v2168 = vld [vmem:[#allocation2 + $0x6a] sm:$0xff]
    %v2169 = vld [vmem:[#allocation2 + $0x72] sm:$0xff]
    %v2170 = vld [vmem:[#allocation2 + $0x8a] sm:$0xff]
    %v2171 = vld [vmem:[#allocation2 + $0x92] sm:$0xff]
    %v2172 = vld [vmem:[#allocation2 + $0x9a] sm:$0xff]
    %v2173 = vld [vmem:[#allocation2 + $0xaa] sm:$0xff]
    %v2174 = vld [vmem:[#allocation2 + $0xb2] sm:$0xff]
    %v2175 = vld [vmem:[#allocation2 + $0xba] sm:$0xff]
    %v2176 = vld [vmem:[#allocation2 + $0xd2] sm:$0xff]
    %v2177 = vld [vmem:[#allocation2 + $0xda] sm:$0xff]
    %v2178 = vld [vmem:[#allocation2 + $0xe2] sm:$0xff]
    %v2179 = vld [vmem:[#allocation2 + $0xf2] sm:$0xff]
    %v2180 = vld [vmem:[#allocation2 + $0xfa] sm:$0xff]
    %v2181 = vld [vmem:[#allocation2 + $0x102] sm:$0xff]
    %v2182 = vld [vmem:[#allocation2 + $0x11a] sm:$0xff]
    %v2183 = vld [vmem:[#allocation2 + $0x122] sm:$0xff]
    %v2184 = vld [vmem:[#allocation2 + $0x12a] sm:$0xff]
    %v2185 = vld [vmem:[#allocation2 + $0x13a] sm:$0xff]
    %v2186 = vld [vmem:[#allocation2 + $0x142] sm:$0xff]
    %v2187 = vld [vmem:[#allocation2 + $0x14a] sm:$0xff]
    %v2188 = vld [vmem:[#allocation2 + $0x182] sm:$0xff]
    %v2189 = vld [vmem:[#allocation2 + $0x18a] sm:$0xff]
    %v2190 = vld [vmem:[#allocation2 + $0x192] sm:$0xff]
    %v2191 = vld [vmem:[#allocation2 + $0x1aa] sm:$0xff]
    %v2192 = vld [vmem:[#allocation2 + $0x1b2] sm:$0xff]
    %v2193 = vld [vmem:[#allocation2 + $0x1ba] sm:$0xff]
    %v2194 = vld [vmem:[#allocation2 + $0x1ca] sm:$0xff]
    %v2195 = vld [vmem:[#allocation2 + $0x1d2] sm:$0xff]
    %v2196 = vld [vmem:[#allocation2 + $0x1da] sm:$0xff]
    %v2197 = vld [vmem:[#allocation2 + $0x1f2] sm:$0xff]
    %v2198 = vld [vmem:[#allocation2 + $0x1fa] sm:$0xff]
    %v2199 = vld [vmem:[#allocation2 + $0x202] sm:$0xff]
    %v2200 = vld [vmem:[#allocation2 + $0x212] sm:$0xff]
    %v2201 = vld [vmem:[#allocation2 + $0x21a] sm:$0xff]
    %v2202 = vld [vmem:[#allocation2 + $0x222] sm:$0xff]
    %v2203 = vld [vmem:[#allocation2 + $0x23a] sm:$0xff]
    %v2204 = vld [vmem:[#allocation2 + $0x242] sm:$0xff]
    %v2205 = vld [vmem:[#allocation2 + $0x24a] sm:$0xff]
    %v2206 = vld [vmem:[#allocation2 + $0x25a] sm:$0xff]
    %v2207 = vld [vmem:[#allocation2 + $0x262] sm:$0xff]
    %v2208 = vld [vmem:[#allocation2 + $0x26a] sm:$0xff]
    %v2209 = vld [vmem:[#allocation2 + $0x282] sm:$0xff]
    %v2210 = vld [vmem:[#allocation2 + $0x28a] sm:$0xff]
    %v2211 = vld [vmem:[#allocation2 + $0x292] sm:$0xff]
    %v2212 = vmax.f32 %v2116, %v2164
    %v2213 = vmax.f32 %v2117, %v2165
    %v2214 = vmax.f32 %v2118, %v2166
    %v2215 = vmax.f32 %v2119, %v2167
    %v2216 = vmax.f32 %v2120, %v2168
    %v2217 = vmax.f32 %v2121, %v2169
    %v2218 = vmax.f32 %v2122, %v2170
    %v2219 = vmax.f32 %v2123, %v2171
    %v2220 = vmax.f32 %v2124, %v2172
    %v2221 = vmax.f32 %v2125, %v2173
    %v2222 = vmax.f32 %v2126, %v2174
    %v2223 = vmax.f32 %v2127, %v2175
    %v2224 = vmax.f32 %v2128, %v2176
    %v2225 = vmax.f32 %v2129, %v2177
    %v2226 = vmax.f32 %v2130, %v2178
    %v2227 = vmax.f32 %v2131, %v2179
    %v2228 = vmax.f32 %v2132, %v2180
    %v2229 = vmax.f32 %v2133, %v2181
    %v2230 = vmax.f32 %v2134, %v2182
    %v2231 = vmax.f32 %v2135, %v2183
    %v2232 = vmax.f32 %v2136, %v2184
    %v2233 = vmax.f32 %v2137, %v2185
    %v2234 = vmax.f32 %v2138, %v2186
    %v2235 = vmax.f32 %v2139, %v2187
    %v2236 = vmax.f32 %v2140, %v2188
    %v2237 = vmax.f32 %v2141, %v2189
    %v2238 = vmax.f32 %v2142, %v2190
    %v2239 = vmax.f32 %v2143, %v2191
    %v2240 = vmax.f32 %v2144, %v2192
    %v2241 = vmax.f32 %v2145, %v2193
    %v2242 = vmax.f32 %v2146, %v2194
    %v2243 = vmax.f32 %v2147, %v2195
    %v2244 = vmax.f32 %v2148, %v2196
    %v2245 = vmax.f32 %v2149, %v2197
    %v2246 = vmax.f32 %v2150, %v2198
    %v2247 = vmax.f32 %v2151, %v2199
    %v2248 = vmax.f32 %v2152, %v2200
    %v2249 = vmax.f32 %v2153, %v2201
    %v2250 = vmax.f32 %v2154, %v2202
    %v2251 = vmax.f32 %v2155, %v2203
    %v2252 = vmax.f32 %v2156, %v2204
    %v2253 = vmax.f32 %v2157, %v2205
    %v2254 = vmax.f32 %v2158, %v2206
    %v2255 = vmax.f32 %v2159, %v2207
    %v2256 = vmax.f32 %v2160, %v2208
    %v2257 = vmax.f32 %v2161, %v2209
    %v2258 = vmax.f32 %v2162, %v2210
    %v2259 = vmax.f32 %v2163, %v2211
    %v2260 = vld [vmem:[#allocation2 + $0x43] sm:$0xff]
    %v2261 = vld [vmem:[#allocation2 + $0x4b] sm:$0xff]
    %v2262 = vld [vmem:[#allocation2 + $0x53] sm:$0xff]
    %v2263 = vld [vmem:[#allocation2 + $0x63] sm:$0xff]
    %v2264 = vld [vmem:[#allocation2 + $0x6b] sm:$0xff]
    %v2265 = vld [vmem:[#allocation2 + $0x73] sm:$0xff]
    %v2266 = vld [vmem:[#allocation2 + $0x8b] sm:$0xff]
    %v2267 = vld [vmem:[#allocation2 + $0x93] sm:$0xff]
    %v2268 = vld [vmem:[#allocation2 + $0x9b] sm:$0xff]
    %v2269 = vld [vmem:[#allocation2 + $0xab] sm:$0xff]
    %v2270 = vld [vmem:[#allocation2 + $0xb3] sm:$0xff]
    %v2271 = vld [vmem:[#allocation2 + $0xbb] sm:$0xff]
    %v2272 = vld [vmem:[#allocation2 + $0xd3] sm:$0xff]
    %v2273 = vld [vmem:[#allocation2 + $0xdb] sm:$0xff]
    %v2274 = vld [vmem:[#allocation2 + $0xe3] sm:$0xff]
    %v2275 = vld [vmem:[#allocation2 + $0xf3] sm:$0xff]
    %v2276 = vld [vmem:[#allocation2 + $0xfb] sm:$0xff]
    %v2277 = vld [vmem:[#allocation2 + $0x103] sm:$0xff]
    %v2278 = vld [vmem:[#allocation2 + $0x11b] sm:$0xff]
    %v2279 = vld [vmem:[#allocation2 + $0x123] sm:$0xff]
    %v2280 = vld [vmem:[#allocation2 + $0x12b] sm:$0xff]
    %v2281 = vld [vmem:[#allocation2 + $0x13b] sm:$0xff]
    %v2282 = vld [vmem:[#allocation2 + $0x143] sm:$0xff]
    %v2283 = vld [vmem:[#allocation2 + $0x14b] sm:$0xff]
    %v2284 = vld [vmem:[#allocation2 + $0x183] sm:$0xff]
    %v2285 = vld [vmem:[#allocation2 + $0x18b] sm:$0xff]
    %v2286 = vld [vmem:[#allocation2 + $0x193] sm:$0xff]
    %v2287 = vld [vmem:[#allocation2 + $0x1ab] sm:$0xff]
    %v2288 = vld [vmem:[#allocation2 + $0x1b3] sm:$0xff]
    %v2289 = vld [vmem:[#allocation2 + $0x1bb] sm:$0xff]
    %v2290 = vld [vmem:[#allocation2 + $0x1cb] sm:$0xff]
    %v2291 = vld [vmem:[#allocation2 + $0x1d3] sm:$0xff]
    %v2292 = vld [vmem:[#allocation2 + $0x1db] sm:$0xff]
    %v2293 = vld [vmem:[#allocation2 + $0x1f3] sm:$0xff]
    %v2294 = vld [vmem:[#allocation2 + $0x1fb] sm:$0xff]
    %v2295 = vld [vmem:[#allocation2 + $0x203] sm:$0xff]
    %v2296 = vld [vmem:[#allocation2 + $0x213] sm:$0xff]
    %v2297 = vld [vmem:[#allocation2 + $0x21b] sm:$0xff]
    %v2298 = vld [vmem:[#allocation2 + $0x223] sm:$0xff]
    %v2299 = vld [vmem:[#allocation2 + $0x23b] sm:$0xff]
    %v2300 = vld [vmem:[#allocation2 + $0x243] sm:$0xff]
    %v2301 = vld [vmem:[#allocation2 + $0x24b] sm:$0xff]
    %v2302 = vld [vmem:[#allocation2 + $0x25b] sm:$0xff]
    %v2303 = vld [vmem:[#allocation2 + $0x263] sm:$0xff]
    %v2304 = vld [vmem:[#allocation2 + $0x26b] sm:$0xff]
    %v2305 = vld [vmem:[#allocation2 + $0x283] sm:$0xff]
    %v2306 = vld [vmem:[#allocation2 + $0x28b] sm:$0xff]
    %v2307 = vld [vmem:[#allocation2 + $0x293] sm:$0xff]
    %v2308 = vmax.f32 %v2212, %v2260
    %v2309 = vmax.f32 %v2213, %v2261
    %v2310 = vmax.f32 %v2214, %v2262
    %v2311 = vmax.f32 %v2215, %v2263
    %v2312 = vmax.f32 %v2216, %v2264
    %v2313 = vmax.f32 %v2217, %v2265
    %v2314 = vmax.f32 %v2218, %v2266
    %v2315 = vmax.f32 %v2219, %v2267
    %v2316 = vmax.f32 %v2220, %v2268
    %v2317 = vmax.f32 %v2221, %v2269
    %v2318 = vmax.f32 %v2222, %v2270
    %v2319 = vmax.f32 %v2223, %v2271
    %v2320 = vmax.f32 %v2224, %v2272
    %v2321 = vmax.f32 %v2225, %v2273
    %v2322 = vmax.f32 %v2226, %v2274
    %v2323 = vmax.f32 %v2227, %v2275
    %v2324 = vmax.f32 %v2228, %v2276
    %v2325 = vmax.f32 %v2229, %v2277
    %v2326 = vmax.f32 %v2230, %v2278
    %v2327 = vmax.f32 %v2231, %v2279
    %v2328 = vmax.f32 %v2232, %v2280
    %v2329 = vmax.f32 %v2233, %v2281
    %v2330 = vmax.f32 %v2234, %v2282
    %v2331 = vmax.f32 %v2235, %v2283
    %v2332 = vmax.f32 %v2236, %v2284
    %v2333 = vmax.f32 %v2237, %v2285
    %v2334 = vmax.f32 %v2238, %v2286
    %v2335 = vmax.f32 %v2239, %v2287
    %v2336 = vmax.f32 %v2240, %v2288
    %v2337 = vmax.f32 %v2241, %v2289
    %v2338 = vmax.f32 %v2242, %v2290
    %v2339 = vmax.f32 %v2243, %v2291
    %v2340 = vmax.f32 %v2244, %v2292
    %v2341 = vmax.f32 %v2245, %v2293
    %v2342 = vmax.f32 %v2246, %v2294
    %v2343 = vmax.f32 %v2247, %v2295
    %v2344 = vmax.f32 %v2248, %v2296
    %v2345 = vmax.f32 %v2249, %v2297
    %v2346 = vmax.f32 %v2250, %v2298
    %v2347 = vmax.f32 %v2251, %v2299
    %v2348 = vmax.f32 %v2252, %v2300
    %v2349 = vmax.f32 %v2253, %v2301
    %v2350 = vmax.f32 %v2254, %v2302
    %v2351 = vmax.f32 %v2255, %v2303
    %v2352 = vmax.f32 %v2256, %v2304
    %v2353 = vmax.f32 %v2257, %v2305
    %v2354 = vmax.f32 %v2258, %v2306
    %v2355 = vmax.f32 %v2259, %v2307
    %2356 = vst.msk [vmem:[#allocation3] sm:$0xff] %vm885, 0.0
    %2357 = vst.msk [vmem:[#allocation3 + $0x8] sm:$0xff] %vm885, 0.0
    %2358 = vst.msk [vmem:[#allocation3 + $0x10] sm:$0xff] %vm885, 0.0
    %2359 = vst.msk [vmem:[#allocation3 + $0x18] sm:$0xff] %vm885, 0.0
    %2360 = vst.msk [vmem:[#allocation3 + $0x20] sm:$0xff] %vm885, 0.0
    %2361 = vst.msk [vmem:[#allocation3 + $0x28] sm:$0xff] %vm885, 0.0
    %2362 = vst.msk [vmem:[#allocation3 + $0x30] sm:$0xff] %vm885, 0.0
    %2363 = vst.msk [vmem:[#allocation3 + $0x38] sm:$0xff] %vm885, 0.0
    %2364 = vst.msk [vmem:[#allocation3 + $0x40] sm:$0xff] %vm885, 0.0
    %2365 = vst.msk [vmem:[#allocation3 + $0x48] sm:$0xff] %vm885, 0.0
    %2366 = vst.msk [vmem:[#allocation3 + $0x50] sm:$0xff] %vm885, 0.0
    %2367 = vst.msk [vmem:[#allocation3 + $0x58] sm:$0xff] %vm885, 0.0
    %2368 = vst.msk [vmem:[#allocation3 + $0x60] sm:$0xff] %vm885, 0.0
    %2369 = vst.msk [vmem:[#allocation3 + $0x68] sm:$0xff] %vm885, 0.0
    %2370 = vst.msk [vmem:[#allocation3 + $0x70] sm:$0xff] %vm885, 0.0
    %2371 = vst.msk [vmem:[#allocation3 + $0x78] sm:$0xff] %vm885, 0.0
    %2372 = vst.msk [vmem:[#allocation3 + $0x80] sm:$0xff] %vm885, 0.0
    %2373 = vst.msk [vmem:[#allocation3 + $0x88] sm:$0xff] %vm885, 0.0
    %2374 = vst.msk [vmem:[#allocation3 + $0x90] sm:$0xff] %vm885, 0.0
    %2375 = vst.msk [vmem:[#allocation3 + $0x98] sm:$0xff] %vm885, 0.0
    %2376 = vst.msk [vmem:[#allocation3 + $0xa0] sm:$0xff] %vm885, 0.0
    %2377 = vst.msk [vmem:[#allocation3 + $0xa8] sm:$0xff] %vm885, 0.0
    %2378 = vst.msk [vmem:[#allocation3 + $0xb0] sm:$0xff] %vm885, 0.0
    %2379 = vst.msk [vmem:[#allocation3 + $0xb8] sm:$0xff] %vm885, 0.0
    %2380 = vst.msk [vmem:[#allocation3 + $0xc0] sm:$0xff] %vm885, 0.0
    %2381 = vst.msk [vmem:[#allocation3 + $0xc8] sm:$0xff] %vm885, 0.0
    %2382 = vst.msk [vmem:[#allocation3 + $0xd0] sm:$0xff] %vm885, 0.0
    %2383 = vst.msk [vmem:[#allocation3 + $0xd8] sm:$0xff] %vm885, 0.0
    %2384 = vst.msk [vmem:[#allocation3 + $0xe0] sm:$0xff] %vm885, 0.0
    %vm2385 = vcmask 519171
    %2386 = vst.msk [vmem:[#allocation3 + $0x18] sm:$0x8] %vm2385, %v2308
    %vm2387 = vcmask 521221
    %2388 = vst.msk [vmem:[#allocation3 + $0x17] sm:$0x20] %vm2387, %v2308
    %vm2389 = vcmask 523271
    %2390 = vst.msk [vmem:[#allocation3 + $0x16] sm:$0x80] %vm2389, %v2308
    %vm2391 = vcmask 517121
    %2392 = vst.msk [vmem:[#allocation3 + $0x1d] sm:$0x2] %vm2391, %v2309
    %2393 = vst.msk [vmem:[#allocation3 + $0x1c] sm:$0x8] %vm2385, %v2309
    %2394 = vst.msk [vmem:[#allocation3 + $0x1b] sm:$0x20] %vm2387, %v2309
    %2395 = vst.msk [vmem:[#allocation3 + $0x1a] sm:$0x80] %vm2389, %v2309
    %2396 = vst.msk [vmem:[#allocation3 + $0x21] sm:$0x2] %vm2391, %v2310
    %2397 = vst.msk [vmem:[#allocation3 + $0x1e] sm:$0x80] %vm2389, %v2311
    %2398 = vst.msk [vmem:[#allocation3 + $0x25] sm:$0x2] %vm2391, %v2312
    %2399 = vst.msk [vmem:[#allocation3 + $0x24] sm:$0x8] %vm2385, %v2312
    %2400 = vst.msk [vmem:[#allocation3 + $0x23] sm:$0x20] %vm2387, %v2312
    %2401 = vst.msk [vmem:[#allocation3 + $0x22] sm:$0x80] %vm2389, %v2312
    %2402 = vst.msk [vmem:[#allocation3 + $0x29] sm:$0x2] %vm2391, %v2313
    %2403 = vst.msk [vmem:[#allocation3 + $0x28] sm:$0x8] %vm2385, %v2313
    %2404 = vst.msk [vmem:[#allocation3 + $0x27] sm:$0x20] %vm2387, %v2313
    %2405 = vst.msk [vmem:[#allocation3 + $0x2c] sm:$0x8] %vm2385, %v2314
    %2406 = vst.msk [vmem:[#allocation3 + $0x2b] sm:$0x20] %vm2387, %v2314
    %2407 = vst.msk [vmem:[#allocation3 + $0x2a] sm:$0x80] %vm2389, %v2314
    %2408 = vst.msk [vmem:[#allocation3 + $0x31] sm:$0x2] %vm2391, %v2315
    %2409 = vst.msk [vmem:[#allocation3 + $0x30] sm:$0x8] %vm2385, %v2315
    %2410 = vst.msk [vmem:[#allocation3 + $0x2f] sm:$0x20] %vm2387, %v2315
    %2411 = vst.msk [vmem:[#allocation3 + $0x2e] sm:$0x80] %vm2389, %v2315
    %2412 = vst.msk [vmem:[#allocation3 + $0x35] sm:$0x2] %vm2391, %v2316
    %2413 = vst.msk [vmem:[#allocation3 + $0x32] sm:$0x80] %vm2389, %v2317
    %2414 = vst.msk [vmem:[#allocation3 + $0x39] sm:$0x2] %vm2391, %v2318
    %2415 = vst.msk [vmem:[#allocation3 + $0x38] sm:$0x8] %vm2385, %v2318
    %2416 = vst.msk [vmem:[#allocation3 + $0x37] sm:$0x20] %vm2387, %v2318
    %2417 = vst.msk [vmem:[#allocation3 + $0x36] sm:$0x80] %vm2389, %v2318
    %2418 = vst.msk [vmem:[#allocation3 + $0x3d] sm:$0x2] %vm2391, %v2319
    %2419 = vst.msk [vmem:[#allocation3 + $0x3c] sm:$0x8] %vm2385, %v2319
    %2420 = vst.msk [vmem:[#allocation3 + $0x3b] sm:$0x20] %vm2387, %v2319
    %2421 = vst.msk [vmem:[#allocation3 + $0x40] sm:$0x8] %vm2385, %v2320
    %2422 = vst.msk [vmem:[#allocation3 + $0x3f] sm:$0x20] %vm2387, %v2320
    %2423 = vst.msk [vmem:[#allocation3 + $0x3e] sm:$0x80] %vm2389, %v2320
    %2424 = vst.msk [vmem:[#allocation3 + $0x45] sm:$0x2] %vm2391, %v2321
    %2425 = vst.msk [vmem:[#allocation3 + $0x44] sm:$0x8] %vm2385, %v2321
    %2426 = vst.msk [vmem:[#allocation3 + $0x43] sm:$0x20] %vm2387, %v2321
    %2427 = vst.msk [vmem:[#allocation3 + $0x42] sm:$0x80] %vm2389, %v2321
    %2428 = vst.msk [vmem:[#allocation3 + $0x49] sm:$0x2] %vm2391, %v2322
    %2429 = vst.msk [vmem:[#allocation3 + $0x46] sm:$0x80] %vm2389, %v2323
    %2430 = vst.msk [vmem:[#allocation3 + $0x4d] sm:$0x2] %vm2391, %v2324
    %2431 = vst.msk [vmem:[#allocation3 + $0x4c] sm:$0x8] %vm2385, %v2324
    %2432 = vst.msk [vmem:[#allocation3 + $0x4b] sm:$0x20] %vm2387, %v2324
    %2433 = vst.msk [vmem:[#allocation3 + $0x4a] sm:$0x80] %vm2389, %v2324
    %2434 = vst.msk [vmem:[#allocation3 + $0x51] sm:$0x2] %vm2391, %v2325
    %2435 = vst.msk [vmem:[#allocation3 + $0x50] sm:$0x8] %vm2385, %v2325
    %2436 = vst.msk [vmem:[#allocation3 + $0x4f] sm:$0x20] %vm2387, %v2325
    %2437 = vst.msk [vmem:[#allocation3 + $0x54] sm:$0x8] %vm2385, %v2326
    %2438 = vst.msk [vmem:[#allocation3 + $0x53] sm:$0x20] %vm2387, %v2326
    %2439 = vst.msk [vmem:[#allocation3 + $0x52] sm:$0x80] %vm2389, %v2326
    %2440 = vst.msk [vmem:[#allocation3 + $0x59] sm:$0x2] %vm2391, %v2327
    %2441 = vst.msk [vmem:[#allocation3 + $0x58] sm:$0x8] %vm2385, %v2327
    %2442 = vst.msk [vmem:[#allocation3 + $0x57] sm:$0x20] %vm2387, %v2327
    %2443 = vst.msk [vmem:[#allocation3 + $0x56] sm:$0x80] %vm2389, %v2327
    %2444 = vst.msk [vmem:[#allocation3 + $0x5d] sm:$0x2] %vm2391, %v2328
    %2445 = vst.msk [vmem:[#allocation3 + $0x5a] sm:$0x80] %vm2389, %v2329
    %2446 = vst.msk [vmem:[#allocation3 + $0x61] sm:$0x2] %vm2391, %v2330
    %2447 = vst.msk [vmem:[#allocation3 + $0x60] sm:$0x8] %vm2385, %v2330
    %2448 = vst.msk [vmem:[#allocation3 + $0x5f] sm:$0x20] %vm2387, %v2330
    %2449 = vst.msk [vmem:[#allocation3 + $0x5e] sm:$0x80] %vm2389, %v2330
    %2450 = vst.msk [vmem:[#allocation3 + $0x65] sm:$0x2] %vm2391, %v2331
    %2451 = vst.msk [vmem:[#allocation3 + $0x64] sm:$0x8] %vm2385, %v2331
    %2452 = vst.msk [vmem:[#allocation3 + $0x63] sm:$0x20] %vm2387, %v2331
    %2453 = vst.msk [vmem:[#allocation3 + $0x78] sm:$0x80] %vm2389, %v2332
    %2454 = vst.msk [vmem:[#allocation3 + $0x7f] sm:$0x2] %vm2391, %v2333
    %2455 = vst.msk [vmem:[#allocation3 + $0x7e] sm:$0x8] %vm2385, %v2333
    %2456 = vst.msk [vmem:[#allocation3 + $0x7d] sm:$0x20] %vm2387, %v2333
    %2457 = vst.msk [vmem:[#allocation3 + $0x7c] sm:$0x80] %vm2389, %v2333
    %2458 = vst.msk [vmem:[#allocation3 + $0x83] sm:$0x2] %vm2391, %v2334
    %2459 = vst.msk [vmem:[#allocation3 + $0x82] sm:$0x8] %vm2385, %v2334
    %2460 = vst.msk [vmem:[#allocation3 + $0x81] sm:$0x20] %vm2387, %v2334
    %2461 = vst.msk [vmem:[#allocation3 + $0x86] sm:$0x8] %vm2385, %v2335
    %2462 = vst.msk [vmem:[#allocation3 + $0x85] sm:$0x20] %vm2387, %v2335
    %2463 = vst.msk [vmem:[#allocation3 + $0x84] sm:$0x80] %vm2389, %v2335
    %2464 = vst.msk [vmem:[#allocation3 + $0x8b] sm:$0x2] %vm2391, %v2336
    %2465 = vst.msk [vmem:[#allocation3 + $0x8a] sm:$0x8] %vm2385, %v2336
    %2466 = vst.msk [vmem:[#allocation3 + $0x89] sm:$0x20] %vm2387, %v2336
    %2467 = vst.msk [vmem:[#allocation3 + $0x88] sm:$0x80] %vm2389, %v2336
    %2468 = vst.msk [vmem:[#allocation3 + $0x8f] sm:$0x2] %vm2391, %v2337
    %2469 = vst.msk [vmem:[#allocation3 + $0x8c] sm:$0x80] %vm2389, %v2338
    %2470 = vst.msk [vmem:[#allocation3 + $0x93] sm:$0x2] %vm2391, %v2339
    %2471 = vst.msk [vmem:[#allocation3 + $0x92] sm:$0x8] %vm2385, %v2339
    %2472 = vst.msk [vmem:[#allocation3 + $0x91] sm:$0x20] %vm2387, %v2339
    %2473 = vst.msk [vmem:[#allocation3 + $0x90] sm:$0x80] %vm2389, %v2339
    %2474 = vst.msk [vmem:[#allocation3 + $0x97] sm:$0x2] %vm2391, %v2340
    %2475 = vst.msk [vmem:[#allocation3 + $0x96] sm:$0x8] %vm2385, %v2340
    %2476 = vst.msk [vmem:[#allocation3 + $0x95] sm:$0x20] %vm2387, %v2340
    %2477 = vst.msk [vmem:[#allocation3 + $0x9a] sm:$0x8] %vm2385, %v2341
    %2478 = vst.msk [vmem:[#allocation3 + $0x99] sm:$0x20] %vm2387, %v2341
    %2479 = vst.msk [vmem:[#allocation3 + $0x98] sm:$0x80] %vm2389, %v2341
    %2480 = vst.msk [vmem:[#allocation3 + $0x9f] sm:$0x2] %vm2391, %v2342
    %2481 = vst.msk [vmem:[#allocation3 + $0x9e] sm:$0x8] %vm2385, %v2342
    %2482 = vst.msk [vmem:[#allocation3 + $0x9d] sm:$0x20] %vm2387, %v2342
    %2483 = vst.msk [vmem:[#allocation3 + $0x9c] sm:$0x80] %vm2389, %v2342
    %2484 = vst.msk [vmem:[#allocation3 + $0xa3] sm:$0x2] %vm2391, %v2343
    %2485 = vst.msk [vmem:[#allocation3 + $0xa0] sm:$0x80] %vm2389, %v2344
    %2486 = vst.msk [vmem:[#allocation3 + $0xa7] sm:$0x2] %vm2391, %v2345
    %2487 = vst.msk [vmem:[#allocation3 + $0xa6] sm:$0x8] %vm2385, %v2345
    %2488 = vst.msk [vmem:[#allocation3 + $0xa5] sm:$0x20] %vm2387, %v2345
    %2489 = vst.msk [vmem:[#allocation3 + $0xa4] sm:$0x80] %vm2389, %v2345
    %2490 = vst.msk [vmem:[#allocation3 + $0xab] sm:$0x2] %vm2391, %v2346
    %2491 = vst.msk [vmem:[#allocation3 + $0xaa] sm:$0x8] %vm2385, %v2346
    %2492 = vst.msk [vmem:[#allocation3 + $0xa9] sm:$0x20] %vm2387, %v2346
    %2493 = vst.msk [vmem:[#allocation3 + $0xae] sm:$0x8] %vm2385, %v2347
    %2494 = vst.msk [vmem:[#allocation3 + $0xad] sm:$0x20] %vm2387, %v2347
    %2495 = vst.msk [vmem:[#allocation3 + $0xac] sm:$0x80] %vm2389, %v2347
    %2496 = vst.msk [vmem:[#allocation3 + $0xb3] sm:$0x2] %vm2391, %v2348
    %2497 = vst.msk [vmem:[#allocation3 + $0xb2] sm:$0x8] %vm2385, %v2348
    %2498 = vst.msk [vmem:[#allocation3 + $0xb1] sm:$0x20] %vm2387, %v2348
    %2499 = vst.msk [vmem:[#allocation3 + $0xb0] sm:$0x80] %vm2389, %v2348
    %2500 = vst.msk [vmem:[#allocation3 + $0xb7] sm:$0x2] %vm2391, %v2349
    %2501 = vst.msk [vmem:[#allocation3 + $0xb4] sm:$0x80] %vm2389, %v2350
    %2502 = vst.msk [vmem:[#allocation3 + $0xbb] sm:$0x2] %vm2391, %v2351
    %2503 = vst.msk [vmem:[#allocation3 + $0xba] sm:$0x8] %vm2385, %v2351
    %2504 = vst.msk [vmem:[#allocation3 + $0xb9] sm:$0x20] %vm2387, %v2351
    %2505 = vst.msk [vmem:[#allocation3 + $0xb8] sm:$0x80] %vm2389, %v2351
    %2506 = vst.msk [vmem:[#allocation3 + $0xbf] sm:$0x2] %vm2391, %v2352
    %2507 = vst.msk [vmem:[#allocation3 + $0xbe] sm:$0x8] %vm2385, %v2352
    %2508 = vst.msk [vmem:[#allocation3 + $0xbd] sm:$0x20] %vm2387, %v2352
    %2509 = vst.msk [vmem:[#allocation3 + $0xc2] sm:$0x8] %vm2385, %v2353
    %2510 = vst.msk [vmem:[#allocation3 + $0xc1] sm:$0x20] %vm2387, %v2353
    %2511 = vst.msk [vmem:[#allocation3 + $0xc0] sm:$0x80] %vm2389, %v2353
    %2512 = vst.msk [vmem:[#allocation3 + $0xc7] sm:$0x2] %vm2391, %v2354
    %2513 = vst.msk [vmem:[#allocation3 + $0xc6] sm:$0x8] %vm2385, %v2354
    %2514 = vst.msk [vmem:[#allocation3 + $0xc5] sm:$0x20] %vm2387, %v2354
    %2515 = vst.msk [vmem:[#allocation3 + $0xc4] sm:$0x80] %vm2389, %v2354
    %2516 = vst.msk [vmem:[#allocation3 + $0xcb] sm:$0x2] %vm2391, %v2355
    %v2517 = vld [vmem:[#allocation3] sm:$0xff]
    %v2518 = vld [vmem:[#allocation3 + $0x8] sm:$0xff]
    %v2519 = vld [vmem:[#allocation3 + $0x10] sm:$0xff]
    %v2520 = vld [vmem:[#allocation3 + $0x18] sm:$0xff]
    %v2521 = vld [vmem:[#allocation3 + $0x20] sm:$0xff]
    %v2522 = vld [vmem:[#allocation3 + $0x28] sm:$0xff]
    %v2523 = vld [vmem:[#allocation3 + $0x30] sm:$0xff]
    %v2524 = vld [vmem:[#allocation3 + $0x38] sm:$0xff]
    %v2525 = vld [vmem:[#allocation3 + $0x40] sm:$0xff]
    %v2526 = vld [vmem:[#allocation3 + $0x48] sm:$0xff]
    %v2527 = vld [vmem:[#allocation3 + $0x50] sm:$0xff]
    %v2528 = vld [vmem:[#allocation3 + $0x58] sm:$0xff]
    %v2529 = vld [vmem:[#allocation3 + $0x60] sm:$0xff]
    %v2530 = vld [vmem:[#allocation3 + $0x68] sm:$0xff]
    %v2531 = vld [vmem:[#allocation3 + $0x70] sm:$0xff]
    %v2532 = vld [vmem:[#allocation3 + $0x78] sm:$0xff]
    %v2533 = vld [vmem:[#allocation3 + $0x80] sm:$0xff]
    %v2534 = vld [vmem:[#allocation3 + $0x88] sm:$0xff]
    %v2535 = vld [vmem:[#allocation3 + $0x90] sm:$0xff]
    %v2536 = vld [vmem:[#allocation3 + $0x98] sm:$0xff]
    %v2537 = vld [vmem:[#allocation3 + $0xa0] sm:$0xff]
    %v2538 = vld [vmem:[#allocation3 + $0xa8] sm:$0xff]
    %v2539 = vld [vmem:[#allocation3 + $0xb0] sm:$0xff]
    %v2540 = vld [vmem:[#allocation3 + $0xb8] sm:$0xff]
    %v2541 = vld [vmem:[#allocation3 + $0xc0] sm:$0xff]
    %v2542 = vld [vmem:[#allocation3 + $0xc8] sm:$0xff]
    %v2543 = vld [vmem:[#allocation3 + $0xd0] sm:$0xff]
    %v2544 = vld [vmem:[#allocation3 + $0xd8] sm:$0xff]
    %v2545 = vld [vmem:[#allocation3 + $0xe0] sm:$0xff]
    %v2546 = vpack.c.bf16 %v2517, %v2517
    %v2547 = vpack.c.bf16 %v2518, %v2518
    %v2548 = vpack.c.bf16 %v2519, %v2519
    %v2549 = vpack.c.bf16 %v2520, %v2520
    %v2550 = vpack.c.bf16 %v2521, %v2521
    %v2551 = vpack.c.bf16 %v2522, %v2522
    %v2552 = vpack.c.bf16 %v2523, %v2523
    %v2553 = vpack.c.bf16 %v2524, %v2524
    %v2554 = vpack.c.bf16 %v2525, %v2525
    %v2555 = vpack.c.bf16 %v2526, %v2526
    %v2556 = vpack.c.bf16 %v2527, %v2527
    %v2557 = vpack.c.bf16 %v2528, %v2528
    %v2558 = vpack.c.bf16 %v2529, %v2529
    %v2559 = vpack.c.bf16 %v2530, %v2530
    %v2560 = vpack.c.bf16 %v2531, %v2531
    %v2561 = vpack.c.bf16 %v2532, %v2532
    %v2562 = vpack.c.bf16 %v2533, %v2533
    %v2563 = vpack.c.bf16 %v2534, %v2534
    %v2564 = vpack.c.bf16 %v2535, %v2535
    %v2565 = vpack.c.bf16 %v2536, %v2536
    %v2566 = vpack.c.bf16 %v2537, %v2537
    %v2567 = vpack.c.bf16 %v2538, %v2538
    %v2568 = vpack.c.bf16 %v2539, %v2539
    %v2569 = vpack.c.bf16 %v2540, %v2540
    %v2570 = vpack.c.bf16 %v2541, %v2541
    %v2571 = vpack.c.bf16 %v2542, %v2542
    %v2572 = vpack.c.bf16 %v2543, %v2543
    %v2573 = vpack.c.bf16 %v2544, %v2544
    %v2574 = vpack.c.bf16 %v2545, %v2545
    %vm2575 = vcmask 519168
    %2576 = vst.msk [vmem:[%s4] sm:$0xf] %vm2575, %v2546
    %2577 = vst.msk [vmem:[%s4 + $0x4] sm:$0xf] %vm2575, %v2547
    %2578 = vst.msk [vmem:[%s4 + $0x8] sm:$0xf] %vm2575, %v2548
    %2579 = vst.msk [vmem:[%s4 + $0xc] sm:$0xf] %vm2575, %v2549
    %2580 = vst.msk [vmem:[%s4 + $0x10] sm:$0xf] %vm2575, %v2550
    %2581 = vst.msk [vmem:[%s4 + $0x14] sm:$0xf] %vm2575, %v2551
    %2582 = vst.msk [vmem:[%s4 + $0x18] sm:$0xf] %vm2575, %v2552
    %2583 = vst.msk [vmem:[%s4 + $0x1c] sm:$0xf] %vm2575, %v2553
    %2584 = vst.msk [vmem:[%s4 + $0x20] sm:$0xf] %vm2575, %v2554
    %2585 = vst.msk [vmem:[%s4 + $0x24] sm:$0xf] %vm2575, %v2555
    %2586 = vst.msk [vmem:[%s4 + $0x28] sm:$0xf] %vm2575, %v2556
    %2587 = vst.msk [vmem:[%s4 + $0x2c] sm:$0xf] %vm2575, %v2557
    %2588 = vst.msk [vmem:[%s4 + $0x30] sm:$0xf] %vm2575, %v2558
    %2589 = vst.msk [vmem:[%s4 + $0x34] sm:$0xf] %vm2575, %v2559
    %2590 = vst.msk [vmem:[%s4 + $0x38] sm:$0xf] %vm2575, %v2560
    %2591 = vst.msk [vmem:[%s4 + $0x3c] sm:$0xf] %vm2575, %v2561
    %2592 = vst.msk [vmem:[%s4 + $0x40] sm:$0xf] %vm2575, %v2562
    %2593 = vst.msk [vmem:[%s4 + $0x44] sm:$0xf] %vm2575, %v2563
    %2594 = vst.msk [vmem:[%s4 + $0x48] sm:$0xf] %vm2575, %v2564
    %2595 = vst.msk [vmem:[%s4 + $0x4c] sm:$0xf] %vm2575, %v2565
    %2596 = vst.msk [vmem:[%s4 + $0x50] sm:$0xf] %vm2575, %v2566
    %2597 = vst.msk [vmem:[%s4 + $0x54] sm:$0xf] %vm2575, %v2567
    %2598 = vst.msk [vmem:[%s4 + $0x58] sm:$0xf] %vm2575, %v2568
    %2599 = vst.msk [vmem:[%s4 + $0x5c] sm:$0xf] %vm2575, %v2569
    %2600 = vst.msk [vmem:[%s4 + $0x60] sm:$0xf] %vm2575, %v2570
    %2601 = vst.msk [vmem:[%s4 + $0x64] sm:$0xf] %vm2575, %v2571
    %2602 = vst.msk [vmem:[%s4 + $0x68] sm:$0xf] %vm2575, %v2572
    %2603 = vst.msk [vmem:[%s4 + $0x6c] sm:$0xf] %vm2575, %v2573
    %2604 = vst.msk [vmem:[%s4 + $0x70] sm:$0xf] %vm2575, %v2574
    // Predicated region
    $region22: #{tpu_custom_call.1} parent=1 // pred_check
      _
    $region23: #{tpu_custom_call.1} parent=1 // pred_check_branch
      %2606 = sbr.rel (0) target = $region25
    $region24: #{tpu_custom_call.1} parent=1 // pred_region
      _
    $region25: #{tpu_custom_call.1} parent=1 // pred_fallthru
      _
    // Predicated region
    $region26: #{tpu_custom_call.1} parent=1 // pred_check
      _
    $region27: #{tpu_custom_call.1} parent=1 // pred_check_branch
      %2608 = sbr.rel (0) target = $region29
    $region28: #{tpu_custom_call.1} parent=1 // pred_region
      _
    $region29: #{tpu_custom_call.1} parent=1 // pred_fallthru
      _
    %2609 = vsyncpa [#allocation5], 1

</llo_original>
